<compile_context>
chip_gen: v7x
topology: tpu7x:2x2x1
jax: 0.10.0
libtpu: 0.0.40
codegen_flags: <defaults>
</compile_context>

<pallas_src>
import functools

import jax
import jax.numpy as jnp
from jax.experimental import pallas as pl
from jax.experimental.pallas import tpu as pltpu

EPS = 1e-6  # Norm() eps in the reference implementation


def _norm_f32(x, alpha, bias, d):
    # torch: alpha * (x - mean) / (std_unbiased + eps) + bias
    mean = jnp.mean(x, axis=-1, keepdims=True)
    var = jnp.sum((x - mean) ** 2, axis=-1, keepdims=True) / (d - 1)
    return alpha * (x - mean) / (jnp.sqrt(var) + EPS) + bias


# --------------------------------------------------------------------------
# Fused kernel: nec2vec + N encoder layers + debedder.  grid = (B, N)
# --------------------------------------------------------------------------
def _fused_decoder_kernel(
    # inputs
    z_ref, db_ref, wn_ref, bc_ref,
    a1_ref, nb1_ref, a2_ref, nb2_ref,
    wq_ref, bq_ref, wk_ref, bk_ref, wv_ref, bv_ref, wo_ref, bo_ref,
    w1_ref, b1_ref, w2_ref, b2_ref,
    wd_ref, bd_ref,
    # outputs
    out_ref, s_ref,
    # scratch
    y_acc,
    *, S, E, heads, d_k, n_layers, mdt,
):
    # TODO(synk): attention mask path (mask is None in this forward) not implemented.
    layer = pl.program_id(1)

    # ---------- grid step (b, 0): bottleneck linear (nec2vec) + pos embedding ----------
    @pl.when(layer == 0)
    def _():
        zb = (z_ref[0] + db_ref[...]).astype(mdt)            # (1, latent)
        for s in range(S):                                   # S static & tiny
            y_acc[s:s + 1, :] = (
                jnp.dot(zb, wn_ref[s], preferred_element_type=jnp.float32)
                + bc_ref[s:s + 1, :]
            )

    x = y_acc[...]                                           # (S, E) f32, VMEM-resident

    # ---------- pre-norm + multi-head self-attention (per-head weight slices) ----------
    x2 = _norm_f32(x, a1_ref[0], nb1_ref[0], E).astype(mdt)
    scale = 1.0 / jnp.sqrt(jnp.float32(d_k))

    acc = x + bo_ref[0]                                      # residual + out-proj bias
    for h in range(heads):                                   # heads static & small
        c0, c1 = h * d_k, (h + 1) * d_k
        q_h = (jnp.dot(x2, wq_ref[0, :, c0:c1], preferred_element_type=jnp.float32)
               + bq_ref[0, :, c0:c1])
        k_h = (jnp.dot(x2, wk_ref[0, :, c0:c1], preferred_element_type=jnp.float32)
               + bk_ref[0, :, c0:c1])
        v_h = (jnp.dot(x2, wv_ref[0, :, c0:c1], preferred_element_type=jnp.float32)
               + bv_ref[0, :, c0:c1])
        sc = jnp.dot(q_h, k_h.T, preferred_element_type=jnp.float32) * scale
        sc = sc - jnp.max(sc, axis=-1, keepdims=True)
        e = jnp.exp(sc)
        p = e / jnp.sum(e, axis=-1, keepdims=True)           # (S, S) softmax probs
        s_ref[0, h] = p                                      # returned 'scores'
        o_h = jnp.dot(p.astype(mdt), v_h.astype(mdt),
                      preferred_element_type=jnp.float32)
        # accumulate head output straight into the output projection (no concat)
        acc = acc + jnp.dot(o_h.astype(mdt), wo_ref[0, c0:c1, :],
                            preferred_element_type=jnp.float32)
    x = acc                                                  # dropout_1 == identity (eval)

    # ---------- pre-norm + feed-forward (ReLU) ----------
    x2 = _norm_f32(x, a2_ref[0], nb2_ref[0], E).astype(mdt)
    h1 = jnp.maximum(
        jnp.dot(x2, w1_ref[0], preferred_element_type=jnp.float32) + b1_ref[0], 0.0)
    ff = jnp.dot(h1.astype(mdt), w2_ref[0], preferred_element_type=jnp.float32) + b2_ref[0]
    y_new = x + ff                                           # dropout_2 == identity (eval)
    y_acc[...] = y_new

    # ---------- grid step (b, N-1): Debedder Linear(E, 1) ----------
    @pl.when(layer == n_layers - 1)
    def _():
        out_ref[0] = (jnp.sum(y_new * wd_ref[...], axis=-1, keepdims=True)
                      + bd_ref[...])


# --------------------------------------------------------------------------
# Host-side one-time parameter preprocessing (pure plumbing, done once)
# --------------------------------------------------------------------------
def prepare_params(params, *, heads, param_dtype=jnp.float32):
    """Stack per-layer weights along a leading N axis (layer-driven prefetch),
    fold the position embedding into the bottleneck bias, reshape the bottleneck
    weight to (S, latent, E).  Set param_dtype=jnp.bfloat16 on v6e/v7x to feed
    the MXU bf16 operands (norm/softmax/accumulation stay f32)."""
    pos = params["pos"]
    S, E = pos.shape
    latent = params["wn"].shape[0]
    N = len(params["layers"])

    def stack(key):
        return jnp.stack([lp[key] for lp in params["layers"]], axis=0)

    def castw(a):
        return a.astype(param_dtype)

    return {
        "S": S, "E": E, "heads": heads, "N": N,
        "db": params["decoder_bias"].reshape(1, latent).astype(jnp.float32),
        # (latent, S*E) -> (S, latent, E): per-position weight slab
        "WN": castw(params["wn"].reshape(latent, S, E).transpose(1, 0, 2)),
        # bottleneck bias + position embedding, folded once: (S, E)
        "BC": (params["bn"].reshape(S, E) + pos).astype(jnp.float32),
        "A1": stack("alpha1"), "NB1": stack("norm_b1"),
        "A2": stack("alpha2"), "NB2": stack("norm_b2"),
        "WQ": castw(stack("wq")), "BQ": stack("bq"),
        "WK": castw(stack("wk")), "BK": stack("bk"),
        "WV": castw(stack("wv")), "BV": stack("bv"),
        "WO": castw(stack("wo")), "BO": stack("bo"),
        "W1": castw(stack("w1")), "B1": stack("b1"),
        "W2": castw(stack("w2")), "B2": stack("b2"),
        "WD": params["wd"].reshape(1, E).astype(jnp.float32),
        "BD": params["bd"].reshape(1, 1).astype(jnp.float32),
    }


# --------------------------------------------------------------------------
# Forward: a single pallas_call
# --------------------------------------------------------------------------
def decoder_transformer_forward(z, prep):
    B, latent = z.shape
    S, E, heads, N = prep["S"], prep["E"], prep["heads"], prep["N"]
    d_k = E // heads
    mdt = prep["WQ"].dtype

    z3 = z.reshape(B, 1, latent)

    kern = functools.partial(
        _fused_decoder_kernel,
        S=S, E=E, heads=heads, d_k=d_k, n_layers=N, mdt=mdt)

    def const_spec(arr):
        return pl.BlockSpec(arr.shape, lambda b, l, _n=arr.ndim: (0,) * _n)

    def layer_spec(arr):
        # stacked (N, ...) parameter: leading dim driven by the layer grid axis
        return pl.BlockSpec((1,) + arr.shape[1:],
                            lambda b, l, _n=arr.ndim: (l,) + (0,) * (_n - 1))

    layer_keys = ("A1", "NB1", "A2", "NB2",
                  "WQ", "BQ", "WK", "BK", "WV", "BV", "WO", "BO",
                  "W1", "B1", "W2", "B2")

    arrays = [z3, prep["db"], prep["WN"], prep["BC"]]
    in_specs = [
        pl.BlockSpec((1, 1, latent), lambda b, l: (b, 0, 0)),
        const_spec(prep["db"]),
        const_spec(prep["WN"]),
        const_spec(prep["BC"]),
    ]
    for k in layer_keys:
        arrays.append(prep[k])
        in_specs.append(layer_spec(prep[k]))
    arrays += [prep["WD"], prep["BD"]]
    in_specs += [const_spec(prep["WD"]), const_spec(prep["BD"])]

    out_specs = (
        # final (B, S) result (trailing singleton avoids an in-kernel transpose)
        pl.BlockSpec((1, S, 1), lambda b, l: (b, 0, 0)),
        # per-(layer, batch) attention scores
        pl.BlockSpec((1, heads, S, S), lambda b, l: (l * B + b, 0, 0, 0)),
    )
    out_shape = (
        jax.ShapeDtypeStruct((B, S, 1), jnp.float32),
        jax.ShapeDtypeStruct((N * B, heads, S, S), jnp.float32),
    )

    out, scores = pl.pallas_call(
        kern,
        grid=(B, N),
        in_specs=in_specs,
        out_specs=out_specs,
        out_shape=out_shape,
        scratch_shapes=[pltpu.VMEM((S, E), jnp.float32)],
        compiler_params=pltpu.CompilerParams(
            dimension_semantics=("parallel", "arbitrary")),
    )(*arrays)

    scores = scores.reshape(N, B, heads, S, S)
    return out[:, :, 0], [scores[l] for l in range(N)]


# --------------------------------------------------------------------------
# Pure-JAX reference (semantics of the PyTorch module, eval mode)
# --------------------------------------------------------------------------
def _norm_ref(x, a, b):
    m = jnp.mean(x, axis=-1, keepdims=True)
    s = jnp.sqrt(jnp.sum((x - m) ** 2, axis=-1, keepdims=True) / (x.shape[-1] - 1))
    return a * (x - m) / (s + EPS) + b


def reference_forward(z, params, *, heads):
    seq, embed = params["pos"].shape
    B = z.shape[0]
    d_k = embed // heads

    z = z + params["decoder_bias"][None, :]
    y = z @ params["wn"] + params["bn"][None, :]
    y = y.reshape(B, seq, embed) + params["pos"][None]

    scores_all = []
    for lp in params["layers"]:
        x = y
        x2 = _norm_ref(x, lp["alpha1"], lp["norm_b1"])
        q = x2 @ lp["wq"] + lp["bq"]
        k = x2 @ lp["wk"] + lp["bk"]
        v = x2 @ lp["wv"] + lp["bv"]

        def split(t):
            return t.reshape(B, seq, heads, d_k).transpose(0, 2, 1, 3)

        qh, kh, vh = split(q), split(k), split(v)
        sc = jnp.einsum("bhqd,bhkd->bhqk", qh, kh) / jnp.sqrt(jnp.float32(d_k))
        p = jax.nn.softmax(sc, axis=-1)
        o = jnp.einsum("bhqk,bhkd->bhqd", p, vh)
        o = o.transpose(0, 2, 1, 3).reshape(B, seq, embed)
        x = x + (o @ lp["wo"] + lp["bo"])

        x2 = _norm_ref(x, lp["alpha2"], lp["norm_b2"])
        ff = jnp.maximum(x2 @ lp["w1"] + lp["b1"], 0.0) @ lp["w2"] + lp["b2"]
        y = x + ff
        scores_all.append(p)

    out = jnp.sum(y * params["wd"], axis=-1) + params["bd"][0, 0]
    return out, scores_all


# --------------------------------------------------------------------------
# Deterministic parameter construction (synthetic; no checkpoint load)
# --------------------------------------------------------------------------
def make_params(key, *, N, latent, seq, embed, d_ff):
    n_rand = 5 + 12 * N
    keys = iter(jax.random.split(key, n_rand))

    def rnd(shape, fan_in):
        return (jax.random.normal(next(keys), shape, jnp.float32)
                / jnp.sqrt(jnp.float32(fan_in)))

    params = {
        "decoder_bias": jnp.zeros((latent,), jnp.float32),
        "wn": rnd((latent, seq * embed), latent),
        "bn": 0.1 * rnd((seq * embed,), 1.0),
        "pos": rnd((seq, embed), 1.0),
        "wd": rnd((1, 1, embed), embed),
        "bd": 0.1 * rnd((1, 1), 1.0),
        "layers": [],
    }
    for _ in range(N):
        lp = {
            "alpha1": jnp.ones((1, embed), jnp.float32),
            "norm_b1": jnp.zeros((1, embed), jnp.float32),
            "alpha2": jnp.ones((1, embed), jnp.float32),
            "norm_b2": jnp.zeros((1, embed), jnp.float32),
            "wq": rnd((embed, embed), embed), "bq": 0.1 * rnd((1, embed), 1.0),
            "wk": rnd((embed, embed), embed), "bk": 0.1 * rnd((1, embed), 1.0),
            "wv": rnd((embed, embed), embed), "bv": 0.1 * rnd((1, embed), 1.0),
            "wo": rnd((embed, embed), embed), "bo": 0.1 * rnd((1, embed), 1.0),
            "w1": rnd((embed, d_ff), embed), "b1": 0.1 * rnd((1, d_ff), 1.0),
            "w2": rnd((d_ff, embed), d_ff), "b2": 0.1 * rnd((1, embed), 1.0),
        }
        params["layers"].append(lp)
    return params


if __name__ == "__main__":
    # small config consistent with the module:
    #   N=2 blocks, input_dim == max_seq_len = 8, embed=32, heads=4,
    #   d_ff=64, latent=16, batch=2
    N, SEQ, EMBED, HEADS, DFF, LATENT, B = 2, 8, 32, 4, 64, 16, 2

    key = jax.random.PRNGKey(0)
    k_params, k_z = jax.random.split(key)
    params = make_params(k_params, N=N, latent=LATENT, seq=SEQ, embed=EMBED, d_ff=DFF)
    z = jax.random.normal(k_z, (B, LATENT), jnp.float32)

    # one-time host-side preprocessing (outside the per-call path)
    prep = prepare_params(params, heads=HEADS, param_dtype=jnp.float32)

    out, attn_scores = decoder_transformer_forward(z, prep)
    out = jax.block_until_ready(out)

    ref_out, ref_scores = reference_forward(z, params, heads=HEADS)
    assert out.shape == (B, SEQ)
    assert jnp.allclose(out, ref_out, rtol=1e-3, atol=1e-3), "output mismatch"
    for s, rs in zip(attn_scores, ref_scores):
        assert s.shape == (B, HEADS, SEQ, SEQ)
        assert jnp.allclose(s, rs, rtol=1e-3, atol=1e-3), "attn score mismatch"

    print("KERNEL_OK")
</pallas_src>

<mosaic_0001>
module attributes {stable_mosaic.version = 11 : i64} {
  func.func @_fused_decoder_kernel(%arg0: i32, %arg1: i32, %arg2: memref<1x1x16xf32, #tpu.memory_space<vmem>>, %arg3: memref<1x16xf32, #tpu.memory_space<vmem>>, %arg4: memref<8x16x32xf32, #tpu.memory_space<vmem>>, %arg5: memref<8x32xf32, #tpu.memory_space<vmem>>, %arg6: memref<1x1x32xf32, #tpu.memory_space<vmem>>, %arg7: memref<1x1x32xf32, #tpu.memory_space<vmem>>, %arg8: memref<1x1x32xf32, #tpu.memory_space<vmem>>, %arg9: memref<1x1x32xf32, #tpu.memory_space<vmem>>, %arg10: memref<1x32x32xf32, #tpu.memory_space<vmem>>, %arg11: memref<1x1x32xf32, #tpu.memory_space<vmem>>, %arg12: memref<1x32x32xf32, #tpu.memory_space<vmem>>, %arg13: memref<1x1x32xf32, #tpu.memory_space<vmem>>, %arg14: memref<1x32x32xf32, #tpu.memory_space<vmem>>, %arg15: memref<1x1x32xf32, #tpu.memory_space<vmem>>, %arg16: memref<1x32x32xf32, #tpu.memory_space<vmem>>, %arg17: memref<1x1x32xf32, #tpu.memory_space<vmem>>, %arg18: memref<1x32x64xf32, #tpu.memory_space<vmem>>, %arg19: memref<1x1x64xf32, #tpu.memory_space<vmem>>, %arg20: memref<1x64x32xf32, #tpu.memory_space<vmem>>, %arg21: memref<1x1x32xf32, #tpu.memory_space<vmem>>, %arg22: memref<1x32xf32, #tpu.memory_space<vmem>>, %arg23: memref<1x1xf32, #tpu.memory_space<vmem>>, %arg24: memref<1x8x1xf32, #tpu.memory_space<vmem>>, %arg25: memref<1x4x8x8xf32, #tpu.memory_space<vmem>>, %arg26: memref<8x32xf32, #tpu.memory_space<vmem>>) attributes {dimension_semantics = [#tpu.dimension_semantics<parallel>, #tpu.dimension_semantics<arbitrary>], iteration_bounds = array<i64: 2, 2>, scalar_prefetch = 0 : i64, scratch_operands = 1 : i64, tpu.core_type = #tpu.core_type<tc>, window_params = [{transform_indices = @transform_0, window_bounds = array<i64: 1, 1, 16>}, {pipeline_mode = #tpu.pipeline_mode<synchronous>, transform_indices = @transform_1, window_bounds = array<i64: 1, 16>}, {pipeline_mode = #tpu.pipeline_mode<synchronous>, transform_indices = @transform_2, window_bounds = array<i64: 8, 16, 32>}, {pipeline_mode = #tpu.pipeline_mode<synchronous>, transform_indices = @transform_3, window_bounds = array<i64: 8, 32>}, {transform_indices = @transform_4, window_bounds = array<i64: 1, 1, 32>}, {transform_indices = @transform_5, window_bounds = array<i64: 1, 1, 32>}, {transform_indices = @transform_6, window_bounds = array<i64: 1, 1, 32>}, {transform_indices = @transform_7, window_bounds = array<i64: 1, 1, 32>}, {transform_indices = @transform_8, window_bounds = array<i64: 1, 32, 32>}, {transform_indices = @transform_9, window_bounds = array<i64: 1, 1, 32>}, {transform_indices = @transform_10, window_bounds = array<i64: 1, 32, 32>}, {transform_indices = @transform_11, window_bounds = array<i64: 1, 1, 32>}, {transform_indices = @transform_12, window_bounds = array<i64: 1, 32, 32>}, {transform_indices = @transform_13, window_bounds = array<i64: 1, 1, 32>}, {transform_indices = @transform_14, window_bounds = array<i64: 1, 32, 32>}, {transform_indices = @transform_15, window_bounds = array<i64: 1, 1, 32>}, {transform_indices = @transform_16, window_bounds = array<i64: 1, 32, 64>}, {transform_indices = @transform_17, window_bounds = array<i64: 1, 1, 64>}, {transform_indices = @transform_18, window_bounds = array<i64: 1, 64, 32>}, {transform_indices = @transform_19, window_bounds = array<i64: 1, 1, 32>}, {pipeline_mode = #tpu.pipeline_mode<synchronous>, transform_indices = @transform_20, window_bounds = array<i64: 1, 32>}, {pipeline_mode = #tpu.pipeline_mode<synchronous>, transform_indices = @transform_21, window_bounds = array<i64: 1, 1>}, {transform_indices = @transform_22, window_bounds = array<i64: 1, 8, 1>}, {transform_indices = @transform_23, window_bounds = array<i64: 1, 4, 8, 8>}]} {
    %c0_i32 = arith.constant 0 : i32
    %0 = arith.cmpi eq, %arg1, %c0_i32 : i32
    %1 = arith.extui %0 : i1 to i32
    %c0_i32_0 = arith.constant 0 : i32
    %2 = arith.cmpi ne, %1, %c0_i32_0 : i32
    scf.if %2 {
      %c0_172 = arith.constant 0 : index
      %c0_173 = arith.constant 0 : index
      %c0_174 = arith.constant 0 : index
      %251 = vector.load %arg2[%c0_172, %c0_173, %c0_174] : memref<1x1x16xf32, #tpu.memory_space<vmem>>, vector<1x1x16xf32>
      %252 = vector.shape_cast %251 : vector<1x1x16xf32> to vector<1x16xf32>
      %c0_175 = arith.constant 0 : index
      %c0_176 = arith.constant 0 : index
      %253 = vector.load %arg3[%c0_175, %c0_176] : memref<1x16xf32, #tpu.memory_space<vmem>>, vector<1x16xf32>
      %254 = arith.addf %252, %253 : vector<1x16xf32>
      %c0_177 = arith.constant 0 : index
      %c0_178 = arith.constant 0 : index
      %c0_179 = arith.constant 0 : index
      %255 = vector.load %arg4[%c0_177, %c0_178, %c0_179] : memref<8x16x32xf32, #tpu.memory_space<vmem>>, vector<1x16x32xf32>
      %256 = vector.shape_cast %255 : vector<1x16x32xf32> to vector<16x32xf32>
      %cst_180 = arith.constant dense<0.000000e+00> : vector<1x32xf32>
      %257 = tpu.matmul %254, %256, %cst_180 {dimension_numbers = #tpu.dot_dimension_numbers<[1], [0], [0], [1], [0, 0, 1, 1], [], []>} : vector<1x16xf32>, vector<16x32xf32>, vector<1x32xf32> -> vector<1x32xf32>
      %c0_181 = arith.constant 0 : index
      %c0_182 = arith.constant 0 : index
      %258 = vector.load %arg5[%c0_181, %c0_182] : memref<8x32xf32, #tpu.memory_space<vmem>>, vector<1x32xf32>
      %259 = arith.addf %257, %258 : vector<1x32xf32>
      %c0_183 = arith.constant 0 : index
      %c0_184 = arith.constant 0 : index
      %260 = vector.load %arg26[%c0_183, %c0_184] : memref<8x32xf32, #tpu.memory_space<vmem>>, vector<1x32xf32>
      tpu.vector_store %arg26[%c0_183, %c0_184], %259 {strides = array<i32>} : memref<8x32xf32, #tpu.memory_space<vmem>>, vector<1x32xf32>,
      %c1_185 = arith.constant 1 : index
      %c0_186 = arith.constant 0 : index
      %c0_187 = arith.constant 0 : index
      %261 = vector.load %arg4[%c1_185, %c0_186, %c0_187] : memref<8x16x32xf32, #tpu.memory_space<vmem>>, vector<1x16x32xf32>
      %262 = vector.shape_cast %261 : vector<1x16x32xf32> to vector<16x32xf32>
      %cst_188 = arith.constant dense<0.000000e+00> : vector<1x32xf32>
      %263 = tpu.matmul %254, %262, %cst_188 {dimension_numbers = #tpu.dot_dimension_numbers<[1], [0], [0], [1], [0, 0, 1, 1], [], []>} : vector<1x16xf32>, vector<16x32xf32>, vector<1x32xf32> -> vector<1x32xf32>
      %c1_189 = arith.constant 1 : index
      %c0_190 = arith.constant 0 : index
      %264 = vector.load %arg5[%c1_189, %c0_190] : memref<8x32xf32, #tpu.memory_space<vmem>>, vector<1x32xf32>
      %265 = arith.addf %263, %264 : vector<1x32xf32>
      %c1_191 = arith.constant 1 : index
      %c0_192 = arith.constant 0 : index
      %266 = vector.load %arg26[%c1_191, %c0_192] : memref<8x32xf32, #tpu.memory_space<vmem>>, vector<1x32xf32>
      tpu.vector_store %arg26[%c1_191, %c0_192], %265 {strides = array<i32>} : memref<8x32xf32, #tpu.memory_space<vmem>>, vector<1x32xf32>,
      %c2_193 = arith.constant 2 : index
      %c0_194 = arith.constant 0 : index
      %c0_195 = arith.constant 0 : index
      %267 = vector.load %arg4[%c2_193, %c0_194, %c0_195] : memref<8x16x32xf32, #tpu.memory_space<vmem>>, vector<1x16x32xf32>
      %268 = vector.shape_cast %267 : vector<1x16x32xf32> to vector<16x32xf32>
      %cst_196 = arith.constant dense<0.000000e+00> : vector<1x32xf32>
      %269 = tpu.matmul %254, %268, %cst_196 {dimension_numbers = #tpu.dot_dimension_numbers<[1], [0], [0], [1], [0, 0, 1, 1], [], []>} : vector<1x16xf32>, vector<16x32xf32>, vector<1x32xf32> -> vector<1x32xf32>
      %c2_197 = arith.constant 2 : index
      %c0_198 = arith.constant 0 : index
      %270 = vector.load %arg5[%c2_197, %c0_198] : memref<8x32xf32, #tpu.memory_space<vmem>>, vector<1x32xf32>
      %271 = arith.addf %269, %270 : vector<1x32xf32>
      %c2_199 = arith.constant 2 : index
      %c0_200 = arith.constant 0 : index
      %272 = vector.load %arg26[%c2_199, %c0_200] : memref<8x32xf32, #tpu.memory_space<vmem>>, vector<1x32xf32>
      tpu.vector_store %arg26[%c2_199, %c0_200], %271 {strides = array<i32>} : memref<8x32xf32, #tpu.memory_space<vmem>>, vector<1x32xf32>,
      %c3_201 = arith.constant 3 : index
      %c0_202 = arith.constant 0 : index
      %c0_203 = arith.constant 0 : index
      %273 = vector.load %arg4[%c3_201, %c0_202, %c0_203] : memref<8x16x32xf32, #tpu.memory_space<vmem>>, vector<1x16x32xf32>
      %274 = vector.shape_cast %273 : vector<1x16x32xf32> to vector<16x32xf32>
      %cst_204 = arith.constant dense<0.000000e+00> : vector<1x32xf32>
      %275 = tpu.matmul %254, %274, %cst_204 {dimension_numbers = #tpu.dot_dimension_numbers<[1], [0], [0], [1], [0, 0, 1, 1], [], []>} : vector<1x16xf32>, vector<16x32xf32>, vector<1x32xf32> -> vector<1x32xf32>
      %c3_205 = arith.constant 3 : index
      %c0_206 = arith.constant 0 : index
      %276 = vector.load %arg5[%c3_205, %c0_206] : memref<8x32xf32, #tpu.memory_space<vmem>>, vector<1x32xf32>
      %277 = arith.addf %275, %276 : vector<1x32xf32>
      %c3_207 = arith.constant 3 : index
      %c0_208 = arith.constant 0 : index
      %278 = vector.load %arg26[%c3_207, %c0_208] : memref<8x32xf32, #tpu.memory_space<vmem>>, vector<1x32xf32>
      tpu.vector_store %arg26[%c3_207, %c0_208], %277 {strides = array<i32>} : memref<8x32xf32, #tpu.memory_space<vmem>>, vector<1x32xf32>,
      %c4 = arith.constant 4 : index
      %c0_209 = arith.constant 0 : index
      %c0_210 = arith.constant 0 : index
      %279 = vector.load %arg4[%c4, %c0_209, %c0_210] : memref<8x16x32xf32, #tpu.memory_space<vmem>>, vector<1x16x32xf32>
      %280 = vector.shape_cast %279 : vector<1x16x32xf32> to vector<16x32xf32>
      %cst_211 = arith.constant dense<0.000000e+00> : vector<1x32xf32>
      %281 = tpu.matmul %254, %280, %cst_211 {dimension_numbers = #tpu.dot_dimension_numbers<[1], [0], [0], [1], [0, 0, 1, 1], [], []>} : vector<1x16xf32>, vector<16x32xf32>, vector<1x32xf32> -> vector<1x32xf32>
      %c4_212 = arith.constant 4 : index
      %c0_213 = arith.constant 0 : index
      %282 = vector.load %arg5[%c4_212, %c0_213] : memref<8x32xf32, #tpu.memory_space<vmem>>, vector<1x32xf32>
      %283 = arith.addf %281, %282 : vector<1x32xf32>
      %c4_214 = arith.constant 4 : index
      %c0_215 = arith.constant 0 : index
      %284 = vector.load %arg26[%c4_214, %c0_215] : memref<8x32xf32, #tpu.memory_space<vmem>>, vector<1x32xf32>
      tpu.vector_store %arg26[%c4_214, %c0_215], %283 {strides = array<i32>} : memref<8x32xf32, #tpu.memory_space<vmem>>, vector<1x32xf32>,
      %c5 = arith.constant 5 : index
      %c0_216 = arith.constant 0 : index
      %c0_217 = arith.constant 0 : index
      %285 = vector.load %arg4[%c5, %c0_216, %c0_217] : memref<8x16x32xf32, #tpu.memory_space<vmem>>, vector<1x16x32xf32>
      %286 = vector.shape_cast %285 : vector<1x16x32xf32> to vector<16x32xf32>
      %cst_218 = arith.constant dense<0.000000e+00> : vector<1x32xf32>
      %287 = tpu.matmul %254, %286, %cst_218 {dimension_numbers = #tpu.dot_dimension_numbers<[1], [0], [0], [1], [0, 0, 1, 1], [], []>} : vector<1x16xf32>, vector<16x32xf32>, vector<1x32xf32> -> vector<1x32xf32>
      %c5_219 = arith.constant 5 : index
      %c0_220 = arith.constant 0 : index
      %288 = vector.load %arg5[%c5_219, %c0_220] : memref<8x32xf32, #tpu.memory_space<vmem>>, vector<1x32xf32>
      %289 = arith.addf %287, %288 : vector<1x32xf32>
      %c5_221 = arith.constant 5 : index
      %c0_222 = arith.constant 0 : index
      %290 = vector.load %arg26[%c5_221, %c0_222] : memref<8x32xf32, #tpu.memory_space<vmem>>, vector<1x32xf32>
      tpu.vector_store %arg26[%c5_221, %c0_222], %289 {strides = array<i32>} : memref<8x32xf32, #tpu.memory_space<vmem>>, vector<1x32xf32>,
      %c6 = arith.constant 6 : index
      %c0_223 = arith.constant 0 : index
      %c0_224 = arith.constant 0 : index
      %291 = vector.load %arg4[%c6, %c0_223, %c0_224] : memref<8x16x32xf32, #tpu.memory_space<vmem>>, vector<1x16x32xf32>
      %292 = vector.shape_cast %291 : vector<1x16x32xf32> to vector<16x32xf32>
      %cst_225 = arith.constant dense<0.000000e+00> : vector<1x32xf32>
      %293 = tpu.matmul %254, %292, %cst_225 {dimension_numbers = #tpu.dot_dimension_numbers<[1], [0], [0], [1], [0, 0, 1, 1], [], []>} : vector<1x16xf32>, vector<16x32xf32>, vector<1x32xf32> -> vector<1x32xf32>
      %c6_226 = arith.constant 6 : index
      %c0_227 = arith.constant 0 : index
      %294 = vector.load %arg5[%c6_226, %c0_227] : memref<8x32xf32, #tpu.memory_space<vmem>>, vector<1x32xf32>
      %295 = arith.addf %293, %294 : vector<1x32xf32>
      %c6_228 = arith.constant 6 : index
      %c0_229 = arith.constant 0 : index
      %296 = vector.load %arg26[%c6_228, %c0_229] : memref<8x32xf32, #tpu.memory_space<vmem>>, vector<1x32xf32>
      tpu.vector_store %arg26[%c6_228, %c0_229], %295 {strides = array<i32>} : memref<8x32xf32, #tpu.memory_space<vmem>>, vector<1x32xf32>,
      %c7 = arith.constant 7 : index
      %c0_230 = arith.constant 0 : index
      %c0_231 = arith.constant 0 : index
      %297 = vector.load %arg4[%c7, %c0_230, %c0_231] : memref<8x16x32xf32, #tpu.memory_space<vmem>>, vector<1x16x32xf32>
      %298 = vector.shape_cast %297 : vector<1x16x32xf32> to vector<16x32xf32>
      %cst_232 = arith.constant dense<0.000000e+00> : vector<1x32xf32>
      %299 = tpu.matmul %254, %298, %cst_232 {dimension_numbers = #tpu.dot_dimension_numbers<[1], [0], [0], [1], [0, 0, 1, 1], [], []>} : vector<1x16xf32>, vector<16x32xf32>, vector<1x32xf32> -> vector<1x32xf32>
      %c7_233 = arith.constant 7 : index
      %c0_234 = arith.constant 0 : index
      %300 = vector.load %arg5[%c7_233, %c0_234] : memref<8x32xf32, #tpu.memory_space<vmem>>, vector<1x32xf32>
      %301 = arith.addf %299, %300 : vector<1x32xf32>
      %c7_235 = arith.constant 7 : index
      %c0_236 = arith.constant 0 : index
      %302 = vector.load %arg26[%c7_235, %c0_236] : memref<8x32xf32, #tpu.memory_space<vmem>>, vector<1x32xf32>
      tpu.vector_store %arg26[%c7_235, %c0_236], %301 {strides = array<i32>} : memref<8x32xf32, #tpu.memory_space<vmem>>, vector<1x32xf32>,
    } else {
    }
    %c0 = arith.constant 0 : index
    %c0_1 = arith.constant 0 : index
    %3 = vector.load %arg26[%c0, %c0_1] : memref<8x32xf32, #tpu.memory_space<vmem>>, vector<8x32xf32>
    %c0_2 = arith.constant 0 : index
    %c0_3 = arith.constant 0 : index
    %c0_4 = arith.constant 0 : index
    %4 = vector.load %arg6[%c0_2, %c0_3, %c0_4] : memref<1x1x32xf32, #tpu.memory_space<vmem>>, vector<1x1x32xf32>
    %5 = vector.shape_cast %4 : vector<1x1x32xf32> to vector<1x32xf32>
    %c0_5 = arith.constant 0 : index
    %c0_6 = arith.constant 0 : index
    %c0_7 = arith.constant 0 : index
    %6 = vector.load %arg7[%c0_5, %c0_6, %c0_7] : memref<1x1x32xf32, #tpu.memory_space<vmem>>, vector<1x1x32xf32>
    %7 = vector.shape_cast %6 : vector<1x1x32xf32> to vector<1x32xf32>
    %cst = arith.constant dense<0.000000e+00> : vector<8xf32>
    %8 = vector.multi_reduction <add>, %3, %cst [1] : vector<8x32xf32> to vector<8xf32>
    %9 = vector.shape_cast %8 : vector<8xf32> to vector<8x1xf32>
    %cst_8 = arith.constant 3.200000e+01 : f32
    %10 = vector.broadcast %cst_8 : f32 to vector<8x1xf32>
    %11 = arith.divf %9, %10 : vector<8x1xf32>
    %12 = vector.broadcast %11 : vector<8x1xf32> to vector<8x32xf32>
    %13 = arith.subf %3, %12 : vector<8x32xf32>
    %14 = arith.mulf %13, %13 : vector<8x32xf32>
    %cst_9 = arith.constant dense<0.000000e+00> : vector<8xf32>
    %15 = vector.multi_reduction <add>, %14, %cst_9 [1] : vector<8x32xf32> to vector<8xf32>
    %16 = vector.shape_cast %15 : vector<8xf32> to vector<8x1xf32>
    %cst_10 = arith.constant 3.100000e+01 : f32
    %17 = vector.broadcast %cst_10 : f32 to vector<8x1xf32>
    %18 = arith.divf %16, %17 : vector<8x1xf32>
    %19 = vector.broadcast %11 : vector<8x1xf32> to vector<8x32xf32>
    %20 = arith.subf %3, %19 : vector<8x32xf32>
    %21 = vector.broadcast %5 : vector<1x32xf32> to vector<8x32xf32>
    %22 = arith.mulf %21, %20 : vector<8x32xf32>
    %23 = math.sqrt %18 : vector<8x1xf32>
    %cst_11 = arith.constant 9.99999997E-7 : f32
    %24 = vector.broadcast %cst_11 : f32 to vector<8x1xf32>
    %25 = arith.addf %23, %24 : vector<8x1xf32>
    %26 = vector.broadcast %25 : vector<8x1xf32> to vector<8x32xf32>
    %27 = arith.divf %22, %26 : vector<8x32xf32>
    %28 = vector.broadcast %7 : vector<1x32xf32> to vector<8x32xf32>
    %29 = arith.addf %27, %28 : vector<8x32xf32>
    %cst_12 = arith.constant 8.000000e+00 : f32
    %30 = math.sqrt %cst_12 : f32
    %cst_13 = arith.constant 1.000000e+00 : f32
    %31 = arith.divf %cst_13, %30 : f32
    %c0_14 = arith.constant 0 : index
    %c0_15 = arith.constant 0 : index
    %c0_16 = arith.constant 0 : index
    %32 = vector.load %arg17[%c0_14, %c0_15, %c0_16] : memref<1x1x32xf32, #tpu.memory_space<vmem>>, vector<1x1x32xf32>
    %33 = vector.shape_cast %32 : vector<1x1x32xf32> to vector<1x32xf32>
    %34 = vector.broadcast %33 : vector<1x32xf32> to vector<8x32xf32>
    %35 = arith.addf %3, %34 : vector<8x32xf32>
    %c0_17 = arith.constant 0 : index
    %c0_18 = arith.constant 0 : index
    %c0_19 = arith.constant 0 : index
    %36 = vector.load %arg10[%c0_17, %c0_18, %c0_19] : memref<1x32x32xf32, #tpu.memory_space<vmem>>, vector<1x32x8xf32>
    %37 = vector.shape_cast %36 : vector<1x32x8xf32> to vector<32x8xf32>
    %cst_20 = arith.constant dense<0.000000e+00> : vector<8x8xf32>
    %38 = tpu.matmul %29, %37, %cst_20 {dimension_numbers = #tpu.dot_dimension_numbers<[1], [0], [0], [1], [0, 0, 1, 1], [], []>} : vector<8x32xf32>, vector<32x8xf32>, vector<8x8xf32> -> vector<8x8xf32>
    %c0_21 = arith.constant 0 : index
    %c0_22 = arith.constant 0 : index
    %c0_23 = arith.constant 0 : index
    %39 = vector.load %arg11[%c0_21, %c0_22, %c0_23] : memref<1x1x32xf32, #tpu.memory_space<vmem>>, vector<1x1x8xf32>
    %40 = vector.shape_cast %39 : vector<1x1x8xf32> to vector<1x8xf32>
    %41 = vector.broadcast %40 : vector<1x8xf32> to vector<8x8xf32>
    %42 = arith.addf %38, %41 : vector<8x8xf32>
    %c0_24 = arith.constant 0 : index
    %c0_25 = arith.constant 0 : index
    %c0_26 = arith.constant 0 : index
    %43 = vector.load %arg12[%c0_24, %c0_25, %c0_26] : memref<1x32x32xf32, #tpu.memory_space<vmem>>, vector<1x32x8xf32>
    %44 = vector.shape_cast %43 : vector<1x32x8xf32> to vector<32x8xf32>
    %cst_27 = arith.constant dense<0.000000e+00> : vector<8x8xf32>
    %45 = tpu.matmul %29, %44, %cst_27 {dimension_numbers = #tpu.dot_dimension_numbers<[1], [0], [0], [1], [0, 0, 1, 1], [], []>} : vector<8x32xf32>, vector<32x8xf32>, vector<8x8xf32> -> vector<8x8xf32>
    %c0_28 = arith.constant 0 : index
    %c0_29 = arith.constant 0 : index
    %c0_30 = arith.constant 0 : index
    %46 = vector.load %arg13[%c0_28, %c0_29, %c0_30] : memref<1x1x32xf32, #tpu.memory_space<vmem>>, vector<1x1x8xf32>
    %47 = vector.shape_cast %46 : vector<1x1x8xf32> to vector<1x8xf32>
    %48 = vector.broadcast %47 : vector<1x8xf32> to vector<8x8xf32>
    %49 = arith.addf %45, %48 : vector<8x8xf32>
    %c0_31 = arith.constant 0 : index
    %c0_32 = arith.constant 0 : index
    %c0_33 = arith.constant 0 : index
    %50 = vector.load %arg14[%c0_31, %c0_32, %c0_33] : memref<1x32x32xf32, #tpu.memory_space<vmem>>, vector<1x32x8xf32>
    %51 = vector.shape_cast %50 : vector<1x32x8xf32> to vector<32x8xf32>
    %cst_34 = arith.constant dense<0.000000e+00> : vector<8x8xf32>
    %52 = tpu.matmul %29, %51, %cst_34 {dimension_numbers = #tpu.dot_dimension_numbers<[1], [0], [0], [1], [0, 0, 1, 1], [], []>} : vector<8x32xf32>, vector<32x8xf32>, vector<8x8xf32> -> vector<8x8xf32>
    %c0_35 = arith.constant 0 : index
    %c0_36 = arith.constant 0 : index
    %c0_37 = arith.constant 0 : index
    %53 = vector.load %arg15[%c0_35, %c0_36, %c0_37] : memref<1x1x32xf32, #tpu.memory_space<vmem>>, vector<1x1x8xf32>
    %54 = vector.shape_cast %53 : vector<1x1x8xf32> to vector<1x8xf32>
    %55 = vector.broadcast %54 : vector<1x8xf32> to vector<8x8xf32>
    %56 = arith.addf %52, %55 : vector<8x8xf32>
    %57 = tpu.transpose %49, [1, 0] : vector<8x8xf32> -> vector<8x8xf32>
    %cst_38 = arith.constant dense<0.000000e+00> : vector<8x8xf32>
    %58 = tpu.matmul %42, %57, %cst_38 {dimension_numbers = #tpu.dot_dimension_numbers<[1], [0], [0], [1], [0, 0, 1, 1], [], []>} : vector<8x8xf32>, vector<8x8xf32>, vector<8x8xf32> -> vector<8x8xf32>
    %59 = vector.broadcast %31 : f32 to vector<8x8xf32>
    %60 = arith.mulf %58, %59 : vector<8x8xf32>
    %cst_39 = arith.constant dense<0xFF800000> : vector<8xf32>
    %61 = vector.multi_reduction <maximumf>, %60, %cst_39 [1] : vector<8x8xf32> to vector<8xf32>
    %62 = vector.shape_cast %61 : vector<8xf32> to vector<8x1xf32>
    %63 = vector.broadcast %62 : vector<8x1xf32> to vector<8x8xf32>
    %64 = arith.subf %60, %63 : vector<8x8xf32>
    %65 = math.exp %64 : vector<8x8xf32>
    %cst_40 = arith.constant dense<0.000000e+00> : vector<8xf32>
    %66 = vector.multi_reduction <add>, %65, %cst_40 [1] : vector<8x8xf32> to vector<8xf32>
    %67 = vector.shape_cast %66 : vector<8xf32> to vector<8x1xf32>
    %68 = vector.broadcast %67 : vector<8x1xf32> to vector<8x8xf32>
    %69 = arith.divf %65, %68 : vector<8x8xf32>
    %c0_41 = arith.constant 0 : index
    %c0_42 = arith.constant 0 : index
    %c0_43 = arith.constant 0 : index
    %c0_44 = arith.constant 0 : index
    %70 = vector.load %arg25[%c0_41, %c0_42, %c0_43, %c0_44] : memref<1x4x8x8xf32, #tpu.memory_space<vmem>>, vector<1x1x8x8xf32>
    %71 = vector.shape_cast %70 : vector<1x1x8x8xf32> to vector<8x8xf32>
    %72 = vector.shape_cast %69 : vector<8x8xf32> to vector<1x1x8x8xf32>
    tpu.vector_store %arg25[%c0_41, %c0_42, %c0_43, %c0_44], %72 {strides = array<i32>} : memref<1x4x8x8xf32, #tpu.memory_space<vmem>>, vector<1x1x8x8xf32>,
    %cst_45 = arith.constant dense<0.000000e+00> : vector<8x8xf32>
    %73 = tpu.matmul %69, %56, %cst_45 {dimension_numbers = #tpu.dot_dimension_numbers<[1], [0], [0], [1], [0, 0, 1, 1], [], []>} : vector<8x8xf32>, vector<8x8xf32>, vector<8x8xf32> -> vector<8x8xf32>
    %c0_46 = arith.constant 0 : index
    %c0_47 = arith.constant 0 : index
    %c0_48 = arith.constant 0 : index
    %74 = vector.load %arg16[%c0_46, %c0_47, %c0_48] : memref<1x32x32xf32, #tpu.memory_space<vmem>>, vector<1x8x32xf32>
    %75 = vector.shape_cast %74 : vector<1x8x32xf32> to vector<8x32xf32>
    %cst_49 = arith.constant dense<0.000000e+00> : vector<8x32xf32>
    %76 = tpu.matmul %73, %75, %cst_49 {dimension_numbers = #tpu.dot_dimension_numbers<[1], [0], [0], [1], [0, 0, 1, 1], [], []>} : vector<8x8xf32>, vector<8x32xf32>, vector<8x32xf32> -> vector<8x32xf32>
    %77 = arith.addf %35, %76 : vector<8x32xf32>
    %c0_50 = arith.constant 0 : index
    %c0_51 = arith.constant 0 : index
    %c8 = arith.constant 8 : index
    %78 = vector.load %arg10[%c0_50, %c0_51, %c8] : memref<1x32x32xf32, #tpu.memory_space<vmem>>, vector<1x32x8xf32>
    %79 = vector.shape_cast %78 : vector<1x32x8xf32> to vector<32x8xf32>
    %cst_52 = arith.constant dense<0.000000e+00> : vector<8x8xf32>
    %80 = tpu.matmul %29, %79, %cst_52 {dimension_numbers = #tpu.dot_dimension_numbers<[1], [0], [0], [1], [0, 0, 1, 1], [], []>} : vector<8x32xf32>, vector<32x8xf32>, vector<8x8xf32> -> vector<8x8xf32>
    %c0_53 = arith.constant 0 : index
    %c0_54 = arith.constant 0 : index
    %c8_55 = arith.constant 8 : index
    %81 = vector.load %arg11[%c0_53, %c0_54, %c8_55] : memref<1x1x32xf32, #tpu.memory_space<vmem>>, vector<1x1x8xf32>
    %82 = vector.shape_cast %81 : vector<1x1x8xf32> to vector<1x8xf32>
    %83 = vector.broadcast %82 : vector<1x8xf32> to vector<8x8xf32>
    %84 = arith.addf %80, %83 : vector<8x8xf32>
    %c0_56 = arith.constant 0 : index
    %c0_57 = arith.constant 0 : index
    %c8_58 = arith.constant 8 : index
    %85 = vector.load %arg12[%c0_56, %c0_57, %c8_58] : memref<1x32x32xf32, #tpu.memory_space<vmem>>, vector<1x32x8xf32>
    %86 = vector.shape_cast %85 : vector<1x32x8xf32> to vector<32x8xf32>
    %cst_59 = arith.constant dense<0.000000e+00> : vector<8x8xf32>
    %87 = tpu.matmul %29, %86, %cst_59 {dimension_numbers = #tpu.dot_dimension_numbers<[1], [0], [0], [1], [0, 0, 1, 1], [], []>} : vector<8x32xf32>, vector<32x8xf32>, vector<8x8xf32> -> vector<8x8xf32>
    %c0_60 = arith.constant 0 : index
    %c0_61 = arith.constant 0 : index
    %c8_62 = arith.constant 8 : index
    %88 = vector.load %arg13[%c0_60, %c0_61, %c8_62] : memref<1x1x32xf32, #tpu.memory_space<vmem>>, vector<1x1x8xf32>
    %89 = vector.shape_cast %88 : vector<1x1x8xf32> to vector<1x8xf32>
    %90 = vector.broadcast %89 : vector<1x8xf32> to vector<8x8xf32>
    %91 = arith.addf %87, %90 : vector<8x8xf32>
    %c0_63 = arith.constant 0 : index
    %c0_64 = arith.constant 0 : index
    %c8_65 = arith.constant 8 : index
    %92 = vector.load %arg14[%c0_63, %c0_64, %c8_65] : memref<1x32x32xf32, #tpu.memory_space<vmem>>, vector<1x32x8xf32>
    %93 = vector.shape_cast %92 : vector<1x32x8xf32> to vector<32x8xf32>
    %cst_66 = arith.constant dense<0.000000e+00> : vector<8x8xf32>
    %94 = tpu.matmul %29, %93, %cst_66 {dimension_numbers = #tpu.dot_dimension_numbers<[1], [0], [0], [1], [0, 0, 1, 1], [], []>} : vector<8x32xf32>, vector<32x8xf32>, vector<8x8xf32> -> vector<8x8xf32>
    %c0_67 = arith.constant 0 : index
    %c0_68 = arith.constant 0 : index
    %c8_69 = arith.constant 8 : index
    %95 = vector.load %arg15[%c0_67, %c0_68, %c8_69] : memref<1x1x32xf32, #tpu.memory_space<vmem>>, vector<1x1x8xf32>
    %96 = vector.shape_cast %95 : vector<1x1x8xf32> to vector<1x8xf32>
    %97 = vector.broadcast %96 : vector<1x8xf32> to vector<8x8xf32>
    %98 = arith.addf %94, %97 : vector<8x8xf32>
    %99 = tpu.transpose %91, [1, 0] : vector<8x8xf32> -> vector<8x8xf32>
    %cst_70 = arith.constant dense<0.000000e+00> : vector<8x8xf32>
    %100 = tpu.matmul %84, %99, %cst_70 {dimension_numbers = #tpu.dot_dimension_numbers<[1], [0], [0], [1], [0, 0, 1, 1], [], []>} : vector<8x8xf32>, vector<8x8xf32>, vector<8x8xf32> -> vector<8x8xf32>
    %101 = vector.broadcast %31 : f32 to vector<8x8xf32>
    %102 = arith.mulf %100, %101 : vector<8x8xf32>
    %cst_71 = arith.constant dense<0xFF800000> : vector<8xf32>
    %103 = vector.multi_reduction <maximumf>, %102, %cst_71 [1] : vector<8x8xf32> to vector<8xf32>
    %104 = vector.shape_cast %103 : vector<8xf32> to vector<8x1xf32>
    %105 = vector.broadcast %104 : vector<8x1xf32> to vector<8x8xf32>
    %106 = arith.subf %102, %105 : vector<8x8xf32>
    %107 = math.exp %106 : vector<8x8xf32>
    %cst_72 = arith.constant dense<0.000000e+00> : vector<8xf32>
    %108 = vector.multi_reduction <add>, %107, %cst_72 [1] : vector<8x8xf32> to vector<8xf32>
    %109 = vector.shape_cast %108 : vector<8xf32> to vector<8x1xf32>
    %110 = vector.broadcast %109 : vector<8x1xf32> to vector<8x8xf32>
    %111 = arith.divf %107, %110 : vector<8x8xf32>
    %c0_73 = arith.constant 0 : index
    %c1 = arith.constant 1 : index
    %c0_74 = arith.constant 0 : index
    %c0_75 = arith.constant 0 : index
    %112 = vector.load %arg25[%c0_73, %c1, %c0_74, %c0_75] : memref<1x4x8x8xf32, #tpu.memory_space<vmem>>, vector<1x1x8x8xf32>
    %113 = vector.shape_cast %112 : vector<1x1x8x8xf32> to vector<8x8xf32>
    %114 = vector.shape_cast %111 : vector<8x8xf32> to vector<1x1x8x8xf32>
    tpu.vector_store %arg25[%c0_73, %c1, %c0_74, %c0_75], %114 {strides = array<i32>} : memref<1x4x8x8xf32, #tpu.memory_space<vmem>>, vector<1x1x8x8xf32>,
    %cst_76 = arith.constant dense<0.000000e+00> : vector<8x8xf32>
    %115 = tpu.matmul %111, %98, %cst_76 {dimension_numbers = #tpu.dot_dimension_numbers<[1], [0], [0], [1], [0, 0, 1, 1], [], []>} : vector<8x8xf32>, vector<8x8xf32>, vector<8x8xf32> -> vector<8x8xf32>
    %c0_77 = arith.constant 0 : index
    %c8_78 = arith.constant 8 : index
    %c0_79 = arith.constant 0 : index
    %116 = vector.load %arg16[%c0_77, %c8_78, %c0_79] : memref<1x32x32xf32, #tpu.memory_space<vmem>>, vector<1x8x32xf32>
    %117 = vector.shape_cast %116 : vector<1x8x32xf32> to vector<8x32xf32>
    %cst_80 = arith.constant dense<0.000000e+00> : vector<8x32xf32>
    %118 = tpu.matmul %115, %117, %cst_80 {dimension_numbers = #tpu.dot_dimension_numbers<[1], [0], [0], [1], [0, 0, 1, 1], [], []>} : vector<8x8xf32>, vector<8x32xf32>, vector<8x32xf32> -> vector<8x32xf32>
    %119 = arith.addf %77, %118 : vector<8x32xf32>
    %c0_81 = arith.constant 0 : index
    %c0_82 = arith.constant 0 : index
    %c16 = arith.constant 16 : index
    %120 = vector.load %arg10[%c0_81, %c0_82, %c16] : memref<1x32x32xf32, #tpu.memory_space<vmem>>, vector<1x32x8xf32>
    %121 = vector.shape_cast %120 : vector<1x32x8xf32> to vector<32x8xf32>
    %cst_83 = arith.constant dense<0.000000e+00> : vector<8x8xf32>
    %122 = tpu.matmul %29, %121, %cst_83 {dimension_numbers = #tpu.dot_dimension_numbers<[1], [0], [0], [1], [0, 0, 1, 1], [], []>} : vector<8x32xf32>, vector<32x8xf32>, vector<8x8xf32> -> vector<8x8xf32>
    %c0_84 = arith.constant 0 : index
    %c0_85 = arith.constant 0 : index
    %c16_86 = arith.constant 16 : index
    %123 = vector.load %arg11[%c0_84, %c0_85, %c16_86] : memref<1x1x32xf32, #tpu.memory_space<vmem>>, vector<1x1x8xf32>
    %124 = vector.shape_cast %123 : vector<1x1x8xf32> to vector<1x8xf32>
    %125 = vector.broadcast %124 : vector<1x8xf32> to vector<8x8xf32>
    %126 = arith.addf %122, %125 : vector<8x8xf32>
    %c0_87 = arith.constant 0 : index
    %c0_88 = arith.constant 0 : index
    %c16_89 = arith.constant 16 : index
    %127 = vector.load %arg12[%c0_87, %c0_88, %c16_89] : memref<1x32x32xf32, #tpu.memory_space<vmem>>, vector<1x32x8xf32>
    %128 = vector.shape_cast %127 : vector<1x32x8xf32> to vector<32x8xf32>
    %cst_90 = arith.constant dense<0.000000e+00> : vector<8x8xf32>
    %129 = tpu.matmul %29, %128, %cst_90 {dimension_numbers = #tpu.dot_dimension_numbers<[1], [0], [0], [1], [0, 0, 1, 1], [], []>} : vector<8x32xf32>, vector<32x8xf32>, vector<8x8xf32> -> vector<8x8xf32>
    %c0_91 = arith.constant 0 : index
    %c0_92 = arith.constant 0 : index
    %c16_93 = arith.constant 16 : index
    %130 = vector.load %arg13[%c0_91, %c0_92, %c16_93] : memref<1x1x32xf32, #tpu.memory_space<vmem>>, vector<1x1x8xf32>
    %131 = vector.shape_cast %130 : vector<1x1x8xf32> to vector<1x8xf32>
    %132 = vector.broadcast %131 : vector<1x8xf32> to vector<8x8xf32>
    %133 = arith.addf %129, %132 : vector<8x8xf32>
    %c0_94 = arith.constant 0 : index
    %c0_95 = arith.constant 0 : index
    %c16_96 = arith.constant 16 : index
    %134 = vector.load %arg14[%c0_94, %c0_95, %c16_96] : memref<1x32x32xf32, #tpu.memory_space<vmem>>, vector<1x32x8xf32>
    %135 = vector.shape_cast %134 : vector<1x32x8xf32> to vector<32x8xf32>
    %cst_97 = arith.constant dense<0.000000e+00> : vector<8x8xf32>
    %136 = tpu.matmul %29, %135, %cst_97 {dimension_numbers = #tpu.dot_dimension_numbers<[1], [0], [0], [1], [0, 0, 1, 1], [], []>} : vector<8x32xf32>, vector<32x8xf32>, vector<8x8xf32> -> vector<8x8xf32>
    %c0_98 = arith.constant 0 : index
    %c0_99 = arith.constant 0 : index
    %c16_100 = arith.constant 16 : index
    %137 = vector.load %arg15[%c0_98, %c0_99, %c16_100] : memref<1x1x32xf32, #tpu.memory_space<vmem>>, vector<1x1x8xf32>
    %138 = vector.shape_cast %137 : vector<1x1x8xf32> to vector<1x8xf32>
    %139 = vector.broadcast %138 : vector<1x8xf32> to vector<8x8xf32>
    %140 = arith.addf %136, %139 : vector<8x8xf32>
    %141 = tpu.transpose %133, [1, 0] : vector<8x8xf32> -> vector<8x8xf32>
    %cst_101 = arith.constant dense<0.000000e+00> : vector<8x8xf32>
    %142 = tpu.matmul %126, %141, %cst_101 {dimension_numbers = #tpu.dot_dimension_numbers<[1], [0], [0], [1], [0, 0, 1, 1], [], []>} : vector<8x8xf32>, vector<8x8xf32>, vector<8x8xf32> -> vector<8x8xf32>
    %143 = vector.broadcast %31 : f32 to vector<8x8xf32>
    %144 = arith.mulf %142, %143 : vector<8x8xf32>
    %cst_102 = arith.constant dense<0xFF800000> : vector<8xf32>
    %145 = vector.multi_reduction <maximumf>, %144, %cst_102 [1] : vector<8x8xf32> to vector<8xf32>
    %146 = vector.shape_cast %145 : vector<8xf32> to vector<8x1xf32>
    %147 = vector.broadcast %146 : vector<8x1xf32> to vector<8x8xf32>
    %148 = arith.subf %144, %147 : vector<8x8xf32>
    %149 = math.exp %148 : vector<8x8xf32>
    %cst_103 = arith.constant dense<0.000000e+00> : vector<8xf32>
    %150 = vector.multi_reduction <add>, %149, %cst_103 [1] : vector<8x8xf32> to vector<8xf32>
    %151 = vector.shape_cast %150 : vector<8xf32> to vector<8x1xf32>
    %152 = vector.broadcast %151 : vector<8x1xf32> to vector<8x8xf32>
    %153 = arith.divf %149, %152 : vector<8x8xf32>
    %c0_104 = arith.constant 0 : index
    %c2 = arith.constant 2 : index
    %c0_105 = arith.constant 0 : index
    %c0_106 = arith.constant 0 : index
    %154 = vector.load %arg25[%c0_104, %c2, %c0_105, %c0_106] : memref<1x4x8x8xf32, #tpu.memory_space<vmem>>, vector<1x1x8x8xf32>
    %155 = vector.shape_cast %154 : vector<1x1x8x8xf32> to vector<8x8xf32>
    %156 = vector.shape_cast %153 : vector<8x8xf32> to vector<1x1x8x8xf32>
    tpu.vector_store %arg25[%c0_104, %c2, %c0_105, %c0_106], %156 {strides = array<i32>} : memref<1x4x8x8xf32, #tpu.memory_space<vmem>>, vector<1x1x8x8xf32>,
    %cst_107 = arith.constant dense<0.000000e+00> : vector<8x8xf32>
    %157 = tpu.matmul %153, %140, %cst_107 {dimension_numbers = #tpu.dot_dimension_numbers<[1], [0], [0], [1], [0, 0, 1, 1], [], []>} : vector<8x8xf32>, vector<8x8xf32>, vector<8x8xf32> -> vector<8x8xf32>
    %c0_108 = arith.constant 0 : index
    %c16_109 = arith.constant 16 : index
    %c0_110 = arith.constant 0 : index
    %158 = vector.load %arg16[%c0_108, %c16_109, %c0_110] : memref<1x32x32xf32, #tpu.memory_space<vmem>>, vector<1x8x32xf32>
    %159 = vector.shape_cast %158 : vector<1x8x32xf32> to vector<8x32xf32>
    %cst_111 = arith.constant dense<0.000000e+00> : vector<8x32xf32>
    %160 = tpu.matmul %157, %159, %cst_111 {dimension_numbers = #tpu.dot_dimension_numbers<[1], [0], [0], [1], [0, 0, 1, 1], [], []>} : vector<8x8xf32>, vector<8x32xf32>, vector<8x32xf32> -> vector<8x32xf32>
    %161 = arith.addf %119, %160 : vector<8x32xf32>
    %c0_112 = arith.constant 0 : index
    %c0_113 = arith.constant 0 : index
    %c24 = arith.constant 24 : index
    %162 = vector.load %arg10[%c0_112, %c0_113, %c24] : memref<1x32x32xf32, #tpu.memory_space<vmem>>, vector<1x32x8xf32>
    %163 = vector.shape_cast %162 : vector<1x32x8xf32> to vector<32x8xf32>
    %cst_114 = arith.constant dense<0.000000e+00> : vector<8x8xf32>
    %164 = tpu.matmul %29, %163, %cst_114 {dimension_numbers = #tpu.dot_dimension_numbers<[1], [0], [0], [1], [0, 0, 1, 1], [], []>} : vector<8x32xf32>, vector<32x8xf32>, vector<8x8xf32> -> vector<8x8xf32>
    %c0_115 = arith.constant 0 : index
    %c0_116 = arith.constant 0 : index
    %c24_117 = arith.constant 24 : index
    %165 = vector.load %arg11[%c0_115, %c0_116, %c24_117] : memref<1x1x32xf32, #tpu.memory_space<vmem>>, vector<1x1x8xf32>
    %166 = vector.shape_cast %165 : vector<1x1x8xf32> to vector<1x8xf32>
    %167 = vector.broadcast %166 : vector<1x8xf32> to vector<8x8xf32>
    %168 = arith.addf %164, %167 : vector<8x8xf32>
    %c0_118 = arith.constant 0 : index
    %c0_119 = arith.constant 0 : index
    %c24_120 = arith.constant 24 : index
    %169 = vector.load %arg12[%c0_118, %c0_119, %c24_120] : memref<1x32x32xf32, #tpu.memory_space<vmem>>, vector<1x32x8xf32>
    %170 = vector.shape_cast %169 : vector<1x32x8xf32> to vector<32x8xf32>
    %cst_121 = arith.constant dense<0.000000e+00> : vector<8x8xf32>
    %171 = tpu.matmul %29, %170, %cst_121 {dimension_numbers = #tpu.dot_dimension_numbers<[1], [0], [0], [1], [0, 0, 1, 1], [], []>} : vector<8x32xf32>, vector<32x8xf32>, vector<8x8xf32> -> vector<8x8xf32>
    %c0_122 = arith.constant 0 : index
    %c0_123 = arith.constant 0 : index
    %c24_124 = arith.constant 24 : index
    %172 = vector.load %arg13[%c0_122, %c0_123, %c24_124] : memref<1x1x32xf32, #tpu.memory_space<vmem>>, vector<1x1x8xf32>
    %173 = vector.shape_cast %172 : vector<1x1x8xf32> to vector<1x8xf32>
    %174 = vector.broadcast %173 : vector<1x8xf32> to vector<8x8xf32>
    %175 = arith.addf %171, %174 : vector<8x8xf32>
    %c0_125 = arith.constant 0 : index
    %c0_126 = arith.constant 0 : index
    %c24_127 = arith.constant 24 : index
    %176 = vector.load %arg14[%c0_125, %c0_126, %c24_127] : memref<1x32x32xf32, #tpu.memory_space<vmem>>, vector<1x32x8xf32>
    %177 = vector.shape_cast %176 : vector<1x32x8xf32> to vector<32x8xf32>
    %cst_128 = arith.constant dense<0.000000e+00> : vector<8x8xf32>
    %178 = tpu.matmul %29, %177, %cst_128 {dimension_numbers = #tpu.dot_dimension_numbers<[1], [0], [0], [1], [0, 0, 1, 1], [], []>} : vector<8x32xf32>, vector<32x8xf32>, vector<8x8xf32> -> vector<8x8xf32>
    %c0_129 = arith.constant 0 : index
    %c0_130 = arith.constant 0 : index
    %c24_131 = arith.constant 24 : index
    %179 = vector.load %arg15[%c0_129, %c0_130, %c24_131] : memref<1x1x32xf32, #tpu.memory_space<vmem>>, vector<1x1x8xf32>
    %180 = vector.shape_cast %179 : vector<1x1x8xf32> to vector<1x8xf32>
    %181 = vector.broadcast %180 : vector<1x8xf32> to vector<8x8xf32>
    %182 = arith.addf %178, %181 : vector<8x8xf32>
    %183 = tpu.transpose %175, [1, 0] : vector<8x8xf32> -> vector<8x8xf32>
    %cst_132 = arith.constant dense<0.000000e+00> : vector<8x8xf32>
    %184 = tpu.matmul %168, %183, %cst_132 {dimension_numbers = #tpu.dot_dimension_numbers<[1], [0], [0], [1], [0, 0, 1, 1], [], []>} : vector<8x8xf32>, vector<8x8xf32>, vector<8x8xf32> -> vector<8x8xf32>
    %185 = vector.broadcast %31 : f32 to vector<8x8xf32>
    %186 = arith.mulf %184, %185 : vector<8x8xf32>
    %cst_133 = arith.constant dense<0xFF800000> : vector<8xf32>
    %187 = vector.multi_reduction <maximumf>, %186, %cst_133 [1] : vector<8x8xf32> to vector<8xf32>
    %188 = vector.shape_cast %187 : vector<8xf32> to vector<8x1xf32>
    %189 = vector.broadcast %188 : vector<8x1xf32> to vector<8x8xf32>
    %190 = arith.subf %186, %189 : vector<8x8xf32>
    %191 = math.exp %190 : vector<8x8xf32>
    %cst_134 = arith.constant dense<0.000000e+00> : vector<8xf32>
    %192 = vector.multi_reduction <add>, %191, %cst_134 [1] : vector<8x8xf32> to vector<8xf32>
    %193 = vector.shape_cast %192 : vector<8xf32> to vector<8x1xf32>
    %194 = vector.broadcast %193 : vector<8x1xf32> to vector<8x8xf32>
    %195 = arith.divf %191, %194 : vector<8x8xf32>
    %c0_135 = arith.constant 0 : index
    %c3 = arith.constant 3 : index
    %c0_136 = arith.constant 0 : index
    %c0_137 = arith.constant 0 : index
    %196 = vector.load %arg25[%c0_135, %c3, %c0_136, %c0_137] : memref<1x4x8x8xf32, #tpu.memory_space<vmem>>, vector<1x1x8x8xf32>
    %197 = vector.shape_cast %196 : vector<1x1x8x8xf32> to vector<8x8xf32>
    %198 = vector.shape_cast %195 : vector<8x8xf32> to vector<1x1x8x8xf32>
    tpu.vector_store %arg25[%c0_135, %c3, %c0_136, %c0_137], %198 {strides = array<i32>} : memref<1x4x8x8xf32, #tpu.memory_space<vmem>>, vector<1x1x8x8xf32>,
    %cst_138 = arith.constant dense<0.000000e+00> : vector<8x8xf32>
    %199 = tpu.matmul %195, %182, %cst_138 {dimension_numbers = #tpu.dot_dimension_numbers<[1], [0], [0], [1], [0, 0, 1, 1], [], []>} : vector<8x8xf32>, vector<8x8xf32>, vector<8x8xf32> -> vector<8x8xf32>
    %c0_139 = arith.constant 0 : index
    %c24_140 = arith.constant 24 : index
    %c0_141 = arith.constant 0 : index
    %200 = vector.load %arg16[%c0_139, %c24_140, %c0_141] : memref<1x32x32xf32, #tpu.memory_space<vmem>>, vector<1x8x32xf32>
    %201 = vector.shape_cast %200 : vector<1x8x32xf32> to vector<8x32xf32>
    %cst_142 = arith.constant dense<0.000000e+00> : vector<8x32xf32>
    %202 = tpu.matmul %199, %201, %cst_142 {dimension_numbers = #tpu.dot_dimension_numbers<[1], [0], [0], [1], [0, 0, 1, 1], [], []>} : vector<8x8xf32>, vector<8x32xf32>, vector<8x32xf32> -> vector<8x32xf32>
    %203 = arith.addf %161, %202 : vector<8x32xf32>
    %c0_143 = arith.constant 0 : index
    %c0_144 = arith.constant 0 : index
    %c0_145 = arith.constant 0 : index
    %204 = vector.load %arg8[%c0_143, %c0_144, %c0_145] : memref<1x1x32xf32, #tpu.memory_space<vmem>>, vector<1x1x32xf32>
    %205 = vector.shape_cast %204 : vector<1x1x32xf32> to vector<1x32xf32>
    %c0_146 = arith.constant 0 : index
    %c0_147 = arith.constant 0 : index
    %c0_148 = arith.constant 0 : index
    %206 = vector.load %arg9[%c0_146, %c0_147, %c0_148] : memref<1x1x32xf32, #tpu.memory_space<vmem>>, vector<1x1x32xf32>
    %207 = vector.shape_cast %206 : vector<1x1x32xf32> to vector<1x32xf32>
    %cst_149 = arith.constant dense<0.000000e+00> : vector<8xf32>
    %208 = vector.multi_reduction <add>, %203, %cst_149 [1] : vector<8x32xf32> to vector<8xf32>
    %209 = vector.shape_cast %208 : vector<8xf32> to vector<8x1xf32>
    %cst_150 = arith.constant 3.200000e+01 : f32
    %210 = vector.broadcast %cst_150 : f32 to vector<8x1xf32>
    %211 = arith.divf %209, %210 : vector<8x1xf32>
    %212 = vector.broadcast %211 : vector<8x1xf32> to vector<8x32xf32>
    %213 = arith.subf %203, %212 : vector<8x32xf32>
    %214 = arith.mulf %213, %213 : vector<8x32xf32>
    %cst_151 = arith.constant dense<0.000000e+00> : vector<8xf32>
    %215 = vector.multi_reduction <add>, %214, %cst_151 [1] : vector<8x32xf32> to vector<8xf32>
    %216 = vector.shape_cast %215 : vector<8xf32> to vector<8x1xf32>
    %cst_152 = arith.constant 3.100000e+01 : f32
    %217 = vector.broadcast %cst_152 : f32 to vector<8x1xf32>
    %218 = arith.divf %216, %217 : vector<8x1xf32>
    %219 = vector.broadcast %211 : vector<8x1xf32> to vector<8x32xf32>
    %220 = arith.subf %203, %219 : vector<8x32xf32>
    %221 = vector.broadcast %205 : vector<1x32xf32> to vector<8x32xf32>
    %222 = arith.mulf %221, %220 : vector<8x32xf32>
    %223 = math.sqrt %218 : vector<8x1xf32>
    %cst_153 = arith.constant 9.99999997E-7 : f32
    %224 = vector.broadcast %cst_153 : f32 to vector<8x1xf32>
    %225 = arith.addf %223, %224 : vector<8x1xf32>
    %226 = vector.broadcast %225 : vector<8x1xf32> to vector<8x32xf32>
    %227 = arith.divf %222, %226 : vector<8x32xf32>
    %228 = vector.broadcast %207 : vector<1x32xf32> to vector<8x32xf32>
    %229 = arith.addf %227, %228 : vector<8x32xf32>
    %c0_154 = arith.constant 0 : index
    %c0_155 = arith.constant 0 : index
    %c0_156 = arith.constant 0 : index
    %230 = vector.load %arg18[%c0_154, %c0_155, %c0_156] : memref<1x32x64xf32, #tpu.memory_space<vmem>>, vector<1x32x64xf32>
    %231 = vector.shape_cast %230 : vector<1x32x64xf32> to vector<32x64xf32>
    %cst_157 = arith.constant dense<0.000000e+00> : vector<8x64xf32>
    %232 = tpu.matmul %229, %231, %cst_157 {dimension_numbers = #tpu.dot_dimension_numbers<[1], [0], [0], [1], [0, 0, 1, 1], [], []>} : vector<8x32xf32>, vector<32x64xf32>, vector<8x64xf32> -> vector<8x64xf32>
    %c0_158 = arith.constant 0 : index
    %c0_159 = arith.constant 0 : index
    %c0_160 = arith.constant 0 : index
    %233 = vector.load %arg19[%c0_158, %c0_159, %c0_160] : memref<1x1x64xf32, #tpu.memory_space<vmem>>, vector<1x1x64xf32>
    %234 = vector.shape_cast %233 : vector<1x1x64xf32> to vector<1x64xf32>
    %235 = vector.broadcast %234 : vector<1x64xf32> to vector<8x64xf32>
    %236 = arith.addf %232, %235 : vector<8x64xf32>
    %cst_161 = arith.constant 0.000000e+00 : f32
    %237 = vector.broadcast %cst_161 : f32 to vector<8x64xf32>
    %238 = arith.maximumf %236, %237 : vector<8x64xf32>
    %c0_162 = arith.constant 0 : index
    %c0_163 = arith.constant 0 : index
    %c0_164 = arith.constant 0 : index
    %239 = vector.load %arg20[%c0_162, %c0_163, %c0_164] : memref<1x64x32xf32, #tpu.memory_space<vmem>>, vector<1x64x32xf32>
    %240 = vector.shape_cast %239 : vector<1x64x32xf32> to vector<64x32xf32>
    %cst_165 = arith.constant dense<0.000000e+00> : vector<8x32xf32>
    %241 = tpu.matmul %238, %240, %cst_165 {dimension_numbers = #tpu.dot_dimension_numbers<[1], [0], [0], [1], [0, 0, 1, 1], [], []>} : vector<8x64xf32>, vector<64x32xf32>, vector<8x32xf32> -> vector<8x32xf32>
    %c0_166 = arith.constant 0 : index
    %c0_167 = arith.constant 0 : index
    %c0_168 = arith.constant 0 : index
    %242 = vector.load %arg21[%c0_166, %c0_167, %c0_168] : memref<1x1x32xf32, #tpu.memory_space<vmem>>, vector<1x1x32xf32>
    %243 = vector.shape_cast %242 : vector<1x1x32xf32> to vector<1x32xf32>
    %244 = vector.broadcast %243 : vector<1x32xf32> to vector<8x32xf32>
    %245 = arith.addf %241, %244 : vector<8x32xf32>
    %246 = arith.addf %203, %245 : vector<8x32xf32>
    %c0_169 = arith.constant 0 : index
    %c0_170 = arith.constant 0 : index
    %247 = vector.load %arg26[%c0_169, %c0_170] : memref<8x32xf32, #tpu.memory_space<vmem>>, vector<8x32xf32>
    tpu.vector_store %arg26[%c0_169, %c0_170], %246 {strides = array<i32>} : memref<8x32xf32, #tpu.memory_space<vmem>>, vector<8x32xf32>,
    %c1_i32 = arith.constant 1 : i32
    %248 = arith.cmpi eq, %arg1, %c1_i32 : i32
    %249 = arith.extui %248 : i1 to i32
    %c0_i32_171 = arith.constant 0 : i32
    %250 = arith.cmpi ne, %249, %c0_i32_171 : i32
    scf.if %250 {
      %c0_172 = arith.constant 0 : index
      %c0_173 = arith.constant 0 : index
      %251 = vector.load %arg22[%c0_172, %c0_173] : memref<1x32xf32, #tpu.memory_space<vmem>>, vector<1x32xf32>
      %252 = vector.broadcast %251 : vector<1x32xf32> to vector<8x32xf32>
      %253 = arith.mulf %246, %252 : vector<8x32xf32>
      %cst_174 = arith.constant dense<0.000000e+00> : vector<8xf32>
      %254 = vector.multi_reduction <add>, %253, %cst_174 [1] : vector<8x32xf32> to vector<8xf32>
      %255 = vector.shape_cast %254 : vector<8xf32> to vector<8x1xf32>
      %c0_175 = arith.constant 0 : index
      %c0_176 = arith.constant 0 : index
      %256 = vector.load %arg23[%c0_175, %c0_176] : memref<1x1xf32, #tpu.memory_space<vmem>>, vector<1x1xf32>
      %257 = vector.broadcast %256 : vector<1x1xf32> to vector<8x1xf32>
      %258 = arith.addf %255, %257 : vector<8x1xf32>
      %c0_177 = arith.constant 0 : index
      %c0_178 = arith.constant 0 : index
      %c0_179 = arith.constant 0 : index
      %259 = vector.load %arg24[%c0_177, %c0_178, %c0_179] : memref<1x8x1xf32, #tpu.memory_space<vmem>>, vector<1x8x1xf32>
      %260 = vector.shape_cast %259 : vector<1x8x1xf32> to vector<8x1xf32>
      %261 = vector.shape_cast %258 : vector<8x1xf32> to vector<1x8x1xf32>
      tpu.vector_store %arg24[%c0_177, %c0_178, %c0_179], %261 {strides = array<i32>} : memref<1x8x1xf32, #tpu.memory_space<vmem>>, vector<1x8x1xf32>,
    } else {
    }
    return
  }
  func.func @transform_0(%arg0: i32, %arg1: i32) -> (i32, i32, i32) {
    %c0_i32 = arith.constant 0 : i32
    %c0_i32_0 = arith.constant 0 : i32
    %c0_i32_1 = arith.constant 0 : i32
    return %arg0, %c0_i32, %c0_i32_0 : i32, i32, i32
  }
  func.func @transform_1(%arg0: i32, %arg1: i32) -> (i32, i32) {
    %c0_i32 = arith.constant 0 : i32
    %c0_i32_0 = arith.constant 0 : i32
    %c0_i32_1 = arith.constant 0 : i32
    return %c0_i32, %c0_i32_0 : i32, i32
  }
  func.func @transform_2(%arg0: i32, %arg1: i32) -> (i32, i32, i32) {
    %c0_i32 = arith.constant 0 : i32
    %c0_i32_0 = arith.constant 0 : i32
    %c0_i32_1 = arith.constant 0 : i32
    %c0_i32_2 = arith.constant 0 : i32
    return %c0_i32, %c0_i32_0, %c0_i32_1 : i32, i32, i32
  }
  func.func @transform_3(%arg0: i32, %arg1: i32) -> (i32, i32) {
    %c0_i32 = arith.constant 0 : i32
    %c0_i32_0 = arith.constant 0 : i32
    %c0_i32_1 = arith.constant 0 : i32
    return %c0_i32, %c0_i32_0 : i32, i32
  }
  func.func @transform_4(%arg0: i32, %arg1: i32) -> (i32, i32, i32) {
    %c0_i32 = arith.constant 0 : i32
    %c0_i32_0 = arith.constant 0 : i32
    %c0_i32_1 = arith.constant 0 : i32
    return %arg1, %c0_i32, %c0_i32_0 : i32, i32, i32
  }
  func.func @transform_5(%arg0: i32, %arg1: i32) -> (i32, i32, i32) {
    %c0_i32 = arith.constant 0 : i32
    %c0_i32_0 = arith.constant 0 : i32
    %c0_i32_1 = arith.constant 0 : i32
    return %arg1, %c0_i32, %c0_i32_0 : i32, i32, i32
  }
  func.func @transform_6(%arg0: i32, %arg1: i32) -> (i32, i32, i32) {
    %c0_i32 = arith.constant 0 : i32
    %c0_i32_0 = arith.constant 0 : i32
    %c0_i32_1 = arith.constant 0 : i32
    return %arg1, %c0_i32, %c0_i32_0 : i32, i32, i32
  }
  func.func @transform_7(%arg0: i32, %arg1: i32) -> (i32, i32, i32) {
    %c0_i32 = arith.constant 0 : i32
    %c0_i32_0 = arith.constant 0 : i32
    %c0_i32_1 = arith.constant 0 : i32
    return %arg1, %c0_i32, %c0_i32_0 : i32, i32, i32
  }
  func.func @transform_8(%arg0: i32, %arg1: i32) -> (i32, i32, i32) {
    %c0_i32 = arith.constant 0 : i32
    %c0_i32_0 = arith.constant 0 : i32
    %c0_i32_1 = arith.constant 0 : i32
    return %arg1, %c0_i32, %c0_i32_0 : i32, i32, i32
  }
  func.func @transform_9(%arg0: i32, %arg1: i32) -> (i32, i32, i32) {
    %c0_i32 = arith.constant 0 : i32
    %c0_i32_0 = arith.constant 0 : i32
    %c0_i32_1 = arith.constant 0 : i32
    return %arg1, %c0_i32, %c0_i32_0 : i32, i32, i32
  }
  func.func @transform_10(%arg0: i32, %arg1: i32) -> (i32, i32, i32) {
    %c0_i32 = arith.constant 0 : i32
    %c0_i32_0 = arith.constant 0 : i32
    %c0_i32_1 = arith.constant 0 : i32
    return %arg1, %c0_i32, %c0_i32_0 : i32, i32, i32
  }
  func.func @transform_11(%arg0: i32, %arg1: i32) -> (i32, i32, i32) {
    %c0_i32 = arith.constant 0 : i32
    %c0_i32_0 = arith.constant 0 : i32
    %c0_i32_1 = arith.constant 0 : i32
    return %arg1, %c0_i32, %c0_i32_0 : i32, i32, i32
  }
  func.func @transform_12(%arg0: i32, %arg1: i32) -> (i32, i32, i32) {
    %c0_i32 = arith.constant 0 : i32
    %c0_i32_0 = arith.constant 0 : i32
    %c0_i32_1 = arith.constant 0 : i32
    return %arg1, %c0_i32, %c0_i32_0 : i32, i32, i32
  }
  func.func @transform_13(%arg0: i32, %arg1: i32) -> (i32, i32, i32) {
    %c0_i32 = arith.constant 0 : i32
    %c0_i32_0 = arith.constant 0 : i32
    %c0_i32_1 = arith.constant 0 : i32
    return %arg1, %c0_i32, %c0_i32_0 : i32, i32, i32
  }
  func.func @transform_14(%arg0: i32, %arg1: i32) -> (i32, i32, i32) {
    %c0_i32 = arith.constant 0 : i32
    %c0_i32_0 = arith.constant 0 : i32
    %c0_i32_1 = arith.constant 0 : i32
    return %arg1, %c0_i32, %c0_i32_0 : i32, i32, i32
  }
  func.func @transform_15(%arg0: i32, %arg1: i32) -> (i32, i32, i32) {
    %c0_i32 = arith.constant 0 : i32
    %c0_i32_0 = arith.constant 0 : i32
    %c0_i32_1 = arith.constant 0 : i32
    return %arg1, %c0_i32, %c0_i32_0 : i32, i32, i32
  }
  func.func @transform_16(%arg0: i32, %arg1: i32) -> (i32, i32, i32) {
    %c0_i32 = arith.constant 0 : i32
    %c0_i32_0 = arith.constant 0 : i32
    %c0_i32_1 = arith.constant 0 : i32
    return %arg1, %c0_i32, %c0_i32_0 : i32, i32, i32
  }
  func.func @transform_17(%arg0: i32, %arg1: i32) -> (i32, i32, i32) {
    %c0_i32 = arith.constant 0 : i32
    %c0_i32_0 = arith.constant 0 : i32
    %c0_i32_1 = arith.constant 0 : i32
    return %arg1, %c0_i32, %c0_i32_0 : i32, i32, i32
  }
  func.func @transform_18(%arg0: i32, %arg1: i32) -> (i32, i32, i32) {
    %c0_i32 = arith.constant 0 : i32
    %c0_i32_0 = arith.constant 0 : i32
    %c0_i32_1 = arith.constant 0 : i32
    return %arg1, %c0_i32, %c0_i32_0 : i32, i32, i32
  }
  func.func @transform_19(%arg0: i32, %arg1: i32) -> (i32, i32, i32) {
    %c0_i32 = arith.constant 0 : i32
    %c0_i32_0 = arith.constant 0 : i32
    %c0_i32_1 = arith.constant 0 : i32
    return %arg1, %c0_i32, %c0_i32_0 : i32, i32, i32
  }
  func.func @transform_20(%arg0: i32, %arg1: i32) -> (i32, i32) {
    %c0_i32 = arith.constant 0 : i32
    %c0_i32_0 = arith.constant 0 : i32
    %c0_i32_1 = arith.constant 0 : i32
    return %c0_i32, %c0_i32_0 : i32, i32
  }
  func.func @transform_21(%arg0: i32, %arg1: i32) -> (i32, i32) {
    %c0_i32 = arith.constant 0 : i32
    %c0_i32_0 = arith.constant 0 : i32
    %c0_i32_1 = arith.constant 0 : i32
    return %c0_i32, %c0_i32_0 : i32, i32
  }
  func.func @transform_22(%arg0: i32, %arg1: i32) -> (i32, i32, i32) {
    %c0_i32 = arith.constant 0 : i32
    %c0_i32_0 = arith.constant 0 : i32
    %c0_i32_1 = arith.constant 0 : i32
    return %arg0, %c0_i32, %c0_i32_0 : i32, i32, i32
  }
  func.func @transform_23(%arg0: i32, %arg1: i32) -> (i32, i32, i32, i32) {
    %c2_i32 = arith.constant 2 : i32
    %0 = arith.muli %arg1, %c2_i32 : i32
    %1 = arith.addi %0, %arg0 : i32
    %c0_i32 = arith.constant 0 : i32
    %c0_i32_0 = arith.constant 0 : i32
    %c0_i32_1 = arith.constant 0 : i32
    %c0_i32_2 = arith.constant 0 : i32
    return %1, %c0_i32, %c0_i32_0, %c0_i32_1 : i32, i32, i32, i32
  }
}

</mosaic_0001>

<llo_original>
// kernel: tpu_custom_call.1
$region0: #{tpu_custom_call.1}
  #allocation0 [shape = 'u32[]', space=smem, size = 0x4, offset = 0x4, fixed_abs, tag = 'smem constant byte address 0x4 - core index']
  #allocation1 [shape = 'u32[144,128]{1,0:T(1,128)}', space=vmem, size = 0x12000, scoped, tag = 'internal scratch']
  #allocation2 [shape = 'f32[8,32]{1,0:T(8,128)}', space=vmem, size = 0x1000, scoped, tag = 'scratch operand']
  #allocation3 [shape = 'f32[1,1]{1,0:T(1,128)S(1)}', space=vmem, size = 0x200, scoped, tag = 'scoped memory for tpu_custom_call.1']
  %s0 = inlined_call_operand.vmem [shape: f32[2,1,16], index: 0, kind: input, shape index: {}]
  %s1 = inlined_call_operand.vmem [shape: f32[1,16], index: 1, kind: input, shape index: {}]
  %s2 = inlined_call_operand.vmem [shape: f32[8,16,32], index: 2, kind: input, shape index: {}]
  %s3 = inlined_call_operand.hbm [shape: f32[8,32], index: 3, kind: input, shape index: {}]
  %s4 = inlined_call_operand.vmem [shape: f32[2,1,32], index: 4, kind: input, shape index: {}]
  %s5 = inlined_call_operand.vmem [shape: f32[2,1,32], index: 5, kind: input, shape index: {}]
  %s6 = inlined_call_operand.hbm [shape: f32[2,1,32], index: 6, kind: input, shape index: {}]
  %s7 = inlined_call_operand.hbm [shape: f32[2,1,32], index: 7, kind: input, shape index: {}]
  %s8 = inlined_call_operand.vmem [shape: f32[2,32,32], index: 8, kind: input, shape index: {}]
  %s9 = inlined_call_operand.hbm [shape: f32[2,1,32], index: 9, kind: input, shape index: {}]
  %s10 = inlined_call_operand.hbm [shape: f32[2,32,32], index: 10, kind: input, shape index: {}]
  %s11 = inlined_call_operand.hbm [shape: f32[2,1,32], index: 11, kind: input, shape index: {}]
  %s12 = inlined_call_operand.hbm [shape: f32[2,32,32], index: 12, kind: input, shape index: {}]
  %s13 = inlined_call_operand.hbm [shape: f32[2,1,32], index: 13, kind: input, shape index: {}]
  %s14 = inlined_call_operand.hbm [shape: f32[2,32,32], index: 14, kind: input, shape index: {}]
  %s15 = inlined_call_operand.hbm [shape: f32[2,1,32], index: 15, kind: input, shape index: {}]
  %s16 = inlined_call_operand.hbm [shape: f32[2,32,64], index: 16, kind: input, shape index: {}]
  %s17 = inlined_call_operand.hbm [shape: f32[2,1,64], index: 17, kind: input, shape index: {}]
  %s18 = inlined_call_operand.vmem [shape: f32[2,64,32], index: 18, kind: input, shape index: {}]
  %s19 = inlined_call_operand.vmem [shape: f32[2,1,32], index: 19, kind: input, shape index: {}]
  %s20 = inlined_call_operand.vmem [shape: f32[1,32], index: 20, kind: input, shape index: {}]
  %s21 = inlined_call_operand.<no memory space> [shape: f32[1,1], index: 21, kind: input, shape index: {}]
  %s22 = inlined_call_operand.vmem [shape: f32[2,8,1], index: 22, kind: output, shape index: {0}]
  %s23 = inlined_call_operand.hbm [shape: f32[4,4,8,8], index: 23, kind: output, shape index: {1}]
  %24 = xla_tuple %s22, %s23
  %s25 = sld [smem:[#allocation0]]
  $region185: #{tpu_custom_call.1} parent=0
    _
  %s27 = ssub.s32 1, %s25
  %s28 = scalar_select 0, %s27, %s25
  %v29 = vstv %s21
  %30 = vst [vmem:[#allocation3] sm:$0x1] %v29
  $region1: #{tpu_custom_call.1} parent=0
    #allocation4 [shape = 'u8[4096]{0}', space=vmem, size = 0x1000, scoped, tag = 'input window, operand 3, single buffered']
    #allocation5 [shape = 's32[2]{0}', space=sflag, size = 0x8, scoped, tag = 'scoped memory for tpu_custom_call.1']
    #allocation6 [shape = 's32[2]{0}', space=sflag, size = 0x8, scoped, tag = 'scoped memory for tpu_custom_call.1']
    #allocation7 [shape = 'u8[1024]{0}', space=vmem, size = 0x400, scoped, tag = 'input window, operand 6']
    #allocation8 [shape = 's32[2]{0}', space=sflag, size = 0x8, scoped, tag = 'scoped memory for tpu_custom_call.1']
    #allocation9 [shape = 'u8[1024]{0}', space=vmem, size = 0x400, scoped, tag = 'input window, operand 7']
    #allocation10 [shape = 'u8[1024]{0}', space=vmem, size = 0x400, scoped, tag = 'input window, operand 9']
    #allocation11 [shape = 's32[2]{0}', space=sflag, size = 0x8, scoped, tag = 'scoped memory for tpu_custom_call.1']
    #allocation12 [shape = 'u8[32768]{0}', space=vmem, size = 0x8000, scoped, tag = 'input window, operand 10']
    #allocation13 [shape = 'u8[1024]{0}', space=vmem, size = 0x400, scoped, tag = 'input window, operand 11']
    #allocation14 [shape = 's32[2]{0}', space=sflag, size = 0x8, scoped, tag = 'scoped memory for tpu_custom_call.1']
    #allocation15 [shape = 'u8[32768]{0}', space=vmem, size = 0x8000, scoped, tag = 'input window, operand 12']
    #allocation16 [shape = 'u8[1024]{0}', space=vmem, size = 0x400, scoped, tag = 'input window, operand 13']
    #allocation17 [shape = 's32[2]{0}', space=sflag, size = 0x8, scoped, tag = 'scoped memory for tpu_custom_call.1']
    #allocation18 [shape = 'u8[32768]{0}', space=vmem, size = 0x8000, scoped, tag = 'input window, operand 14']
    #allocation19 [shape = 'u8[1024]{0}', space=vmem, size = 0x400, scoped, tag = 'input window, operand 15']
    #allocation20 [shape = 's32[2]{0}', space=sflag, size = 0x8, scoped, tag = 'scoped memory for tpu_custom_call.1']
    #allocation21 [shape = 'u8[32768]{0}', space=vmem, size = 0x8000, scoped, tag = 'input window, operand 16']
    #allocation22 [shape = 'u8[1024]{0}', space=vmem, size = 0x400, scoped, tag = 'input window, operand 17']
    #allocation23 [shape = 's32[2]{0}', space=sflag, size = 0x8, scoped, tag = 'scoped memory for tpu_custom_call.1']
    #allocation24 [shape = 'u8[32768]{0}', space=vmem, size = 0x8000, scoped, tag = 'output window, operand 1']
    %31 = vsyncpa [#allocation5], 0
    %32 = vsyncpa [#allocation8], 0
    %s33 = scalar_lea.sflag [#allocation8], 1
    %34 = vsyncpa %s33, 0
    %35 = vsyncpa [#allocation11], 0
    %s36 = scalar_lea.sflag [#allocation11], 1
    %37 = vsyncpa %s36, 0
    %38 = vsyncpa [#allocation14], 0
    %s39 = scalar_lea.sflag [#allocation14], 1
    %40 = vsyncpa %s39, 0
    %41 = vsyncpa [#allocation17], 0
    %s42 = scalar_lea.sflag [#allocation17], 1
    %43 = vsyncpa %s42, 0
    %44 = vsyncpa [#allocation20], 0
    %s45 = scalar_lea.sflag [#allocation20], 1
    %46 = vsyncpa %s45, 0
    %47 = vsyncpa [#allocation23], 0
    %s48 = scalar_lea.sflag [#allocation23], 1
    %49 = vsyncpa %s48, 0
    %50 = vsyncpa [#allocation6], 0
    %s51 = scalar_lea.sflag [#allocation6], 1
    %52 = vsyncpa %s51, 0
    loop: start=0, step=1, limit=6
    $region2: #{tpu_custom_call.1} parent=1 // loop_pre_header
      _
    $region3: #{tpu_custom_call.1} parent=1 // loop_header
      %s54 = sphi 0, %s58
      %p55 = scmp.ge.s32.totalorder %s54, 6
      %s61 = sphi 0, %s73
      %s62 = sphi 0, %s69
      %s63 = sphi 0, %s61
      %s64 = sphi 0, %s62
      %s65 = sphi 0, %s63
      %s66 = sphi 0, %s64
      %s76 = sphi 0, %s78
      %s79 = sphi 0, %s76
      %s80 = sphi 0, %s79
      %s96 = sphi 0, %s80
      %s100 = sphi 0, %s100
      %s102 = sphi 0, %s100
      %s103 = sphi 0, %s102
      %s117 = sphi 0, %s103
      %s121 = sphi 0, %s121
      %s123 = sphi 0, %s121
      %s124 = sphi 0, %s123
      %s138 = sphi 0, %s124
      %s142 = sphi 0, %s142
      %s144 = sphi 0, %s142
      %s145 = sphi 0, %s144
      %s159 = sphi 0, %s145
      %s165 = sphi 0, %s167
      %s168 = sphi 0, %s165
      %s169 = sphi 0, %s168
      %s185 = sphi 0, %s169
      %s191 = sphi 0, %s193
      %s194 = sphi 0, %s191
      %s195 = sphi 0, %s194
      %s211 = sphi 0, %s195
      %s217 = sphi 0, %s219
      %s220 = sphi 0, %s217
      %s221 = sphi 0, %s220
      %s237 = sphi 0, %s221
      %s243 = sphi 0, %s245
      %s246 = sphi 0, %s243
      %s247 = sphi 0, %s246
      %s263 = sphi 0, %s247
      %s269 = sphi 0, %s271
      %s272 = sphi 0, %s269
      %s273 = sphi 0, %s272
      %s289 = sphi 0, %s273
      %s295 = sphi 0, %s297
      %s298 = sphi 0, %s295
      %s299 = sphi 0, %s298
      %s315 = sphi 0, %s299
      %s321 = sphi 0, %s323
      %s324 = sphi 0, %s321
      %s325 = sphi 0, %s324
      %s341 = sphi 0, %s325
      %s347 = sphi 0, %s349
      %s350 = sphi 0, %s347
      %s351 = sphi 0, %s350
      %s367 = sphi 0, %s351
      %s373 = sphi 0, %s375
      %s376 = sphi 0, %s373
      %s377 = sphi 0, %s376
      %s393 = sphi 0, %s377
      %s399 = sphi 0, %s401
      %s402 = sphi 0, %s399
      %s403 = sphi 0, %s402
      %s419 = sphi 0, %s403
      %s425 = sphi 0, %s427
      %s428 = sphi 0, %s425
      %s429 = sphi 0, %s428
      %s445 = sphi 0, %s429
      %s451 = sphi 0, %s453
      %s454 = sphi 0, %s451
      %s455 = sphi 0, %s454
      %s471 = sphi 0, %s455
      %s477 = sphi 0, %s479
      %s480 = sphi 0, %s477
      %s481 = sphi 0, %s480
      %s497 = sphi 0, %s481
      %s503 = sphi 0, %s505
      %s506 = sphi 0, %s503
      %s507 = sphi 0, %s506
      %s523 = sphi 0, %s507
      %s529 = sphi 0, %s531
      %s532 = sphi 0, %s529
      %s533 = sphi 0, %s532
      %s549 = sphi 0, %s533
      %s555 = sphi 0, %s557
      %s558 = sphi 0, %s555
      %s559 = sphi 0, %s558
      %s575 = sphi 0, %s559
      %s579 = sphi 0, %s579
      %s581 = sphi 0, %s579
      %s582 = sphi 0, %s581
      %s596 = sphi 0, %s582
      %s600 = sphi 0, %s600
      %s602 = sphi 0, %s600
      %s603 = sphi 0, %s602
      %s617 = sphi 0, %s603
      %s623 = sphi 0, %s625
      %s626 = sphi 0, %s623
      %s627 = sphi 0, %s626
      %s643 = sphi 0, %s627
      %s653 = sphi 0, %s655
      %s656 = sphi 0, %s653
      %s657 = sphi 0, %s656
      %s673 = sphi 0, %s657
    $region4: #{tpu_custom_call.1} parent=1 // loop_header_branch
      %57 = sbr.rel (%p55) target = $region8
    $region5: #{tpu_custom_call.1} parent=1 // loop_body
      %s59 = ssub.s32 %s54, 1
      %s60 = ssub.s32 %s54, 2
      %s67 = sadd.s32 1, %s62
      %p68 = scmp.ge.s32.totalorder %s67, 2
      %s69 = scalar_select %p68, 0, %s67
      %s70 = sadd.s32 1, %s61
      %s71 = scalar_select %p68, %s70, %s61
      %p72 = scmp.ge.s32.totalorder %s71, 2
      %s73 = scalar_select %p72, 0, %s71
      %s74 = ssub.s32 %s61, %s73
      %p75 = scmp.eq.s32.totalorder %s74, 0
      %s77 = sadd.s32 %s76, 1
      %s78 = scalar_select %p75, %s76, %s77
      %p81 = pneg %p75
      %p82 = scmp.eq.s32.totalorder %s54, 3
      %p83 = por %p81, %p82
      %p84 = scmp.ne.s32.totalorder %s76, %s79
      %p85 = scmp.eq.s32.totalorder %s54, 0
      %p86 = por %p84, %p85
      %p87 = scmp.ne.s32.totalorder %s76, %s79
      %p88 = scmp.eq.s32.totalorder %s59, 3
      %p89 = por %p87, %p88
      %p90 = scmp.ne.s32.totalorder %s79, %s80
      %p91 = scmp.eq.s32.totalorder %s59, 0
      %p92 = por %p90, %p91
      %p93 = scmp.ne.s32.totalorder %s79, %s80
      %p94 = scmp.eq.s32.totalorder %s60, 3
      %p95 = por %p93, %p94
      %p97 = scmp.ne.s32.totalorder %s80, %s96
      %p98 = scmp.eq.s32.totalorder %s60, 0
      %p99 = por %p97, %p98
      %s101 = sadd.s32 %s100, 1
      %p104 = scmp.eq.s32.totalorder %s54, 3
      %p105 = scmp.ne.s32.totalorder %s100, %s102
      %p106 = scmp.eq.s32.totalorder %s54, 0
      %p107 = por %p105, %p106
      %p108 = scmp.ne.s32.totalorder %s100, %s102
      %p109 = scmp.eq.s32.totalorder %s59, 3
      %p110 = por %p108, %p109
      %p111 = scmp.ne.s32.totalorder %s102, %s103
      %p112 = scmp.eq.s32.totalorder %s59, 0
      %p113 = por %p111, %p112
      %p114 = scmp.ne.s32.totalorder %s102, %s103
      %p115 = scmp.eq.s32.totalorder %s60, 3
      %p116 = por %p114, %p115
      %p118 = scmp.ne.s32.totalorder %s103, %s117
      %p119 = scmp.eq.s32.totalorder %s60, 0
      %p120 = por %p118, %p119
      %s122 = sadd.s32 %s121, 1
      %p125 = scmp.eq.s32.totalorder %s54, 3
      %p126 = scmp.ne.s32.totalorder %s121, %s123
      %p127 = scmp.eq.s32.totalorder %s54, 0
      %p128 = por %p126, %p127
      %p129 = scmp.ne.s32.totalorder %s121, %s123
      %p130 = scmp.eq.s32.totalorder %s59, 3
      %p131 = por %p129, %p130
      %p132 = scmp.ne.s32.totalorder %s123, %s124
      %p133 = scmp.eq.s32.totalorder %s59, 0
      %p134 = por %p132, %p133
      %p135 = scmp.ne.s32.totalorder %s123, %s124
      %p136 = scmp.eq.s32.totalorder %s60, 3
      %p137 = por %p135, %p136
      %p139 = scmp.ne.s32.totalorder %s124, %s138
      %p140 = scmp.eq.s32.totalorder %s60, 0
      %p141 = por %p139, %p140
      %s143 = sadd.s32 %s142, 1
      %p146 = scmp.eq.s32.totalorder %s54, 3
      %p147 = scmp.ne.s32.totalorder %s142, %s144
      %p148 = scmp.eq.s32.totalorder %s54, 0
      %p149 = por %p147, %p148
      %p150 = scmp.ne.s32.totalorder %s142, %s144
      %p151 = scmp.eq.s32.totalorder %s59, 3
      %p152 = por %p150, %p151
      %p153 = scmp.ne.s32.totalorder %s144, %s145
      %p154 = scmp.eq.s32.totalorder %s59, 0
      %p155 = por %p153, %p154
      %p156 = scmp.ne.s32.totalorder %s144, %s145
      %p157 = scmp.eq.s32.totalorder %s60, 3
      %p158 = por %p156, %p157
      %p160 = scmp.ne.s32.totalorder %s145, %s159
      %p161 = scmp.eq.s32.totalorder %s60, 0
      %p162 = por %p160, %p161
      %s163 = ssub.s32 %s62, %s69
      %p164 = scmp.eq.s32.totalorder %s163, 0
      %s166 = sadd.s32 %s165, 1
      %s167 = scalar_select %p164, %s165, %s166
      %p170 = pneg %p164
      %p171 = scmp.eq.s32.totalorder %s54, 3
      %p172 = por %p170, %p171
      %p173 = scmp.ne.s32.totalorder %s165, %s168
      %p174 = scmp.eq.s32.totalorder %s54, 0
      %p175 = por %p173, %p174
      %p176 = scmp.ne.s32.totalorder %s165, %s168
      %p177 = scmp.eq.s32.totalorder %s59, 3
      %p178 = por %p176, %p177
      %p179 = scmp.ne.s32.totalorder %s168, %s169
      %p180 = scmp.eq.s32.totalorder %s59, 0
      %p181 = por %p179, %p180
      %p182 = scmp.ne.s32.totalorder %s168, %s169
      %p183 = scmp.eq.s32.totalorder %s60, 3
      %p184 = por %p182, %p183
      %p186 = scmp.ne.s32.totalorder %s169, %s185
      %p187 = scmp.eq.s32.totalorder %s60, 0
      %p188 = por %p186, %p187
      %s189 = ssub.s32 %s62, %s69
      %p190 = scmp.eq.s32.totalorder %s189, 0
      %s192 = sadd.s32 %s191, 1
      %s193 = scalar_select %p190, %s191, %s192
      %p196 = pneg %p190
      %p197 = scmp.eq.s32.totalorder %s54, 3
      %p198 = por %p196, %p197
      %p199 = scmp.ne.s32.totalorder %s191, %s194
      %p200 = scmp.eq.s32.totalorder %s54, 0
      %p201 = por %p199, %p200
      %p202 = scmp.ne.s32.totalorder %s191, %s194
      %p203 = scmp.eq.s32.totalorder %s59, 3
      %p204 = por %p202, %p203
      %p205 = scmp.ne.s32.totalorder %s194, %s195
      %p206 = scmp.eq.s32.totalorder %s59, 0
      %p207 = por %p205, %p206
      %p208 = scmp.ne.s32.totalorder %s194, %s195
      %p209 = scmp.eq.s32.totalorder %s60, 3
      %p210 = por %p208, %p209
      %p212 = scmp.ne.s32.totalorder %s195, %s211
      %p213 = scmp.eq.s32.totalorder %s60, 0
      %p214 = por %p212, %p213
      %s215 = ssub.s32 %s62, %s69
      %p216 = scmp.eq.s32.totalorder %s215, 0
      %s218 = sadd.s32 %s217, 1
      %s219 = scalar_select %p216, %s217, %s218
      %p222 = pneg %p216
      %p223 = scmp.eq.s32.totalorder %s54, 3
      %p224 = por %p222, %p223
      %p225 = scmp.ne.s32.totalorder %s217, %s220
      %p226 = scmp.eq.s32.totalorder %s54, 0
      %p227 = por %p225, %p226
      %p228 = scmp.ne.s32.totalorder %s217, %s220
      %p229 = scmp.eq.s32.totalorder %s59, 3
      %p230 = por %p228, %p229
      %p231 = scmp.ne.s32.totalorder %s220, %s221
      %p232 = scmp.eq.s32.totalorder %s59, 0
      %p233 = por %p231, %p232
      %p234 = scmp.ne.s32.totalorder %s220, %s221
      %p235 = scmp.eq.s32.totalorder %s60, 3
      %p236 = por %p234, %p235
      %p238 = scmp.ne.s32.totalorder %s221, %s237
      %p239 = scmp.eq.s32.totalorder %s60, 0
      %p240 = por %p238, %p239
      %s241 = ssub.s32 %s62, %s69
      %p242 = scmp.eq.s32.totalorder %s241, 0
      %s244 = sadd.s32 %s243, 1
      %s245 = scalar_select %p242, %s243, %s244
      %p248 = pneg %p242
      %p249 = scmp.eq.s32.totalorder %s54, 3
      %p250 = por %p248, %p249
      %p251 = scmp.ne.s32.totalorder %s243, %s246
      %p252 = scmp.eq.s32.totalorder %s54, 0
      %p253 = por %p251, %p252
      %p254 = scmp.ne.s32.totalorder %s243, %s246
      %p255 = scmp.eq.s32.totalorder %s59, 3
      %p256 = por %p254, %p255
      %p257 = scmp.ne.s32.totalorder %s246, %s247
      %p258 = scmp.eq.s32.totalorder %s59, 0
      %p259 = por %p257, %p258
      %p260 = scmp.ne.s32.totalorder %s246, %s247
      %p261 = scmp.eq.s32.totalorder %s60, 3
      %p262 = por %p260, %p261
      %p264 = scmp.ne.s32.totalorder %s247, %s263
      %p265 = scmp.eq.s32.totalorder %s60, 0
      %p266 = por %p264, %p265
      %s267 = ssub.s32 %s62, %s69
      %p268 = scmp.eq.s32.totalorder %s267, 0
      %s270 = sadd.s32 %s269, 1
      %s271 = scalar_select %p268, %s269, %s270
      %p274 = pneg %p268
      %p275 = scmp.eq.s32.totalorder %s54, 3
      %p276 = por %p274, %p275
      %p277 = scmp.ne.s32.totalorder %s269, %s272
      %p278 = scmp.eq.s32.totalorder %s54, 0
      %p279 = por %p277, %p278
      %p280 = scmp.ne.s32.totalorder %s269, %s272
      %p281 = scmp.eq.s32.totalorder %s59, 3
      %p282 = por %p280, %p281
      %p283 = scmp.ne.s32.totalorder %s272, %s273
      %p284 = scmp.eq.s32.totalorder %s59, 0
      %p285 = por %p283, %p284
      %p286 = scmp.ne.s32.totalorder %s272, %s273
      %p287 = scmp.eq.s32.totalorder %s60, 3
      %p288 = por %p286, %p287
      %p290 = scmp.ne.s32.totalorder %s273, %s289
      %p291 = scmp.eq.s32.totalorder %s60, 0
      %p292 = por %p290, %p291
      %s293 = ssub.s32 %s62, %s69
      %p294 = scmp.eq.s32.totalorder %s293, 0
      %s296 = sadd.s32 %s295, 1
      %s297 = scalar_select %p294, %s295, %s296
      %p300 = pneg %p294
      %p301 = scmp.eq.s32.totalorder %s54, 3
      %p302 = por %p300, %p301
      %p303 = scmp.ne.s32.totalorder %s295, %s298
      %p304 = scmp.eq.s32.totalorder %s54, 0
      %p305 = por %p303, %p304
      %p306 = scmp.ne.s32.totalorder %s295, %s298
      %p307 = scmp.eq.s32.totalorder %s59, 3
      %p308 = por %p306, %p307
      %p309 = scmp.ne.s32.totalorder %s298, %s299
      %p310 = scmp.eq.s32.totalorder %s59, 0
      %p311 = por %p309, %p310
      %p312 = scmp.ne.s32.totalorder %s298, %s299
      %p313 = scmp.eq.s32.totalorder %s60, 3
      %p314 = por %p312, %p313
      %p316 = scmp.ne.s32.totalorder %s299, %s315
      %p317 = scmp.eq.s32.totalorder %s60, 0
      %p318 = por %p316, %p317
      %s319 = ssub.s32 %s62, %s69
      %p320 = scmp.eq.s32.totalorder %s319, 0
      %s322 = sadd.s32 %s321, 1
      %s323 = scalar_select %p320, %s321, %s322
      %p326 = pneg %p320
      %p327 = scmp.eq.s32.totalorder %s54, 3
      %p328 = por %p326, %p327
      %p329 = scmp.ne.s32.totalorder %s321, %s324
      %p330 = scmp.eq.s32.totalorder %s54, 0
      %p331 = por %p329, %p330
      %p332 = scmp.ne.s32.totalorder %s321, %s324
      %p333 = scmp.eq.s32.totalorder %s59, 3
      %p334 = por %p332, %p333
      %p335 = scmp.ne.s32.totalorder %s324, %s325
      %p336 = scmp.eq.s32.totalorder %s59, 0
      %p337 = por %p335, %p336
      %p338 = scmp.ne.s32.totalorder %s324, %s325
      %p339 = scmp.eq.s32.totalorder %s60, 3
      %p340 = por %p338, %p339
      %p342 = scmp.ne.s32.totalorder %s325, %s341
      %p343 = scmp.eq.s32.totalorder %s60, 0
      %p344 = por %p342, %p343
      %s345 = ssub.s32 %s62, %s69
      %p346 = scmp.eq.s32.totalorder %s345, 0
      %s348 = sadd.s32 %s347, 1
      %s349 = scalar_select %p346, %s347, %s348
      %p352 = pneg %p346
      %p353 = scmp.eq.s32.totalorder %s54, 3
      %p354 = por %p352, %p353
      %p355 = scmp.ne.s32.totalorder %s347, %s350
      %p356 = scmp.eq.s32.totalorder %s54, 0
      %p357 = por %p355, %p356
      %p358 = scmp.ne.s32.totalorder %s347, %s350
      %p359 = scmp.eq.s32.totalorder %s59, 3
      %p360 = por %p358, %p359
      %p361 = scmp.ne.s32.totalorder %s350, %s351
      %p362 = scmp.eq.s32.totalorder %s59, 0
      %p363 = por %p361, %p362
      %p364 = scmp.ne.s32.totalorder %s350, %s351
      %p365 = scmp.eq.s32.totalorder %s60, 3
      %p366 = por %p364, %p365
      %p368 = scmp.ne.s32.totalorder %s351, %s367
      %p369 = scmp.eq.s32.totalorder %s60, 0
      %p370 = por %p368, %p369
      %s371 = ssub.s32 %s62, %s69
      %p372 = scmp.eq.s32.totalorder %s371, 0
      %s374 = sadd.s32 %s373, 1
      %s375 = scalar_select %p372, %s373, %s374
      %p378 = pneg %p372
      %p379 = scmp.eq.s32.totalorder %s54, 3
      %p380 = por %p378, %p379
      %p381 = scmp.ne.s32.totalorder %s373, %s376
      %p382 = scmp.eq.s32.totalorder %s54, 0
      %p383 = por %p381, %p382
      %p384 = scmp.ne.s32.totalorder %s373, %s376
      %p385 = scmp.eq.s32.totalorder %s59, 3
      %p386 = por %p384, %p385
      %p387 = scmp.ne.s32.totalorder %s376, %s377
      %p388 = scmp.eq.s32.totalorder %s59, 0
      %p389 = por %p387, %p388
      %p390 = scmp.ne.s32.totalorder %s376, %s377
      %p391 = scmp.eq.s32.totalorder %s60, 3
      %p392 = por %p390, %p391
      %p394 = scmp.ne.s32.totalorder %s377, %s393
      %p395 = scmp.eq.s32.totalorder %s60, 0
      %p396 = por %p394, %p395
      %s397 = ssub.s32 %s62, %s69
      %p398 = scmp.eq.s32.totalorder %s397, 0
      %s400 = sadd.s32 %s399, 1
      %s401 = scalar_select %p398, %s399, %s400
      %p404 = pneg %p398
      %p405 = scmp.eq.s32.totalorder %s54, 3
      %p406 = por %p404, %p405
      %p407 = scmp.ne.s32.totalorder %s399, %s402
      %p408 = scmp.eq.s32.totalorder %s54, 0
      %p409 = por %p407, %p408
      %p410 = scmp.ne.s32.totalorder %s399, %s402
      %p411 = scmp.eq.s32.totalorder %s59, 3
      %p412 = por %p410, %p411
      %p413 = scmp.ne.s32.totalorder %s402, %s403
      %p414 = scmp.eq.s32.totalorder %s59, 0
      %p415 = por %p413, %p414
      %p416 = scmp.ne.s32.totalorder %s402, %s403
      %p417 = scmp.eq.s32.totalorder %s60, 3
      %p418 = por %p416, %p417
      %p420 = scmp.ne.s32.totalorder %s403, %s419
      %p421 = scmp.eq.s32.totalorder %s60, 0
      %p422 = por %p420, %p421
      %s423 = ssub.s32 %s62, %s69
      %p424 = scmp.eq.s32.totalorder %s423, 0
      %s426 = sadd.s32 %s425, 1
      %s427 = scalar_select %p424, %s425, %s426
      %p430 = pneg %p424
      %p431 = scmp.eq.s32.totalorder %s54, 3
      %p432 = por %p430, %p431
      %p433 = scmp.ne.s32.totalorder %s425, %s428
      %p434 = scmp.eq.s32.totalorder %s54, 0
      %p435 = por %p433, %p434
      %p436 = scmp.ne.s32.totalorder %s425, %s428
      %p437 = scmp.eq.s32.totalorder %s59, 3
      %p438 = por %p436, %p437
      %p439 = scmp.ne.s32.totalorder %s428, %s429
      %p440 = scmp.eq.s32.totalorder %s59, 0
      %p441 = por %p439, %p440
      %p442 = scmp.ne.s32.totalorder %s428, %s429
      %p443 = scmp.eq.s32.totalorder %s60, 3
      %p444 = por %p442, %p443
      %p446 = scmp.ne.s32.totalorder %s429, %s445
      %p447 = scmp.eq.s32.totalorder %s60, 0
      %p448 = por %p446, %p447
      %s449 = ssub.s32 %s62, %s69
      %p450 = scmp.eq.s32.totalorder %s449, 0
      %s452 = sadd.s32 %s451, 1
      %s453 = scalar_select %p450, %s451, %s452
      %p456 = pneg %p450
      %p457 = scmp.eq.s32.totalorder %s54, 3
      %p458 = por %p456, %p457
      %p459 = scmp.ne.s32.totalorder %s451, %s454
      %p460 = scmp.eq.s32.totalorder %s54, 0
      %p461 = por %p459, %p460
      %p462 = scmp.ne.s32.totalorder %s451, %s454
      %p463 = scmp.eq.s32.totalorder %s59, 3
      %p464 = por %p462, %p463
      %p465 = scmp.ne.s32.totalorder %s454, %s455
      %p466 = scmp.eq.s32.totalorder %s59, 0
      %p467 = por %p465, %p466
      %p468 = scmp.ne.s32.totalorder %s454, %s455
      %p469 = scmp.eq.s32.totalorder %s60, 3
      %p470 = por %p468, %p469
      %p472 = scmp.ne.s32.totalorder %s455, %s471
      %p473 = scmp.eq.s32.totalorder %s60, 0
      %p474 = por %p472, %p473
      %s475 = ssub.s32 %s62, %s69
      %p476 = scmp.eq.s32.totalorder %s475, 0
      %s478 = sadd.s32 %s477, 1
      %s479 = scalar_select %p476, %s477, %s478
      %p482 = pneg %p476
      %p483 = scmp.eq.s32.totalorder %s54, 3
      %p484 = por %p482, %p483
      %p485 = scmp.ne.s32.totalorder %s477, %s480
      %p486 = scmp.eq.s32.totalorder %s54, 0
      %p487 = por %p485, %p486
      %p488 = scmp.ne.s32.totalorder %s477, %s480
      %p489 = scmp.eq.s32.totalorder %s59, 3
      %p490 = por %p488, %p489
      %p491 = scmp.ne.s32.totalorder %s480, %s481
      %p492 = scmp.eq.s32.totalorder %s59, 0
      %p493 = por %p491, %p492
      %p494 = scmp.ne.s32.totalorder %s480, %s481
      %p495 = scmp.eq.s32.totalorder %s60, 3
      %p496 = por %p494, %p495
      %p498 = scmp.ne.s32.totalorder %s481, %s497
      %p499 = scmp.eq.s32.totalorder %s60, 0
      %p500 = por %p498, %p499
      %s501 = ssub.s32 %s62, %s69
      %p502 = scmp.eq.s32.totalorder %s501, 0
      %s504 = sadd.s32 %s503, 1
      %s505 = scalar_select %p502, %s503, %s504
      %p508 = pneg %p502
      %p509 = scmp.eq.s32.totalorder %s54, 3
      %p510 = por %p508, %p509
      %p511 = scmp.ne.s32.totalorder %s503, %s506
      %p512 = scmp.eq.s32.totalorder %s54, 0
      %p513 = por %p511, %p512
      %p514 = scmp.ne.s32.totalorder %s503, %s506
      %p515 = scmp.eq.s32.totalorder %s59, 3
      %p516 = por %p514, %p515
      %p517 = scmp.ne.s32.totalorder %s506, %s507
      %p518 = scmp.eq.s32.totalorder %s59, 0
      %p519 = por %p517, %p518
      %p520 = scmp.ne.s32.totalorder %s506, %s507
      %p521 = scmp.eq.s32.totalorder %s60, 3
      %p522 = por %p520, %p521
      %p524 = scmp.ne.s32.totalorder %s507, %s523
      %p525 = scmp.eq.s32.totalorder %s60, 0
      %p526 = por %p524, %p525
      %s527 = ssub.s32 %s62, %s69
      %p528 = scmp.eq.s32.totalorder %s527, 0
      %s530 = sadd.s32 %s529, 1
      %s531 = scalar_select %p528, %s529, %s530
      %p534 = pneg %p528
      %p535 = scmp.eq.s32.totalorder %s54, 3
      %p536 = por %p534, %p535
      %p537 = scmp.ne.s32.totalorder %s529, %s532
      %p538 = scmp.eq.s32.totalorder %s54, 0
      %p539 = por %p537, %p538
      %p540 = scmp.ne.s32.totalorder %s529, %s532
      %p541 = scmp.eq.s32.totalorder %s59, 3
      %p542 = por %p540, %p541
      %p543 = scmp.ne.s32.totalorder %s532, %s533
      %p544 = scmp.eq.s32.totalorder %s59, 0
      %p545 = por %p543, %p544
      %p546 = scmp.ne.s32.totalorder %s532, %s533
      %p547 = scmp.eq.s32.totalorder %s60, 3
      %p548 = por %p546, %p547
      %p550 = scmp.ne.s32.totalorder %s533, %s549
      %p551 = scmp.eq.s32.totalorder %s60, 0
      %p552 = por %p550, %p551
      %s553 = ssub.s32 %s62, %s69
      %p554 = scmp.eq.s32.totalorder %s553, 0
      %s556 = sadd.s32 %s555, 1
      %s557 = scalar_select %p554, %s555, %s556
      %p560 = pneg %p554
      %p561 = scmp.eq.s32.totalorder %s54, 3
      %p562 = por %p560, %p561
      %p563 = scmp.ne.s32.totalorder %s555, %s558
      %p564 = scmp.eq.s32.totalorder %s54, 0
      %p565 = por %p563, %p564
      %p566 = scmp.ne.s32.totalorder %s555, %s558
      %p567 = scmp.eq.s32.totalorder %s59, 3
      %p568 = por %p566, %p567
      %p569 = scmp.ne.s32.totalorder %s558, %s559
      %p570 = scmp.eq.s32.totalorder %s59, 0
      %p571 = por %p569, %p570
      %p572 = scmp.ne.s32.totalorder %s558, %s559
      %p573 = scmp.eq.s32.totalorder %s60, 3
      %p574 = por %p572, %p573
      %p576 = scmp.ne.s32.totalorder %s559, %s575
      %p577 = scmp.eq.s32.totalorder %s60, 0
      %p578 = por %p576, %p577
      %s580 = sadd.s32 %s579, 1
      %p583 = scmp.eq.s32.totalorder %s54, 3
      %p584 = scmp.ne.s32.totalorder %s579, %s581
      %p585 = scmp.eq.s32.totalorder %s54, 0
      %p586 = por %p584, %p585
      %p587 = scmp.ne.s32.totalorder %s579, %s581
      %p588 = scmp.eq.s32.totalorder %s59, 3
      %p589 = por %p587, %p588
      %p590 = scmp.ne.s32.totalorder %s581, %s582
      %p591 = scmp.eq.s32.totalorder %s59, 0
      %p592 = por %p590, %p591
      %p593 = scmp.ne.s32.totalorder %s581, %s582
      %p594 = scmp.eq.s32.totalorder %s60, 3
      %p595 = por %p593, %p594
      %p597 = scmp.ne.s32.totalorder %s582, %s596
      %p598 = scmp.eq.s32.totalorder %s60, 0
      %p599 = por %p597, %p598
      %s601 = sadd.s32 %s600, 1
      %p604 = scmp.eq.s32.totalorder %s54, 3
      %p605 = scmp.ne.s32.totalorder %s600, %s602
      %p606 = scmp.eq.s32.totalorder %s54, 0
      %p607 = por %p605, %p606
      %p608 = scmp.ne.s32.totalorder %s600, %s602
      %p609 = scmp.eq.s32.totalorder %s59, 3
      %p610 = por %p608, %p609
      %p611 = scmp.ne.s32.totalorder %s602, %s603
      %p612 = scmp.eq.s32.totalorder %s59, 0
      %p613 = por %p611, %p612
      %p614 = scmp.ne.s32.totalorder %s602, %s603
      %p615 = scmp.eq.s32.totalorder %s60, 3
      %p616 = por %p614, %p615
      %p618 = scmp.ne.s32.totalorder %s603, %s617
      %p619 = scmp.eq.s32.totalorder %s60, 0
      %p620 = por %p618, %p619
      %s621 = ssub.s32 %s61, %s73
      %p622 = scmp.eq.s32.totalorder %s621, 0
      %s624 = sadd.s32 %s623, 1
      %s625 = scalar_select %p622, %s623, %s624
      %p628 = pneg %p622
      %p629 = scmp.eq.s32.totalorder %s54, 3
      %p630 = por %p628, %p629
      %p631 = scmp.ne.s32.totalorder %s623, %s626
      %p632 = scmp.eq.s32.totalorder %s54, 0
      %p633 = por %p631, %p632
      %p634 = scmp.ne.s32.totalorder %s623, %s626
      %p635 = scmp.eq.s32.totalorder %s59, 3
      %p636 = por %p634, %p635
      %p637 = scmp.ne.s32.totalorder %s626, %s627
      %p638 = scmp.eq.s32.totalorder %s59, 0
      %p639 = por %p637, %p638
      %p640 = scmp.ne.s32.totalorder %s626, %s627
      %p641 = scmp.eq.s32.totalorder %s60, 3
      %p642 = por %p640, %p641
      %p644 = scmp.ne.s32.totalorder %s627, %s643
      %p645 = scmp.eq.s32.totalorder %s60, 0
      %p646 = por %p644, %p645
      %s647 = smul.u32 %s62, 2
      %s648 = sadd.s32 %s647, %s61
      %s649 = smul.u32 %s69, 2
      %s650 = sadd.s32 %s649, %s73
      %s651 = ssub.s32 %s648, %s650
      %p652 = scmp.eq.s32.totalorder %s651, 0
      %s654 = sadd.s32 %s653, 1
      %s655 = scalar_select %p652, %s653, %s654
      %p658 = pneg %p652
      %p659 = scmp.eq.s32.totalorder %s54, 3
      %p660 = por %p658, %p659
      %p661 = scmp.ne.s32.totalorder %s653, %s656
      %p662 = scmp.eq.s32.totalorder %s54, 0
      %p663 = por %p661, %p662
      %p664 = scmp.ne.s32.totalorder %s653, %s656
      %p665 = scmp.eq.s32.totalorder %s59, 3
      %p666 = por %p664, %p665
      %p667 = scmp.ne.s32.totalorder %s656, %s657
      %p668 = scmp.eq.s32.totalorder %s59, 0
      %p669 = por %p667, %p668
      %p670 = scmp.ne.s32.totalorder %s656, %s657
      %p671 = scmp.eq.s32.totalorder %s60, 3
      %p672 = por %p670, %p671
      %p674 = scmp.ne.s32.totalorder %s657, %s673
      %p675 = scmp.eq.s32.totalorder %s60, 0
      %p676 = por %p674, %p675
      %p677 = scmp.le.s32.totalorder 1, %s54
      %p678 = scmp.lt.s32.totalorder %s54, 5
      %p679 = pnand %p677, %p678
      %p680 = pneg %p679
      // Predicated region
      $region9: #{tpu_custom_call.1} parent=5 // pred_check
        _
      $region10: #{tpu_custom_call.1} parent=5 // pred_check_branch
        %682 = sbr.rel (%p679) target = $region12
      $region11: #{tpu_custom_call.1} parent=5 // pred_region
        %s683 = ssub.s32 %s54, 1
        // Predicated region
        $region13: #{tpu_custom_call.1} parent=11 // pred_check
          %p684 = pneg %p113
        $region14: #{tpu_custom_call.1} parent=11 // pred_check_branch
          %686 = sbr.rel (%p684) target = $region16
        $region15: #{tpu_custom_call.1} parent=11 // pred_region
          _
        $region16: #{tpu_custom_call.1} parent=11 // pred_fallthru
          _
        // Predicated region
        $region17: #{tpu_custom_call.1} parent=11 // pred_check
          %p687 = pneg %p134
        $region18: #{tpu_custom_call.1} parent=11 // pred_check_branch
          %689 = sbr.rel (%p687) target = $region20
        $region19: #{tpu_custom_call.1} parent=11 // pred_region
          _
        $region20: #{tpu_custom_call.1} parent=11 // pred_fallthru
          _
        // Predicated region
        $region21: #{tpu_custom_call.1} parent=11 // pred_check
          %p690 = pneg %p155
        $region22: #{tpu_custom_call.1} parent=11 // pred_check_branch
          %692 = sbr.rel (%p690) target = $region24
        $region23: #{tpu_custom_call.1} parent=11 // pred_region
          %s694 = ssub.s32 128, 128
          %695 = vsyncadd [#allocation5], %s694
          %s697 = sshll.u32 [#allocation4], 4
          %s698 = int_to_ptr.vmem [resolvable:$true] %s697
          %700 = dma.hbm_to_vmem [thread:$0]  %s3, 128, %s698, [#allocation5]
        $region24: #{tpu_custom_call.1} parent=11 // pred_fallthru
          _
        // Predicated region
        $region25: #{tpu_custom_call.1} parent=11 // pred_check
          %p701 = pneg %p592
        $region26: #{tpu_custom_call.1} parent=11 // pred_check_branch
          %703 = sbr.rel (%p701) target = $region28
        $region27: #{tpu_custom_call.1} parent=11 // pred_region
          _
        $region28: #{tpu_custom_call.1} parent=11 // pred_fallthru
          _
        // Predicated region
        $region29: #{tpu_custom_call.1} parent=11 // pred_check
          %p704 = pneg %p613
        $region30: #{tpu_custom_call.1} parent=11 // pred_check_branch
          %706 = sbr.rel (%p704) target = $region32
        $region31: #{tpu_custom_call.1} parent=11 // pred_region
          _
        $region32: #{tpu_custom_call.1} parent=11 // pred_fallthru
          _
      $region12: #{tpu_custom_call.1} parent=5 // pred_fallthru
        _
      %p707 = scmp.lt.s32.totalorder %s54, 4
      // Predicated region
      $region33: #{tpu_custom_call.1} parent=5 // pred_check
        %p708 = pneg %p707
      $region34: #{tpu_custom_call.1} parent=5 // pred_check_branch
        %710 = sbr.rel (%p708) target = $region36
      $region35: #{tpu_custom_call.1} parent=5 // pred_region
        // Predicated region
        $region37: #{tpu_custom_call.1} parent=35 // pred_check
          %p711 = pneg %p86
        $region38: #{tpu_custom_call.1} parent=35 // pred_check_branch
          %713 = sbr.rel (%p711) target = $region40
        $region39: #{tpu_custom_call.1} parent=35 // pred_region
          %p714 = scmp.lt.s32.totalorder %s61, 1
          %s715 = scalar_select %p714, %s61, 1
          %s716 = scalar_lea.vmem %s0, %s715
        $region40: #{tpu_custom_call.1} parent=35 // pred_fallthru
          _
        // Predicated region
        $region41: #{tpu_custom_call.1} parent=35 // pred_check
          %p717 = pneg %p175
        $region42: #{tpu_custom_call.1} parent=35 // pred_check_branch
          %719 = sbr.rel (%p717) target = $region44
        $region43: #{tpu_custom_call.1} parent=35 // pred_region
          %p720 = scmp.lt.s32.totalorder %s62, 1
          %s721 = scalar_select %p720, %s62, 1
          %s722 = scalar_lea.vmem %s4, %s721
        $region44: #{tpu_custom_call.1} parent=35 // pred_fallthru
          _
        // Predicated region
        $region45: #{tpu_custom_call.1} parent=35 // pred_check
          %p723 = pneg %p201
        $region46: #{tpu_custom_call.1} parent=35 // pred_check_branch
          %725 = sbr.rel (%p723) target = $region48
        $region47: #{tpu_custom_call.1} parent=35 // pred_region
          %p726 = scmp.lt.s32.totalorder %s62, 1
          %s727 = scalar_select %p726, %s62, 1
          %s728 = scalar_lea.vmem %s5, %s727
        $region48: #{tpu_custom_call.1} parent=35 // pred_fallthru
          _
        // Predicated region
        $region49: #{tpu_custom_call.1} parent=35 // pred_check
          %p729 = pneg %p227
        $region50: #{tpu_custom_call.1} parent=35 // pred_check_branch
          %731 = sbr.rel (%p729) target = $region52
        $region51: #{tpu_custom_call.1} parent=35 // pred_region
          %s732 = sand.u32 %s54, 1
          %s733 = scalar_lea.sflag [#allocation8], %s732
          %s734 = sand.u32 %s217, 1
          %s735 = scalar_lea.vmem [#allocation7], %s734
          %s737 = ssub.s32 16, 16
          %738 = vsyncadd %s733, %s737
          %s739 = smul.addr %s62, 16
          %s740 = scalar_lea.hbm %s6, %s739
          %s742 = sshll.u32 %s735, 4
          %s743 = int_to_ptr.vmem [resolvable:$true] %s742
          %745 = dma.hbm_to_vmem [thread:$0]  %s740, 16, %s743, %s733
        $region52: #{tpu_custom_call.1} parent=35 // pred_fallthru
          _
        // Predicated region
        $region53: #{tpu_custom_call.1} parent=35 // pred_check
          %p746 = pneg %p253
        $region54: #{tpu_custom_call.1} parent=35 // pred_check_branch
          %748 = sbr.rel (%p746) target = $region56
        $region55: #{tpu_custom_call.1} parent=35 // pred_region
          %s749 = sand.u32 %s54, 1
          %s750 = scalar_lea.sflag [#allocation8], %s749
          %s751 = sand.u32 %s243, 1
          %s752 = scalar_lea.vmem [#allocation9], %s751
          %s754 = ssub.s32 16, 16
          %755 = vsyncadd %s750, %s754
          %s756 = smul.addr %s62, 16
          %s757 = scalar_lea.hbm %s7, %s756
          %s759 = sshll.u32 %s752, 4
          %s760 = int_to_ptr.vmem [resolvable:$true] %s759
          %762 = dma.hbm_to_vmem [thread:$0]  %s757, 16, %s760, %s750
        $region56: #{tpu_custom_call.1} parent=35 // pred_fallthru
          _
        // Predicated region
        $region57: #{tpu_custom_call.1} parent=35 // pred_check
          %p763 = pneg %p279
        $region58: #{tpu_custom_call.1} parent=35 // pred_check_branch
          %765 = sbr.rel (%p763) target = $region60
        $region59: #{tpu_custom_call.1} parent=35 // pred_region
          %p766 = scmp.lt.s32.totalorder %s62, 1
          %s767 = scalar_select %p766, %s62, 1
          %s768 = smul.addr %s767, 4
          %s769 = smul.addr %s768, 8
          %s770 = scalar_lea.vmem %s8, %s769
        $region60: #{tpu_custom_call.1} parent=35 // pred_fallthru
          _
        // Predicated region
        $region61: #{tpu_custom_call.1} parent=35 // pred_check
          %p771 = pneg %p305
        $region62: #{tpu_custom_call.1} parent=35 // pred_check_branch
          %773 = sbr.rel (%p771) target = $region64
        $region63: #{tpu_custom_call.1} parent=35 // pred_region
          %s774 = sand.u32 %s54, 1
          %s775 = scalar_lea.sflag [#allocation11], %s774
          %s776 = sand.u32 %s295, 1
          %s777 = scalar_lea.vmem [#allocation10], %s776
          %s779 = ssub.s32 16, 16
          %780 = vsyncadd %s775, %s779
          %s781 = smul.addr %s62, 16
          %s782 = scalar_lea.hbm %s9, %s781
          %s784 = sshll.u32 %s777, 4
          %s785 = int_to_ptr.vmem [resolvable:$true] %s784
          %787 = dma.hbm_to_vmem [thread:$0]  %s782, 16, %s785, %s775
        $region64: #{tpu_custom_call.1} parent=35 // pred_fallthru
          _
        // Predicated region
        $region65: #{tpu_custom_call.1} parent=35 // pred_check
          %p788 = pneg %p331
        $region66: #{tpu_custom_call.1} parent=35 // pred_check_branch
          %790 = sbr.rel (%p788) target = $region68
        $region67: #{tpu_custom_call.1} parent=35 // pred_region
          %s791 = sand.u32 %s54, 1
          %s792 = scalar_lea.sflag [#allocation11], %s791
          %s793 = sand.u32 %s321, 1
          %s794 = smul.addr %s793, 32
          %s795 = scalar_lea.vmem [#allocation12], %s794
          %s797 = ssub.s32 512, 512
          %798 = vsyncadd %s792, %s797
          %s799 = smul.addr %s62, 4
          %s800 = smul.addr %s799, 128
          %s801 = scalar_lea.hbm %s10, %s800
          %s802 = sshll.u32 %s795, 4
          %s803 = int_to_ptr.vmem [resolvable:$true] %s802
          %808 = dma.hbm_to_vmem [thread:$0]  %s801, 512, %s803, %s792, 128, 128, 8
        $region68: #{tpu_custom_call.1} parent=35 // pred_fallthru
          _
        // Predicated region
        $region69: #{tpu_custom_call.1} parent=35 // pred_check
          %p809 = pneg %p357
        $region70: #{tpu_custom_call.1} parent=35 // pred_check_branch
          %811 = sbr.rel (%p809) target = $region72
        $region71: #{tpu_custom_call.1} parent=35 // pred_region
          %s812 = sand.u32 %s54, 1
          %s813 = scalar_lea.sflag [#allocation14], %s812
          %s814 = sand.u32 %s347, 1
          %s815 = scalar_lea.vmem [#allocation13], %s814
          %s817 = ssub.s32 16, 16
          %818 = vsyncadd %s813, %s817
          %s819 = smul.addr %s62, 16
          %s820 = scalar_lea.hbm %s11, %s819
          %s822 = sshll.u32 %s815, 4
          %s823 = int_to_ptr.vmem [resolvable:$true] %s822
          %825 = dma.hbm_to_vmem [thread:$0]  %s820, 16, %s823, %s813
        $region72: #{tpu_custom_call.1} parent=35 // pred_fallthru
          _
        // Predicated region
        $region73: #{tpu_custom_call.1} parent=35 // pred_check
          %p826 = pneg %p383
        $region74: #{tpu_custom_call.1} parent=35 // pred_check_branch
          %828 = sbr.rel (%p826) target = $region76
        $region75: #{tpu_custom_call.1} parent=35 // pred_region
          %s829 = sand.u32 %s54, 1
          %s830 = scalar_lea.sflag [#allocation14], %s829
          %s831 = sand.u32 %s373, 1
          %s832 = smul.addr %s831, 32
          %s833 = scalar_lea.vmem [#allocation15], %s832
          %s835 = ssub.s32 512, 512
          %836 = vsyncadd %s830, %s835
          %s837 = smul.addr %s62, 4
          %s838 = smul.addr %s837, 128
          %s839 = scalar_lea.hbm %s12, %s838
          %s840 = sshll.u32 %s833, 4
          %s841 = int_to_ptr.vmem [resolvable:$true] %s840
          %846 = dma.hbm_to_vmem [thread:$0]  %s839, 512, %s841, %s830, 128, 128, 8
        $region76: #{tpu_custom_call.1} parent=35 // pred_fallthru
          _
        // Predicated region
        $region77: #{tpu_custom_call.1} parent=35 // pred_check
          %p847 = pneg %p409
        $region78: #{tpu_custom_call.1} parent=35 // pred_check_branch
          %849 = sbr.rel (%p847) target = $region80
        $region79: #{tpu_custom_call.1} parent=35 // pred_region
          %s850 = sand.u32 %s54, 1
          %s851 = scalar_lea.sflag [#allocation17], %s850
          %s852 = sand.u32 %s399, 1
          %s853 = scalar_lea.vmem [#allocation16], %s852
          %s855 = ssub.s32 16, 16
          %856 = vsyncadd %s851, %s855
          %s857 = smul.addr %s62, 16
          %s858 = scalar_lea.hbm %s13, %s857
          %s860 = sshll.u32 %s853, 4
          %s861 = int_to_ptr.vmem [resolvable:$true] %s860
          %863 = dma.hbm_to_vmem [thread:$0]  %s858, 16, %s861, %s851
        $region80: #{tpu_custom_call.1} parent=35 // pred_fallthru
          _
        // Predicated region
        $region81: #{tpu_custom_call.1} parent=35 // pred_check
          %p864 = pneg %p435
        $region82: #{tpu_custom_call.1} parent=35 // pred_check_branch
          %866 = sbr.rel (%p864) target = $region84
        $region83: #{tpu_custom_call.1} parent=35 // pred_region
          %s867 = sand.u32 %s54, 1
          %s868 = scalar_lea.sflag [#allocation17], %s867
          %s869 = sand.u32 %s425, 1
          %s870 = smul.addr %s869, 32
          %s871 = scalar_lea.vmem [#allocation18], %s870
          %s873 = ssub.s32 512, 512
          %874 = vsyncadd %s868, %s873
          %s875 = smul.addr %s62, 4
          %s876 = smul.addr %s875, 128
          %s877 = scalar_lea.hbm %s14, %s876
          %s878 = sshll.u32 %s871, 4
          %s879 = int_to_ptr.vmem [resolvable:$true] %s878
          %884 = dma.hbm_to_vmem [thread:$0]  %s877, 512, %s879, %s868, 128, 128, 8
        $region84: #{tpu_custom_call.1} parent=35 // pred_fallthru
          _
        // Predicated region
        $region85: #{tpu_custom_call.1} parent=35 // pred_check
          %p885 = pneg %p461
        $region86: #{tpu_custom_call.1} parent=35 // pred_check_branch
          %887 = sbr.rel (%p885) target = $region88
        $region87: #{tpu_custom_call.1} parent=35 // pred_region
          %s888 = sand.u32 %s54, 1
          %s889 = scalar_lea.sflag [#allocation20], %s888
          %s890 = sand.u32 %s451, 1
          %s891 = scalar_lea.vmem [#allocation19], %s890
          %s893 = ssub.s32 16, 16
          %894 = vsyncadd %s889, %s893
          %s895 = smul.addr %s62, 16
          %s896 = scalar_lea.hbm %s15, %s895
          %s898 = sshll.u32 %s891, 4
          %s899 = int_to_ptr.vmem [resolvable:$true] %s898
          %901 = dma.hbm_to_vmem [thread:$0]  %s896, 16, %s899, %s889
        $region88: #{tpu_custom_call.1} parent=35 // pred_fallthru
          _
        // Predicated region
        $region89: #{tpu_custom_call.1} parent=35 // pred_check
          %p902 = pneg %p487
        $region90: #{tpu_custom_call.1} parent=35 // pred_check_branch
          %904 = sbr.rel (%p902) target = $region92
        $region91: #{tpu_custom_call.1} parent=35 // pred_region
          %s905 = sand.u32 %s54, 1
          %s906 = scalar_lea.sflag [#allocation20], %s905
          %s907 = sand.u32 %s477, 1
          %s908 = smul.addr %s907, 32
          %s909 = scalar_lea.vmem [#allocation21], %s908
          %s911 = ssub.s32 512, 512
          %912 = vsyncadd %s906, %s911
          %s913 = smul.addr %s62, 4
          %s914 = smul.addr %s913, 128
          %s915 = scalar_lea.hbm %s16, %s914
          %s916 = sshll.u32 %s909, 4
          %s917 = int_to_ptr.vmem [resolvable:$true] %s916
          %922 = dma.hbm_to_vmem [thread:$0]  %s915, 512, %s917, %s906, 128, 128, 8
        $region92: #{tpu_custom_call.1} parent=35 // pred_fallthru
          _
        // Predicated region
        $region93: #{tpu_custom_call.1} parent=35 // pred_check
          %p923 = pneg %p513
        $region94: #{tpu_custom_call.1} parent=35 // pred_check_branch
          %925 = sbr.rel (%p923) target = $region96
        $region95: #{tpu_custom_call.1} parent=35 // pred_region
          %s926 = sand.u32 %s503, 1
          %s927 = scalar_lea.sflag [#allocation23], %s926
          %s928 = sand.u32 %s503, 1
          %s929 = scalar_lea.vmem [#allocation22], %s928
          %s931 = ssub.s32 16, 16
          %932 = vsyncadd %s927, %s931
          %s933 = smul.addr %s62, 16
          %s934 = scalar_lea.hbm %s17, %s933
          %s936 = sshll.u32 %s929, 4
          %s937 = int_to_ptr.vmem [resolvable:$true] %s936
          %939 = dma.hbm_to_vmem [thread:$0]  %s934, 16, %s937, %s927
        $region96: #{tpu_custom_call.1} parent=35 // pred_fallthru
          _
        // Predicated region
        $region97: #{tpu_custom_call.1} parent=35 // pred_check
          %p940 = pneg %p539
        $region98: #{tpu_custom_call.1} parent=35 // pred_check_branch
          %942 = sbr.rel (%p940) target = $region100
        $region99: #{tpu_custom_call.1} parent=35 // pred_region
          %p943 = scmp.lt.s32.totalorder %s62, 1
          %s944 = scalar_select %p943, %s62, 1
          %s945 = smul.addr %s944, 8
          %s946 = smul.addr %s945, 8
          %s947 = scalar_lea.vmem %s18, %s946
        $region100: #{tpu_custom_call.1} parent=35 // pred_fallthru
          _
        // Predicated region
        $region101: #{tpu_custom_call.1} parent=35 // pred_check
          %p948 = pneg %p565
        $region102: #{tpu_custom_call.1} parent=35 // pred_check_branch
          %950 = sbr.rel (%p948) target = $region104
        $region103: #{tpu_custom_call.1} parent=35 // pred_region
          %p951 = scmp.lt.s32.totalorder %s62, 1
          %s952 = scalar_select %p951, %s62, 1
          %s953 = scalar_lea.vmem %s19, %s952
        $region104: #{tpu_custom_call.1} parent=35 // pred_fallthru
          _
      $region36: #{tpu_custom_call.1} parent=5 // pred_fallthru
        _
      %p954 = scmp.le.s32.totalorder 1, %s54
      %p955 = scmp.lt.s32.totalorder %s54, 5
      %p956 = pnand %p954, %p955
      %p957 = pneg %p956
      // Predicated region
      $region105: #{tpu_custom_call.1} parent=5 // pred_check
        _
      $region106: #{tpu_custom_call.1} parent=5 // pred_check_branch
        %959 = sbr.rel (%p956) target = $region108
      $region107: #{tpu_custom_call.1} parent=5 // pred_region
        %s960 = ssub.s32 %s54, 1
        // Predicated region
        $region109: #{tpu_custom_call.1} parent=107 // pred_check
          %p961 = pneg %p155
        $region110: #{tpu_custom_call.1} parent=107 // pred_check_branch
          %963 = sbr.rel (%p961) target = $region112
        $region111: #{tpu_custom_call.1} parent=107 // pred_region
          %964 = dma.done [#allocation5], 128
        $region112: #{tpu_custom_call.1} parent=107 // pred_fallthru
          _
        %s965 = sand.u32 %s59, 1
        %s966 = scalar_lea.sflag [#allocation8], %s965
        %s967 = sand.u32 %s220, 1
        %s968 = scalar_lea.vmem [#allocation7], %s967
        // Predicated region
        $region113: #{tpu_custom_call.1} parent=107 // pred_check
          %p969 = pneg %p233
        $region114: #{tpu_custom_call.1} parent=107 // pred_check_branch
          %971 = sbr.rel (%p969) target = $region116
        $region115: #{tpu_custom_call.1} parent=107 // pred_region
          %972 = dma.done %s966, 16
        $region116: #{tpu_custom_call.1} parent=107 // pred_fallthru
          _
        %s973 = sand.u32 %s59, 1
        %s974 = scalar_lea.sflag [#allocation8], %s973
        %s975 = sand.u32 %s246, 1
        %s976 = scalar_lea.vmem [#allocation9], %s975
        // Predicated region
        $region117: #{tpu_custom_call.1} parent=107 // pred_check
          %p977 = pneg %p259
        $region118: #{tpu_custom_call.1} parent=107 // pred_check_branch
          %979 = sbr.rel (%p977) target = $region120
        $region119: #{tpu_custom_call.1} parent=107 // pred_region
          %980 = dma.done %s974, 16
        $region120: #{tpu_custom_call.1} parent=107 // pred_fallthru
          _
        %s981 = sand.u32 %s59, 1
        %s982 = scalar_lea.sflag [#allocation11], %s981
        %s983 = sand.u32 %s298, 1
        %s984 = scalar_lea.vmem [#allocation10], %s983
        // Predicated region
        $region121: #{tpu_custom_call.1} parent=107 // pred_check
          %p985 = pneg %p311
        $region122: #{tpu_custom_call.1} parent=107 // pred_check_branch
          %987 = sbr.rel (%p985) target = $region124
        $region123: #{tpu_custom_call.1} parent=107 // pred_region
          %988 = dma.done %s982, 16
        $region124: #{tpu_custom_call.1} parent=107 // pred_fallthru
          _
        %s989 = sand.u32 %s59, 1
        %s990 = scalar_lea.sflag [#allocation11], %s989
        %s991 = sand.u32 %s324, 1
        %s992 = smul.addr %s991, 32
        %s993 = scalar_lea.vmem [#allocation12], %s992
        // Predicated region
        $region125: #{tpu_custom_call.1} parent=107 // pred_check
          %p994 = pneg %p337
        $region126: #{tpu_custom_call.1} parent=107 // pred_check_branch
          %996 = sbr.rel (%p994) target = $region128
        $region127: #{tpu_custom_call.1} parent=107 // pred_region
          %997 = dma.done %s990, 512
        $region128: #{tpu_custom_call.1} parent=107 // pred_fallthru
          _
        %s998 = sand.u32 %s59, 1
        %s999 = scalar_lea.sflag [#allocation14], %s998
        %s1000 = sand.u32 %s350, 1
        %s1001 = scalar_lea.vmem [#allocation13], %s1000
        // Predicated region
        $region129: #{tpu_custom_call.1} parent=107 // pred_check
          %p1002 = pneg %p363
        $region130: #{tpu_custom_call.1} parent=107 // pred_check_branch
          %1004 = sbr.rel (%p1002) target = $region132
        $region131: #{tpu_custom_call.1} parent=107 // pred_region
          %1005 = dma.done %s999, 16
        $region132: #{tpu_custom_call.1} parent=107 // pred_fallthru
          _
        %s1006 = sand.u32 %s59, 1
        %s1007 = scalar_lea.sflag [#allocation14], %s1006
        %s1008 = sand.u32 %s376, 1
        %s1009 = smul.addr %s1008, 32
        %s1010 = scalar_lea.vmem [#allocation15], %s1009
        // Predicated region
        $region133: #{tpu_custom_call.1} parent=107 // pred_check
          %p1011 = pneg %p389
        $region134: #{tpu_custom_call.1} parent=107 // pred_check_branch
          %1013 = sbr.rel (%p1011) target = $region136
        $region135: #{tpu_custom_call.1} parent=107 // pred_region
          %1014 = dma.done %s1007, 512
        $region136: #{tpu_custom_call.1} parent=107 // pred_fallthru
          _
        %s1015 = sand.u32 %s59, 1
        %s1016 = scalar_lea.sflag [#allocation17], %s1015
        %s1017 = sand.u32 %s402, 1
        %s1018 = scalar_lea.vmem [#allocation16], %s1017
        // Predicated region
        $region137: #{tpu_custom_call.1} parent=107 // pred_check
          %p1019 = pneg %p415
        $region138: #{tpu_custom_call.1} parent=107 // pred_check_branch
          %1021 = sbr.rel (%p1019) target = $region140
        $region139: #{tpu_custom_call.1} parent=107 // pred_region
          %1022 = dma.done %s1016, 16
        $region140: #{tpu_custom_call.1} parent=107 // pred_fallthru
          _
        %s1023 = sand.u32 %s59, 1
        %s1024 = scalar_lea.sflag [#allocation17], %s1023
        %s1025 = sand.u32 %s428, 1
        %s1026 = smul.addr %s1025, 32
        %s1027 = scalar_lea.vmem [#allocation18], %s1026
        // Predicated region
        $region141: #{tpu_custom_call.1} parent=107 // pred_check
          %p1028 = pneg %p441
        $region142: #{tpu_custom_call.1} parent=107 // pred_check_branch
          %1030 = sbr.rel (%p1028) target = $region144
        $region143: #{tpu_custom_call.1} parent=107 // pred_region
          %1031 = dma.done %s1024, 512
        $region144: #{tpu_custom_call.1} parent=107 // pred_fallthru
          _
        %s1032 = sand.u32 %s59, 1
        %s1033 = scalar_lea.sflag [#allocation20], %s1032
        %s1034 = sand.u32 %s454, 1
        %s1035 = scalar_lea.vmem [#allocation19], %s1034
        // Predicated region
        $region145: #{tpu_custom_call.1} parent=107 // pred_check
          %p1036 = pneg %p467
        $region146: #{tpu_custom_call.1} parent=107 // pred_check_branch
          %1038 = sbr.rel (%p1036) target = $region148
        $region147: #{tpu_custom_call.1} parent=107 // pred_region
          %1039 = dma.done %s1033, 16
        $region148: #{tpu_custom_call.1} parent=107 // pred_fallthru
          _
        %s1040 = sand.u32 %s59, 1
        %s1041 = scalar_lea.sflag [#allocation20], %s1040
        %s1042 = sand.u32 %s480, 1
        %s1043 = smul.addr %s1042, 32
        %s1044 = scalar_lea.vmem [#allocation21], %s1043
        // Predicated region
        $region149: #{tpu_custom_call.1} parent=107 // pred_check
          %p1045 = pneg %p493
        $region150: #{tpu_custom_call.1} parent=107 // pred_check_branch
          %1047 = sbr.rel (%p1045) target = $region152
        $region151: #{tpu_custom_call.1} parent=107 // pred_region
          %1048 = dma.done %s1041, 512
        $region152: #{tpu_custom_call.1} parent=107 // pred_fallthru
          _
        %s1049 = sand.u32 %s506, 1
        %s1050 = scalar_lea.sflag [#allocation23], %s1049
        %s1051 = sand.u32 %s506, 1
        %s1052 = scalar_lea.vmem [#allocation22], %s1051
        // Predicated region
        $region153: #{tpu_custom_call.1} parent=107 // pred_check
          %p1053 = pneg %p519
        $region154: #{tpu_custom_call.1} parent=107 // pred_check_branch
          %1055 = sbr.rel (%p1053) target = $region156
        $region155: #{tpu_custom_call.1} parent=107 // pred_region
          %1056 = dma.done %s1050, 16
        $region156: #{tpu_custom_call.1} parent=107 // pred_fallthru
          _
        %p1057 = scmp.lt.s32.totalorder %s63, 1
        %s1058 = scalar_select %p1057, %s63, 1
        %s1059 = scalar_lea.vmem %s0, %s1058
        %p1060 = pneg %p92
        %p1061 = pneg %p89
        %p1062 = pneg %p113
        %p1063 = pneg %p110
        %p1064 = pneg %p134
        %p1065 = pneg %p131
        %p1066 = pneg %p155
        %p1067 = pneg %p152
        %p1068 = scmp.lt.s32.totalorder %s64, 1
        %s1069 = scalar_select %p1068, %s64, 1
        %s1070 = scalar_lea.vmem %s4, %s1069
        %p1071 = pneg %p181
        %p1072 = pneg %p178
        %p1073 = scmp.lt.s32.totalorder %s64, 1
        %s1074 = scalar_select %p1073, %s64, 1
        %s1075 = scalar_lea.vmem %s5, %s1074
        %p1076 = pneg %p207
        %p1077 = pneg %p204
        %s1078 = sand.u32 %s59, 1
        %s1079 = scalar_lea.sflag [#allocation8], %s1078
        %s1080 = sand.u32 %s220, 1
        %s1081 = scalar_lea.vmem [#allocation7], %s1080
        %p1082 = pneg %p233
        %p1083 = pneg %p230
        %s1084 = sand.u32 %s59, 1
        %s1085 = scalar_lea.sflag [#allocation8], %s1084
        %s1086 = sand.u32 %s246, 1
        %s1087 = scalar_lea.vmem [#allocation9], %s1086
        %p1088 = pneg %p259
        %p1089 = pneg %p256
        %p1090 = scmp.lt.s32.totalorder %s64, 1
        %s1091 = scalar_select %p1090, %s64, 1
        %s1092 = smul.addr %s1091, 4
        %s1093 = smul.addr %s1092, 8
        %s1094 = scalar_lea.vmem %s8, %s1093
        %p1095 = pneg %p285
        %p1096 = pneg %p282
        %s1097 = sand.u32 %s59, 1
        %s1098 = scalar_lea.sflag [#allocation11], %s1097
        %s1099 = sand.u32 %s298, 1
        %s1100 = scalar_lea.vmem [#allocation10], %s1099
        %p1101 = pneg %p311
        %p1102 = pneg %p308
        %s1103 = sand.u32 %s59, 1
        %s1104 = scalar_lea.sflag [#allocation11], %s1103
        %s1105 = sand.u32 %s324, 1
        %s1106 = smul.addr %s1105, 32
        %s1107 = scalar_lea.vmem [#allocation12], %s1106
        %p1108 = pneg %p337
        %p1109 = pneg %p334
        %s1110 = sand.u32 %s59, 1
        %s1111 = scalar_lea.sflag [#allocation14], %s1110
        %s1112 = sand.u32 %s350, 1
        %s1113 = scalar_lea.vmem [#allocation13], %s1112
        %p1114 = pneg %p363
        %p1115 = pneg %p360
        %s1116 = sand.u32 %s59, 1
        %s1117 = scalar_lea.sflag [#allocation14], %s1116
        %s1118 = sand.u32 %s376, 1
        %s1119 = smul.addr %s1118, 32
        %s1120 = scalar_lea.vmem [#allocation15], %s1119
        %p1121 = pneg %p389
        %p1122 = pneg %p386
        %s1123 = sand.u32 %s59, 1
        %s1124 = scalar_lea.sflag [#allocation17], %s1123
        %s1125 = sand.u32 %s402, 1
        %s1126 = scalar_lea.vmem [#allocation16], %s1125
        %p1127 = pneg %p415
        %p1128 = pneg %p412
        %s1129 = sand.u32 %s59, 1
        %s1130 = scalar_lea.sflag [#allocation17], %s1129
        %s1131 = sand.u32 %s428, 1
        %s1132 = smul.addr %s1131, 32
        %s1133 = scalar_lea.vmem [#allocation18], %s1132
        %p1134 = pneg %p441
        %p1135 = pneg %p438
        %s1136 = sand.u32 %s59, 1
        %s1137 = scalar_lea.sflag [#allocation20], %s1136
        %s1138 = sand.u32 %s454, 1
        %s1139 = scalar_lea.vmem [#allocation19], %s1138
        %p1140 = pneg %p467
        %p1141 = pneg %p464
        %s1142 = sand.u32 %s59, 1
        %s1143 = scalar_lea.sflag [#allocation20], %s1142
        %s1144 = sand.u32 %s480, 1
        %s1145 = smul.addr %s1144, 32
        %s1146 = scalar_lea.vmem [#allocation21], %s1145
        %p1147 = pneg %p493
        %p1148 = pneg %p490
        %s1149 = sand.u32 %s506, 1
        %s1150 = scalar_lea.sflag [#allocation23], %s1149
        %s1151 = sand.u32 %s506, 1
        %s1152 = scalar_lea.vmem [#allocation22], %s1151
        %p1153 = pneg %p519
        %p1154 = pneg %p516
        %p1155 = scmp.lt.s32.totalorder %s64, 1
        %s1156 = scalar_select %p1155, %s64, 1
        %s1157 = smul.addr %s1156, 8
        %s1158 = smul.addr %s1157, 8
        %s1159 = scalar_lea.vmem %s18, %s1158
        %p1160 = pneg %p545
        %p1161 = pneg %p542
        %p1162 = scmp.lt.s32.totalorder %s64, 1
        %s1163 = scalar_select %p1162, %s64, 1
        %s1164 = scalar_lea.vmem %s19, %s1163
        %p1165 = pneg %p571
        %p1166 = pneg %p568
        %p1167 = pneg %p592
        %p1168 = pneg %p589
        %p1169 = pneg %p613
        %p1170 = pneg %p610
        %p1171 = pneg %p639
        %p1172 = pneg %p636
        %p1173 = scmp.lt.s32.totalorder %s63, 1
        %s1174 = scalar_select %p1173, %s63, 1
        %s1175 = smul.addr %s1174, 8
        %s1176 = scalar_lea.vmem %s22, %s1175
        %p1177 = pneg %p669
        %p1178 = pneg %p666
        %s1179 = sand.u32 %s656, 1
        %s1180 = scalar_lea.sflag [#allocation6], %s1179
        %s1181 = sand.u32 %s656, 1
        %s1182 = smul.addr %s1181, 32
        %s1183 = scalar_lea.vmem [#allocation24], %s1182
        %p1184 = scmp.lt.s32.totalorder %s63, 1
        %s1185 = scalar_select %p1184, %s63, 1
        %s1186 = scalar_lea.vmem %s0, %s1185
        %p1187 = scmp.lt.s32.totalorder %s64, 1
        %s1188 = scalar_select %p1187, %s64, 1
        %s1189 = scalar_lea.vmem %s4, %s1188
        %p1190 = scmp.lt.s32.totalorder %s64, 1
        %s1191 = scalar_select %p1190, %s64, 1
        %s1192 = scalar_lea.vmem %s5, %s1191
        %p1193 = scmp.lt.s32.totalorder %s64, 1
        %s1194 = scalar_select %p1193, %s64, 1
        %s1195 = smul.addr %s1194, 4
        %s1196 = smul.addr %s1195, 8
        %s1197 = scalar_lea.vmem %s8, %s1196
        %p1198 = scmp.lt.s32.totalorder %s64, 1
        %s1199 = scalar_select %p1198, %s64, 1
        %s1200 = smul.addr %s1199, 8
        %s1201 = smul.addr %s1200, 8
        %s1202 = scalar_lea.vmem %s18, %s1201
        %p1203 = scmp.lt.s32.totalorder %s64, 1
        %s1204 = scalar_select %p1203, %s64, 1
        %s1205 = scalar_lea.vmem %s19, %s1204
        %p1206 = scmp.lt.s32.totalorder %s63, 1
        %s1207 = scalar_select %p1206, %s63, 1
        %s1208 = smul.addr %s1207, 8
        %s1209 = scalar_lea.vmem %s22, %s1208
        %s1210 = smul.u32 %s64, 2
        %s1211 = sadd.s32 %s1210, %s63
        %p1212 = scmp.eq.s32.totalorder %s64, 0
        // Predicated region
        $region157: #{tpu_custom_call.1} parent=107 // pred_check
          %p1213 = pneg %p1212
        $region158: #{tpu_custom_call.1} parent=107 // pred_check_branch
          %1215 = sbr.rel (%p1213) target = $region160
        $region159: #{tpu_custom_call.1} parent=107 // pred_region
          %v1216 = vld [vmem:[%s1186] sm:$0x1]
          %v1217 = vld [vmem:[%s1] sm:$0x1]
          %v1218 = vadd.f32 %v1216, %v1217
          %v1219 = vld [vmem:[%s2] sm:$0xff]
          %v1220 = vld [vmem:[%s2 + $0x8] sm:$0xff]
          %v1221 = vld [vmem:[#allocation4] sm:$0x1]
          %vm1222 = vcmask 130048
          %v1224 = vsel %vm1222, %v1218, 0
          %1226 = vmatprep.subr.mxu0 0.0
          %1227 = vmatpush1.msra.mxu0 %v1219
          %1228 = vmatprep.subr.mxu0 0.0
          %1229 = vmatpush1.msra.mxu0 %v1220
          %1230 = vmatprep.subr.mxu0 0.0
          %1231 = vmatpush1.msra.mxu0 0.0
          %1232 = vmatprep.subr.mxu0 0.0
          %1233 = vmatpush1.msra.mxu0 0.0
          %1234 = vmatprep.subr.mxu0 0.0
          %1235 = vmatpush1.msra.mxu0 0.0
          %1236 = vmatprep.subr.mxu0 0.0
          %1237 = vmatpush1.msra.mxu0 0.0
          %1238 = vmatprep.subr.mxu0 0.0
          %1239 = vmatpush1.msra.mxu0 0.0
          %1240 = vmatprep.subr.mxu0 0.0
          %1241 = vmatpush1.msra.mxu0 0.0
          %1242 = vmatprep.subr.mxu0 0.0
          %1243 = vmatpush1.msra.mxu0 0.0
          %1244 = vmatprep.subr.mxu0 0.0
          %1245 = vmatpush1.msra.mxu0 0.0
          %1246 = vmatprep.subr.mxu0 0.0
          %1247 = vmatpush1.msra.mxu0 0.0
          %1248 = vmatprep.subr.mxu0 0.0
          %1249 = vmatpush1.msra.mxu0 0.0
          %1250 = vmatprep.subr.mxu0 0.0
          %1251 = vmatpush1.msra.mxu0 0.0
          %1252 = vmatprep.subr.mxu0 0.0
          %1253 = vmatpush1.msra.mxu0 0.0
          %1254 = vmatprep.subr.mxu0 0.0
          %1255 = vmatpush1.msra.mxu0 0.0
          %1256 = vmatprep.subr.mxu0 0.0
          %1257 = vmatpush1.msra.mxu0 0.0
          %1258 = vmatprep.subr.mxu0 0.0
          %1259 = vmatpush1.msra.mxu0 0.0
          %1260 = vmatprep.subr.mxu0 0.0
          %1261 = vmatpush1.msra.mxu0 0.0
          %1262 = vmatprep.subr.mxu0 0.0
          %1263 = vmatpush1.msra.mxu0 0.0
          %1264 = vmatprep.subr.mxu0 0.0
          %1265 = vmatpush1.msra.mxu0 0.0
          %1266 = vmatprep.subr.mxu0 0.0
          %1267 = vmatpush1.msra.mxu0 0.0
          %1268 = vmatprep.subr.mxu0 0.0
          %1269 = vmatpush1.msra.mxu0 0.0
          %1270 = vmatprep.subr.mxu0 0.0
          %1271 = vmatpush1.msra.mxu0 0.0
          %1272 = vmatprep.subr.mxu0 0.0
          %1273 = vmatpush1.msra.mxu0 0.0
          %1274 = vmatprep.subr.mxu0 0.0
          %1275 = vmatpush1.msra.mxu0 0.0
          %1276 = vmatprep.subr.mxu0 0.0
          %1277 = vmatpush1.msra.mxu0 0.0
          %1278 = vmatprep.subr.mxu0 0.0
          %1279 = vmatpush1.msra.mxu0 0.0
          %1280 = vmatprep.subr.mxu0 0.0
          %1281 = vmatpush1.msra.mxu0 0.0
          %1282 = vmatprep.subr.mxu0 0.0
          %1283 = vmatpush1.msra.mxu0 0.0
          %1284 = vmatprep.subr.mxu0 0.0
          %1285 = vmatpush1.msra.mxu0 0.0
          %1286 = vmatprep.subr.mxu0 0.0
          %1287 = vmatpush1.msra.mxu0 0.0
          %1288 = vmatprep.subr.mxu0 0.0
          %1289 = vmatpush1.msra.mxu0 0.0
          %1290 = vmatprep.mubr.f32.mxu0 0.0
          %1291 = vmatmul.mubr.f32.gmra.mrb[0].mxu0 %v1224
          %v1292 = vpop.f32.mrb[0].mxu0
          %v1293 = vadd.f32 %v1221, %v1292
          %v1294 = vpop.f32.mrb[0].mxu0
          %1295 = vdwg.mxu0
          %vm1296 = vcmask 253952
          %1297 = vst.msk [vmem:[#allocation2] sm:$0x1] %vm1296, %v1293
          %s1298 = scalar_lea.vmem %s2, 16
          %v1299 = vld [vmem:[%s1298] sm:$0xff]
          %v1300 = vld [vmem:[%s1298 + $0x8] sm:$0xff]
          %v1301 = vld [vmem:[#allocation4 + $0x1] sm:$0x1]
          %1302 = vmatprep.subr.mxu0 0.0
          %1303 = vmatpush1.msra.mxu0 %v1299
          %1304 = vmatprep.subr.mxu0 0.0
          %1305 = vmatpush1.msra.mxu0 %v1300
          %1306 = vmatprep.subr.mxu0 0.0
          %1307 = vmatpush1.msra.mxu0 0.0
          %1308 = vmatprep.subr.mxu0 0.0
          %1309 = vmatpush1.msra.mxu0 0.0
          %1310 = vmatprep.subr.mxu0 0.0
          %1311 = vmatpush1.msra.mxu0 0.0
          %1312 = vmatprep.subr.mxu0 0.0
          %1313 = vmatpush1.msra.mxu0 0.0
          %1314 = vmatprep.subr.mxu0 0.0
          %1315 = vmatpush1.msra.mxu0 0.0
          %1316 = vmatprep.subr.mxu0 0.0
          %1317 = vmatpush1.msra.mxu0 0.0
          %1318 = vmatprep.subr.mxu0 0.0
          %1319 = vmatpush1.msra.mxu0 0.0
          %1320 = vmatprep.subr.mxu0 0.0
          %1321 = vmatpush1.msra.mxu0 0.0
          %1322 = vmatprep.subr.mxu0 0.0
          %1323 = vmatpush1.msra.mxu0 0.0
          %1324 = vmatprep.subr.mxu0 0.0
          %1325 = vmatpush1.msra.mxu0 0.0
          %1326 = vmatprep.subr.mxu0 0.0
          %1327 = vmatpush1.msra.mxu0 0.0
          %1328 = vmatprep.subr.mxu0 0.0
          %1329 = vmatpush1.msra.mxu0 0.0
          %1330 = vmatprep.subr.mxu0 0.0
          %1331 = vmatpush1.msra.mxu0 0.0
          %1332 = vmatprep.subr.mxu0 0.0
          %1333 = vmatpush1.msra.mxu0 0.0
          %1334 = vmatprep.subr.mxu0 0.0
          %1335 = vmatpush1.msra.mxu0 0.0
          %1336 = vmatprep.subr.mxu0 0.0
          %1337 = vmatpush1.msra.mxu0 0.0
          %1338 = vmatprep.subr.mxu0 0.0
          %1339 = vmatpush1.msra.mxu0 0.0
          %1340 = vmatprep.subr.mxu0 0.0
          %1341 = vmatpush1.msra.mxu0 0.0
          %1342 = vmatprep.subr.mxu0 0.0
          %1343 = vmatpush1.msra.mxu0 0.0
          %1344 = vmatprep.subr.mxu0 0.0
          %1345 = vmatpush1.msra.mxu0 0.0
          %1346 = vmatprep.subr.mxu0 0.0
          %1347 = vmatpush1.msra.mxu0 0.0
          %1348 = vmatprep.subr.mxu0 0.0
          %1349 = vmatpush1.msra.mxu0 0.0
          %1350 = vmatprep.subr.mxu0 0.0
          %1351 = vmatpush1.msra.mxu0 0.0
          %1352 = vmatprep.subr.mxu0 0.0
          %1353 = vmatpush1.msra.mxu0 0.0
          %1354 = vmatprep.subr.mxu0 0.0
          %1355 = vmatpush1.msra.mxu0 0.0
          %1356 = vmatprep.subr.mxu0 0.0
          %1357 = vmatpush1.msra.mxu0 0.0
          %1358 = vmatprep.subr.mxu0 0.0
          %1359 = vmatpush1.msra.mxu0 0.0
          %1360 = vmatprep.subr.mxu0 0.0
          %1361 = vmatpush1.msra.mxu0 0.0
          %1362 = vmatprep.subr.mxu0 0.0
          %1363 = vmatpush1.msra.mxu0 0.0
          %1364 = vmatprep.subr.mxu0 0.0
          %1365 = vmatpush1.msra.mxu0 0.0
          %1366 = vmatprep.mubr.f32.mxu0 0.0
          %1367 = vmatmul.mubr.f32.gmra.mrb[0].mxu0 %v1224
          %v1368 = vpop.f32.mrb[0].mxu0
          %v1369 = vadd.f32 %v1301, %v1368
          %v1370 = vpop.f32.mrb[0].mxu0
          %1371 = vdwg.mxu0
          %1372 = vst.msk [vmem:[#allocation2 + $0x1] sm:$0x1] %vm1296, %v1369
          %s1373 = scalar_lea.vmem %s2, 32
          %v1374 = vld [vmem:[%s1373] sm:$0xff]
          %v1375 = vld [vmem:[%s1373 + $0x8] sm:$0xff]
          %v1376 = vld [vmem:[#allocation4 + $0x2] sm:$0x1]
          %1377 = vmatprep.subr.mxu0 0.0
          %1378 = vmatpush1.msra.mxu0 %v1374
          %1379 = vmatprep.subr.mxu0 0.0
          %1380 = vmatpush1.msra.mxu0 %v1375
          %1381 = vmatprep.subr.mxu0 0.0
          %1382 = vmatpush1.msra.mxu0 0.0
          %1383 = vmatprep.subr.mxu0 0.0
          %1384 = vmatpush1.msra.mxu0 0.0
          %1385 = vmatprep.subr.mxu0 0.0
          %1386 = vmatpush1.msra.mxu0 0.0
          %1387 = vmatprep.subr.mxu0 0.0
          %1388 = vmatpush1.msra.mxu0 0.0
          %1389 = vmatprep.subr.mxu0 0.0
          %1390 = vmatpush1.msra.mxu0 0.0
          %1391 = vmatprep.subr.mxu0 0.0
          %1392 = vmatpush1.msra.mxu0 0.0
          %1393 = vmatprep.subr.mxu0 0.0
          %1394 = vmatpush1.msra.mxu0 0.0
          %1395 = vmatprep.subr.mxu0 0.0
          %1396 = vmatpush1.msra.mxu0 0.0
          %1397 = vmatprep.subr.mxu0 0.0
          %1398 = vmatpush1.msra.mxu0 0.0
          %1399 = vmatprep.subr.mxu0 0.0
          %1400 = vmatpush1.msra.mxu0 0.0
          %1401 = vmatprep.subr.mxu0 0.0
          %1402 = vmatpush1.msra.mxu0 0.0
          %1403 = vmatprep.subr.mxu0 0.0
          %1404 = vmatpush1.msra.mxu0 0.0
          %1405 = vmatprep.subr.mxu0 0.0
          %1406 = vmatpush1.msra.mxu0 0.0
          %1407 = vmatprep.subr.mxu0 0.0
          %1408 = vmatpush1.msra.mxu0 0.0
          %1409 = vmatprep.subr.mxu0 0.0
          %1410 = vmatpush1.msra.mxu0 0.0
          %1411 = vmatprep.subr.mxu0 0.0
          %1412 = vmatpush1.msra.mxu0 0.0
          %1413 = vmatprep.subr.mxu0 0.0
          %1414 = vmatpush1.msra.mxu0 0.0
          %1415 = vmatprep.subr.mxu0 0.0
          %1416 = vmatpush1.msra.mxu0 0.0
          %1417 = vmatprep.subr.mxu0 0.0
          %1418 = vmatpush1.msra.mxu0 0.0
          %1419 = vmatprep.subr.mxu0 0.0
          %1420 = vmatpush1.msra.mxu0 0.0
          %1421 = vmatprep.subr.mxu0 0.0
          %1422 = vmatpush1.msra.mxu0 0.0
          %1423 = vmatprep.subr.mxu0 0.0
          %1424 = vmatpush1.msra.mxu0 0.0
          %1425 = vmatprep.subr.mxu0 0.0
          %1426 = vmatpush1.msra.mxu0 0.0
          %1427 = vmatprep.subr.mxu0 0.0
          %1428 = vmatpush1.msra.mxu0 0.0
          %1429 = vmatprep.subr.mxu0 0.0
          %1430 = vmatpush1.msra.mxu0 0.0
          %1431 = vmatprep.subr.mxu0 0.0
          %1432 = vmatpush1.msra.mxu0 0.0
          %1433 = vmatprep.subr.mxu0 0.0
          %1434 = vmatpush1.msra.mxu0 0.0
          %1435 = vmatprep.subr.mxu0 0.0
          %1436 = vmatpush1.msra.mxu0 0.0
          %1437 = vmatprep.subr.mxu0 0.0
          %1438 = vmatpush1.msra.mxu0 0.0
          %1439 = vmatprep.subr.mxu0 0.0
          %1440 = vmatpush1.msra.mxu0 0.0
          %1441 = vmatprep.mubr.f32.mxu0 0.0
          %1442 = vmatmul.mubr.f32.gmra.mrb[0].mxu0 %v1224
          %v1443 = vpop.f32.mrb[0].mxu0
          %v1444 = vadd.f32 %v1376, %v1443
          %v1445 = vpop.f32.mrb[0].mxu0
          %1446 = vdwg.mxu0
          %1447 = vst.msk [vmem:[#allocation2 + $0x2] sm:$0x1] %vm1296, %v1444
          %s1448 = scalar_lea.vmem %s2, 48
          %v1449 = vld [vmem:[%s1448] sm:$0xff]
          %v1450 = vld [vmem:[%s1448 + $0x8] sm:$0xff]
          %v1451 = vld [vmem:[#allocation4 + $0x3] sm:$0x1]
          %1452 = vmatprep.subr.mxu0 0.0
          %1453 = vmatpush1.msra.mxu0 %v1449
          %1454 = vmatprep.subr.mxu0 0.0
          %1455 = vmatpush1.msra.mxu0 %v1450
          %1456 = vmatprep.subr.mxu0 0.0
          %1457 = vmatpush1.msra.mxu0 0.0
          %1458 = vmatprep.subr.mxu0 0.0
          %1459 = vmatpush1.msra.mxu0 0.0
          %1460 = vmatprep.subr.mxu0 0.0
          %1461 = vmatpush1.msra.mxu0 0.0
          %1462 = vmatprep.subr.mxu0 0.0
          %1463 = vmatpush1.msra.mxu0 0.0
          %1464 = vmatprep.subr.mxu0 0.0
          %1465 = vmatpush1.msra.mxu0 0.0
          %1466 = vmatprep.subr.mxu0 0.0
          %1467 = vmatpush1.msra.mxu0 0.0
          %1468 = vmatprep.subr.mxu0 0.0
          %1469 = vmatpush1.msra.mxu0 0.0
          %1470 = vmatprep.subr.mxu0 0.0
          %1471 = vmatpush1.msra.mxu0 0.0
          %1472 = vmatprep.subr.mxu0 0.0
          %1473 = vmatpush1.msra.mxu0 0.0
          %1474 = vmatprep.subr.mxu0 0.0
          %1475 = vmatpush1.msra.mxu0 0.0
          %1476 = vmatprep.subr.mxu0 0.0
          %1477 = vmatpush1.msra.mxu0 0.0
          %1478 = vmatprep.subr.mxu0 0.0
          %1479 = vmatpush1.msra.mxu0 0.0
          %1480 = vmatprep.subr.mxu0 0.0
          %1481 = vmatpush1.msra.mxu0 0.0
          %1482 = vmatprep.subr.mxu0 0.0
          %1483 = vmatpush1.msra.mxu0 0.0
          %1484 = vmatprep.subr.mxu0 0.0
          %1485 = vmatpush1.msra.mxu0 0.0
          %1486 = vmatprep.subr.mxu0 0.0
          %1487 = vmatpush1.msra.mxu0 0.0
          %1488 = vmatprep.subr.mxu0 0.0
          %1489 = vmatpush1.msra.mxu0 0.0
          %1490 = vmatprep.subr.mxu0 0.0
          %1491 = vmatpush1.msra.mxu0 0.0
          %1492 = vmatprep.subr.mxu0 0.0
          %1493 = vmatpush1.msra.mxu0 0.0
          %1494 = vmatprep.subr.mxu0 0.0
          %1495 = vmatpush1.msra.mxu0 0.0
          %1496 = vmatprep.subr.mxu0 0.0
          %1497 = vmatpush1.msra.mxu0 0.0
          %1498 = vmatprep.subr.mxu0 0.0
          %1499 = vmatpush1.msra.mxu0 0.0
          %1500 = vmatprep.subr.mxu0 0.0
          %1501 = vmatpush1.msra.mxu0 0.0
          %1502 = vmatprep.subr.mxu0 0.0
          %1503 = vmatpush1.msra.mxu0 0.0
          %1504 = vmatprep.subr.mxu0 0.0
          %1505 = vmatpush1.msra.mxu0 0.0
          %1506 = vmatprep.subr.mxu0 0.0
          %1507 = vmatpush1.msra.mxu0 0.0
          %1508 = vmatprep.subr.mxu0 0.0
          %1509 = vmatpush1.msra.mxu0 0.0
          %1510 = vmatprep.subr.mxu0 0.0
          %1511 = vmatpush1.msra.mxu0 0.0
          %1512 = vmatprep.subr.mxu0 0.0
          %1513 = vmatpush1.msra.mxu0 0.0
          %1514 = vmatprep.subr.mxu0 0.0
          %1515 = vmatpush1.msra.mxu0 0.0
          %1516 = vmatprep.mubr.f32.mxu0 0.0
          %1517 = vmatmul.mubr.f32.gmra.mrb[0].mxu0 %v1224
          %v1518 = vpop.f32.mrb[0].mxu0
          %v1519 = vadd.f32 %v1451, %v1518
          %v1520 = vpop.f32.mrb[0].mxu0
          %1521 = vdwg.mxu0
          %1522 = vst.msk [vmem:[#allocation2 + $0x3] sm:$0x1] %vm1296, %v1519
          %s1523 = scalar_lea.vmem %s2, 64
          %v1524 = vld [vmem:[%s1523] sm:$0xff]
          %v1525 = vld [vmem:[%s1523 + $0x8] sm:$0xff]
          %v1526 = vld [vmem:[#allocation4 + $0x4] sm:$0x1]
          %1527 = vmatprep.subr.mxu0 0.0
          %1528 = vmatpush1.msra.mxu0 %v1524
          %1529 = vmatprep.subr.mxu0 0.0
          %1530 = vmatpush1.msra.mxu0 %v1525
          %1531 = vmatprep.subr.mxu0 0.0
          %1532 = vmatpush1.msra.mxu0 0.0
          %1533 = vmatprep.subr.mxu0 0.0
          %1534 = vmatpush1.msra.mxu0 0.0
          %1535 = vmatprep.subr.mxu0 0.0
          %1536 = vmatpush1.msra.mxu0 0.0
          %1537 = vmatprep.subr.mxu0 0.0
          %1538 = vmatpush1.msra.mxu0 0.0
          %1539 = vmatprep.subr.mxu0 0.0
          %1540 = vmatpush1.msra.mxu0 0.0
          %1541 = vmatprep.subr.mxu0 0.0
          %1542 = vmatpush1.msra.mxu0 0.0
          %1543 = vmatprep.subr.mxu0 0.0
          %1544 = vmatpush1.msra.mxu0 0.0
          %1545 = vmatprep.subr.mxu0 0.0
          %1546 = vmatpush1.msra.mxu0 0.0
          %1547 = vmatprep.subr.mxu0 0.0
          %1548 = vmatpush1.msra.mxu0 0.0
          %1549 = vmatprep.subr.mxu0 0.0
          %1550 = vmatpush1.msra.mxu0 0.0
          %1551 = vmatprep.subr.mxu0 0.0
          %1552 = vmatpush1.msra.mxu0 0.0
          %1553 = vmatprep.subr.mxu0 0.0
          %1554 = vmatpush1.msra.mxu0 0.0
          %1555 = vmatprep.subr.mxu0 0.0
          %1556 = vmatpush1.msra.mxu0 0.0
          %1557 = vmatprep.subr.mxu0 0.0
          %1558 = vmatpush1.msra.mxu0 0.0
          %1559 = vmatprep.subr.mxu0 0.0
          %1560 = vmatpush1.msra.mxu0 0.0
          %1561 = vmatprep.subr.mxu0 0.0
          %1562 = vmatpush1.msra.mxu0 0.0
          %1563 = vmatprep.subr.mxu0 0.0
          %1564 = vmatpush1.msra.mxu0 0.0
          %1565 = vmatprep.subr.mxu0 0.0
          %1566 = vmatpush1.msra.mxu0 0.0
          %1567 = vmatprep.subr.mxu0 0.0
          %1568 = vmatpush1.msra.mxu0 0.0
          %1569 = vmatprep.subr.mxu0 0.0
          %1570 = vmatpush1.msra.mxu0 0.0
          %1571 = vmatprep.subr.mxu0 0.0
          %1572 = vmatpush1.msra.mxu0 0.0
          %1573 = vmatprep.subr.mxu0 0.0
          %1574 = vmatpush1.msra.mxu0 0.0
          %1575 = vmatprep.subr.mxu0 0.0
          %1576 = vmatpush1.msra.mxu0 0.0
          %1577 = vmatprep.subr.mxu0 0.0
          %1578 = vmatpush1.msra.mxu0 0.0
          %1579 = vmatprep.subr.mxu0 0.0
          %1580 = vmatpush1.msra.mxu0 0.0
          %1581 = vmatprep.subr.mxu0 0.0
          %1582 = vmatpush1.msra.mxu0 0.0
          %1583 = vmatprep.subr.mxu0 0.0
          %1584 = vmatpush1.msra.mxu0 0.0
          %1585 = vmatprep.subr.mxu0 0.0
          %1586 = vmatpush1.msra.mxu0 0.0
          %1587 = vmatprep.subr.mxu0 0.0
          %1588 = vmatpush1.msra.mxu0 0.0
          %1589 = vmatprep.subr.mxu0 0.0
          %1590 = vmatpush1.msra.mxu0 0.0
          %1591 = vmatprep.mubr.f32.mxu0 0.0
          %1592 = vmatmul.mubr.f32.gmra.mrb[0].mxu0 %v1224
          %v1593 = vpop.f32.mrb[0].mxu0
          %v1594 = vadd.f32 %v1526, %v1593
          %v1595 = vpop.f32.mrb[0].mxu0
          %1596 = vdwg.mxu0
          %1597 = vst.msk [vmem:[#allocation2 + $0x4] sm:$0x1] %vm1296, %v1594
          %s1598 = scalar_lea.vmem %s2, 80
          %v1599 = vld [vmem:[%s1598] sm:$0xff]
          %v1600 = vld [vmem:[%s1598 + $0x8] sm:$0xff]
          %v1601 = vld [vmem:[#allocation4 + $0x5] sm:$0x1]
          %1602 = vmatprep.subr.mxu0 0.0
          %1603 = vmatpush1.msra.mxu0 %v1599
          %1604 = vmatprep.subr.mxu0 0.0
          %1605 = vmatpush1.msra.mxu0 %v1600
          %1606 = vmatprep.subr.mxu0 0.0
          %1607 = vmatpush1.msra.mxu0 0.0
          %1608 = vmatprep.subr.mxu0 0.0
          %1609 = vmatpush1.msra.mxu0 0.0
          %1610 = vmatprep.subr.mxu0 0.0
          %1611 = vmatpush1.msra.mxu0 0.0
          %1612 = vmatprep.subr.mxu0 0.0
          %1613 = vmatpush1.msra.mxu0 0.0
          %1614 = vmatprep.subr.mxu0 0.0
          %1615 = vmatpush1.msra.mxu0 0.0
          %1616 = vmatprep.subr.mxu0 0.0
          %1617 = vmatpush1.msra.mxu0 0.0
          %1618 = vmatprep.subr.mxu0 0.0
          %1619 = vmatpush1.msra.mxu0 0.0
          %1620 = vmatprep.subr.mxu0 0.0
          %1621 = vmatpush1.msra.mxu0 0.0
          %1622 = vmatprep.subr.mxu0 0.0
          %1623 = vmatpush1.msra.mxu0 0.0
          %1624 = vmatprep.subr.mxu0 0.0
          %1625 = vmatpush1.msra.mxu0 0.0
          %1626 = vmatprep.subr.mxu0 0.0
          %1627 = vmatpush1.msra.mxu0 0.0
          %1628 = vmatprep.subr.mxu0 0.0
          %1629 = vmatpush1.msra.mxu0 0.0
          %1630 = vmatprep.subr.mxu0 0.0
          %1631 = vmatpush1.msra.mxu0 0.0
          %1632 = vmatprep.subr.mxu0 0.0
          %1633 = vmatpush1.msra.mxu0 0.0
          %1634 = vmatprep.subr.mxu0 0.0
          %1635 = vmatpush1.msra.mxu0 0.0
          %1636 = vmatprep.subr.mxu0 0.0
          %1637 = vmatpush1.msra.mxu0 0.0
          %1638 = vmatprep.subr.mxu0 0.0
          %1639 = vmatpush1.msra.mxu0 0.0
          %1640 = vmatprep.subr.mxu0 0.0
          %1641 = vmatpush1.msra.mxu0 0.0
          %1642 = vmatprep.subr.mxu0 0.0
          %1643 = vmatpush1.msra.mxu0 0.0
          %1644 = vmatprep.subr.mxu0 0.0
          %1645 = vmatpush1.msra.mxu0 0.0
          %1646 = vmatprep.subr.mxu0 0.0
          %1647 = vmatpush1.msra.mxu0 0.0
          %1648 = vmatprep.subr.mxu0 0.0
          %1649 = vmatpush1.msra.mxu0 0.0
          %1650 = vmatprep.subr.mxu0 0.0
          %1651 = vmatpush1.msra.mxu0 0.0
          %1652 = vmatprep.subr.mxu0 0.0
          %1653 = vmatpush1.msra.mxu0 0.0
          %1654 = vmatprep.subr.mxu0 0.0
          %1655 = vmatpush1.msra.mxu0 0.0
          %1656 = vmatprep.subr.mxu0 0.0
          %1657 = vmatpush1.msra.mxu0 0.0
          %1658 = vmatprep.subr.mxu0 0.0
          %1659 = vmatpush1.msra.mxu0 0.0
          %1660 = vmatprep.subr.mxu0 0.0
          %1661 = vmatpush1.msra.mxu0 0.0
          %1662 = vmatprep.subr.mxu0 0.0
          %1663 = vmatpush1.msra.mxu0 0.0
          %1664 = vmatprep.subr.mxu0 0.0
          %1665 = vmatpush1.msra.mxu0 0.0
          %1666 = vmatprep.mubr.f32.mxu0 0.0
          %1667 = vmatmul.mubr.f32.gmra.mrb[0].mxu0 %v1224
          %v1668 = vpop.f32.mrb[0].mxu0
          %v1669 = vadd.f32 %v1601, %v1668
          %v1670 = vpop.f32.mrb[0].mxu0
          %1671 = vdwg.mxu0
          %1672 = vst.msk [vmem:[#allocation2 + $0x5] sm:$0x1] %vm1296, %v1669
          %s1673 = scalar_lea.vmem %s2, 96
          %v1674 = vld [vmem:[%s1673] sm:$0xff]
          %v1675 = vld [vmem:[%s1673 + $0x8] sm:$0xff]
          %v1676 = vld [vmem:[#allocation4 + $0x6] sm:$0x1]
          %1677 = vmatprep.subr.mxu0 0.0
          %1678 = vmatpush1.msra.mxu0 %v1674
          %1679 = vmatprep.subr.mxu0 0.0
          %1680 = vmatpush1.msra.mxu0 %v1675
          %1681 = vmatprep.subr.mxu0 0.0
          %1682 = vmatpush1.msra.mxu0 0.0
          %1683 = vmatprep.subr.mxu0 0.0
          %1684 = vmatpush1.msra.mxu0 0.0
          %1685 = vmatprep.subr.mxu0 0.0
          %1686 = vmatpush1.msra.mxu0 0.0
          %1687 = vmatprep.subr.mxu0 0.0
          %1688 = vmatpush1.msra.mxu0 0.0
          %1689 = vmatprep.subr.mxu0 0.0
          %1690 = vmatpush1.msra.mxu0 0.0
          %1691 = vmatprep.subr.mxu0 0.0
          %1692 = vmatpush1.msra.mxu0 0.0
          %1693 = vmatprep.subr.mxu0 0.0
          %1694 = vmatpush1.msra.mxu0 0.0
          %1695 = vmatprep.subr.mxu0 0.0
          %1696 = vmatpush1.msra.mxu0 0.0
          %1697 = vmatprep.subr.mxu0 0.0
          %1698 = vmatpush1.msra.mxu0 0.0
          %1699 = vmatprep.subr.mxu0 0.0
          %1700 = vmatpush1.msra.mxu0 0.0
          %1701 = vmatprep.subr.mxu0 0.0
          %1702 = vmatpush1.msra.mxu0 0.0
          %1703 = vmatprep.subr.mxu0 0.0
          %1704 = vmatpush1.msra.mxu0 0.0
          %1705 = vmatprep.subr.mxu0 0.0
          %1706 = vmatpush1.msra.mxu0 0.0
          %1707 = vmatprep.subr.mxu0 0.0
          %1708 = vmatpush1.msra.mxu0 0.0
          %1709 = vmatprep.subr.mxu0 0.0
          %1710 = vmatpush1.msra.mxu0 0.0
          %1711 = vmatprep.subr.mxu0 0.0
          %1712 = vmatpush1.msra.mxu0 0.0
          %1713 = vmatprep.subr.mxu0 0.0
          %1714 = vmatpush1.msra.mxu0 0.0
          %1715 = vmatprep.subr.mxu0 0.0
          %1716 = vmatpush1.msra.mxu0 0.0
          %1717 = vmatprep.subr.mxu0 0.0
          %1718 = vmatpush1.msra.mxu0 0.0
          %1719 = vmatprep.subr.mxu0 0.0
          %1720 = vmatpush1.msra.mxu0 0.0
          %1721 = vmatprep.subr.mxu0 0.0
          %1722 = vmatpush1.msra.mxu0 0.0
          %1723 = vmatprep.subr.mxu0 0.0
          %1724 = vmatpush1.msra.mxu0 0.0
          %1725 = vmatprep.subr.mxu0 0.0
          %1726 = vmatpush1.msra.mxu0 0.0
          %1727 = vmatprep.subr.mxu0 0.0
          %1728 = vmatpush1.msra.mxu0 0.0
          %1729 = vmatprep.subr.mxu0 0.0
          %1730 = vmatpush1.msra.mxu0 0.0
          %1731 = vmatprep.subr.mxu0 0.0
          %1732 = vmatpush1.msra.mxu0 0.0
          %1733 = vmatprep.subr.mxu0 0.0
          %1734 = vmatpush1.msra.mxu0 0.0
          %1735 = vmatprep.subr.mxu0 0.0
          %1736 = vmatpush1.msra.mxu0 0.0
          %1737 = vmatprep.subr.mxu0 0.0
          %1738 = vmatpush1.msra.mxu0 0.0
          %1739 = vmatprep.subr.mxu0 0.0
          %1740 = vmatpush1.msra.mxu0 0.0
          %1741 = vmatprep.mubr.f32.mxu0 0.0
          %1742 = vmatmul.mubr.f32.gmra.mrb[0].mxu0 %v1224
          %v1743 = vpop.f32.mrb[0].mxu0
          %v1744 = vadd.f32 %v1676, %v1743
          %v1745 = vpop.f32.mrb[0].mxu0
          %1746 = vdwg.mxu0
          %1747 = vst.msk [vmem:[#allocation2 + $0x6] sm:$0x1] %vm1296, %v1744
          %s1748 = scalar_lea.vmem %s2, 112
          %v1749 = vld [vmem:[%s1748] sm:$0xff]
          %v1750 = vld [vmem:[%s1748 + $0x8] sm:$0xff]
          %v1751 = vld [vmem:[#allocation4 + $0x7] sm:$0x1]
          %1752 = vmatprep.subr.mxu0 0.0
          %1753 = vmatpush1.msra.mxu0 %v1749
          %1754 = vmatprep.subr.mxu0 0.0
          %1755 = vmatpush1.msra.mxu0 %v1750
          %1756 = vmatprep.subr.mxu0 0.0
          %1757 = vmatpush1.msra.mxu0 0.0
          %1758 = vmatprep.subr.mxu0 0.0
          %1759 = vmatpush1.msra.mxu0 0.0
          %1760 = vmatprep.subr.mxu0 0.0
          %1761 = vmatpush1.msra.mxu0 0.0
          %1762 = vmatprep.subr.mxu0 0.0
          %1763 = vmatpush1.msra.mxu0 0.0
          %1764 = vmatprep.subr.mxu0 0.0
          %1765 = vmatpush1.msra.mxu0 0.0
          %1766 = vmatprep.subr.mxu0 0.0
          %1767 = vmatpush1.msra.mxu0 0.0
          %1768 = vmatprep.subr.mxu0 0.0
          %1769 = vmatpush1.msra.mxu0 0.0
          %1770 = vmatprep.subr.mxu0 0.0
          %1771 = vmatpush1.msra.mxu0 0.0
          %1772 = vmatprep.subr.mxu0 0.0
          %1773 = vmatpush1.msra.mxu0 0.0
          %1774 = vmatprep.subr.mxu0 0.0
          %1775 = vmatpush1.msra.mxu0 0.0
          %1776 = vmatprep.subr.mxu0 0.0
          %1777 = vmatpush1.msra.mxu0 0.0
          %1778 = vmatprep.subr.mxu0 0.0
          %1779 = vmatpush1.msra.mxu0 0.0
          %1780 = vmatprep.subr.mxu0 0.0
          %1781 = vmatpush1.msra.mxu0 0.0
          %1782 = vmatprep.subr.mxu0 0.0
          %1783 = vmatpush1.msra.mxu0 0.0
          %1784 = vmatprep.subr.mxu0 0.0
          %1785 = vmatpush1.msra.mxu0 0.0
          %1786 = vmatprep.subr.mxu0 0.0
          %1787 = vmatpush1.msra.mxu0 0.0
          %1788 = vmatprep.subr.mxu0 0.0
          %1789 = vmatpush1.msra.mxu0 0.0
          %1790 = vmatprep.subr.mxu0 0.0
          %1791 = vmatpush1.msra.mxu0 0.0
          %1792 = vmatprep.subr.mxu0 0.0
          %1793 = vmatpush1.msra.mxu0 0.0
          %1794 = vmatprep.subr.mxu0 0.0
          %1795 = vmatpush1.msra.mxu0 0.0
          %1796 = vmatprep.subr.mxu0 0.0
          %1797 = vmatpush1.msra.mxu0 0.0
          %1798 = vmatprep.subr.mxu0 0.0
          %1799 = vmatpush1.msra.mxu0 0.0
          %1800 = vmatprep.subr.mxu0 0.0
          %1801 = vmatpush1.msra.mxu0 0.0
          %1802 = vmatprep.subr.mxu0 0.0
          %1803 = vmatpush1.msra.mxu0 0.0
          %1804 = vmatprep.subr.mxu0 0.0
          %1805 = vmatpush1.msra.mxu0 0.0
          %1806 = vmatprep.subr.mxu0 0.0
          %1807 = vmatpush1.msra.mxu0 0.0
          %1808 = vmatprep.subr.mxu0 0.0
          %1809 = vmatpush1.msra.mxu0 0.0
          %1810 = vmatprep.subr.mxu0 0.0
          %1811 = vmatpush1.msra.mxu0 0.0
          %1812 = vmatprep.subr.mxu0 0.0
          %1813 = vmatpush1.msra.mxu0 0.0
          %1814 = vmatprep.subr.mxu0 0.0
          %1815 = vmatpush1.msra.mxu0 0.0
          %1816 = vmatprep.mubr.f32.mxu0 0.0
          %1817 = vmatmul.mubr.f32.gmra.mrb[0].mxu0 %v1224
          %v1818 = vpop.f32.mrb[0].mxu0
          %v1819 = vadd.f32 %v1751, %v1818
          %v1820 = vpop.f32.mrb[0].mxu0
          %1821 = vdwg.mxu0
          %1822 = vst.msk [vmem:[#allocation2 + $0x7] sm:$0x1] %vm1296, %v1819
        $region160: #{tpu_custom_call.1} parent=107 // pred_fallthru
          _
        %v1823 = vld [vmem:[#allocation2] sm:$0xff]
        %v1824 = vld [vmem:[%s1189] sm:$0x1]
        %v1825 = vld [vmem:[%s1192] sm:$0x1]
        %vm1826 = vcmask 261120
        %v1827 = vsel %vm1826, %v1823, 0.0
        %1828 = vadd.xlane.f32.xlu0 %v1827
        %v1829 = vpop.xlane.xlu0 %1828
        %v1830 = vrcp.pop 32.0
        %v1831 = vmul.f32 %v1829, %v1830
        %v1832 = vsub.f32 %v1823, %v1831
        %v1833 = vmul.f32 %v1832, %v1832
        %v1834 = vsel %vm1826, %v1833, 0.0
        %1835 = vadd.xlane.f32.xlu0 %v1834
        %v1836 = vpop.xlane.xlu0 %1835
        %v1837 = vrcp.pop 31.0
        %v1838 = vmul.f32 %v1836, %v1837
        %v1840 = vlaneseq
        %v1841 = vshrl.u32 %v1840, 7
        %v1842 = vsub.s32 0, %v1841
        %v1843 = vrot.slane %v1824, %v1842
        %v1845 = vmul.f32 %v1843, %v1832
        %v1846 = vrsqrt.pop %v1838
        %v1847 = vmul.f32 %v1838, %v1846
        %vm1848 = vcmp.eq.f32.partialorder %v1838, inf
        %v1849 = vsel %vm1848, %v1838, %v1847
        %vm1850 = vcmp.eq.f32.partialorder %v1838, 0.0
        %v1851 = vand.u32 %v1838, 2147483648
        %v1852 = vsel %vm1850, %v1851, %v1849
        %v1853 = vadd.f32 %v1852, 1e-06
        %v1854 = vrcp.pop %v1853
        %v1855 = vmul.f32 %v1845, %v1854
        %v1857 = vlaneseq
        %v1858 = vshrl.u32 %v1857, 7
        %v1859 = vsub.s32 0, %v1858
        %v1860 = vrot.slane %v1825, %v1859
        %v1862 = vadd.f32 %v1855, %v1860
        %v1863 = vld [vmem:[%s1035] sm:$0x1]
        %v1865 = vlaneseq
        %v1866 = vshrl.u32 %v1865, 7
        %v1867 = vsub.s32 0, %v1866
        %v1868 = vrot.slane %v1863, %v1867
        %v1870 = vadd.f32 %v1823, %v1868
        %v1871 = vld [vmem:[%s1197] sm:$0xff]
        %v1872 = vld [vmem:[%s1197 + $0x8] sm:$0xff]
        %v1873 = vld [vmem:[%s1197 + $0x10] sm:$0xff]
        %v1874 = vld [vmem:[%s1197 + $0x18] sm:$0xff]
        %v1875 = vld [vmem:[%s984] sm:$0x1]
        %v1877 = vlaneseq
        %v1878 = vshrl.u32 %v1877, 7
        %v1879 = vsub.s32 0, %v1878
        %v1880 = vrot.slane %v1875, %v1879
        %v1883 = vsel %vm1826, %v1862, 0
        %1885 = vmatprep.subr.mxu0 0.0
        %1886 = vmatpush1.msra.mxu0 %v1871
        %1887 = vmatprep.subr.mxu0 0.0
        %1888 = vmatpush1.msra.mxu0 %v1872
        %1889 = vmatprep.subr.mxu0 0.0
        %1890 = vmatpush1.msra.mxu0 %v1873
        %1891 = vmatprep.subr.mxu0 0.0
        %1892 = vmatpush1.msra.mxu0 %v1874
        %1893 = vmatprep.subr.mxu0 0.0
        %1894 = vmatpush1.msra.mxu0 0.0
        %1895 = vmatprep.subr.mxu0 0.0
        %1896 = vmatpush1.msra.mxu0 0.0
        %1897 = vmatprep.subr.mxu0 0.0
        %1898 = vmatpush1.msra.mxu0 0.0
        %1899 = vmatprep.subr.mxu0 0.0
        %1900 = vmatpush1.msra.mxu0 0.0
        %1901 = vmatprep.subr.mxu0 0.0
        %1902 = vmatpush1.msra.mxu0 0.0
        %1903 = vmatprep.subr.mxu0 0.0
        %1904 = vmatpush1.msra.mxu0 0.0
        %1905 = vmatprep.subr.mxu0 0.0
        %1906 = vmatpush1.msra.mxu0 0.0
        %1907 = vmatprep.subr.mxu0 0.0
        %1908 = vmatpush1.msra.mxu0 0.0
        %1909 = vmatprep.subr.mxu0 0.0
        %1910 = vmatpush1.msra.mxu0 0.0
        %1911 = vmatprep.subr.mxu0 0.0
        %1912 = vmatpush1.msra.mxu0 0.0
        %1913 = vmatprep.subr.mxu0 0.0
        %1914 = vmatpush1.msra.mxu0 0.0
        %1915 = vmatprep.subr.mxu0 0.0
        %1916 = vmatpush1.msra.mxu0 0.0
        %1917 = vmatprep.subr.mxu0 0.0
        %1918 = vmatpush1.msra.mxu0 0.0
        %1919 = vmatprep.subr.mxu0 0.0
        %1920 = vmatpush1.msra.mxu0 0.0
        %1921 = vmatprep.subr.mxu0 0.0
        %1922 = vmatpush1.msra.mxu0 0.0
        %1923 = vmatprep.subr.mxu0 0.0
        %1924 = vmatpush1.msra.mxu0 0.0
        %1925 = vmatprep.subr.mxu0 0.0
        %1926 = vmatpush1.msra.mxu0 0.0
        %1927 = vmatprep.subr.mxu0 0.0
        %1928 = vmatpush1.msra.mxu0 0.0
        %1929 = vmatprep.subr.mxu0 0.0
        %1930 = vmatpush1.msra.mxu0 0.0
        %1931 = vmatprep.subr.mxu0 0.0
        %1932 = vmatpush1.msra.mxu0 0.0
        %1933 = vmatprep.subr.mxu0 0.0
        %1934 = vmatpush1.msra.mxu0 0.0
        %1935 = vmatprep.subr.mxu0 0.0
        %1936 = vmatpush1.msra.mxu0 0.0
        %1937 = vmatprep.subr.mxu0 0.0
        %1938 = vmatpush1.msra.mxu0 0.0
        %1939 = vmatprep.subr.mxu0 0.0
        %1940 = vmatpush1.msra.mxu0 0.0
        %1941 = vmatprep.subr.mxu0 0.0
        %1942 = vmatpush1.msra.mxu0 0.0
        %1943 = vmatprep.subr.mxu0 0.0
        %1944 = vmatpush1.msra.mxu0 0.0
        %1945 = vmatprep.subr.mxu0 0.0
        %1946 = vmatpush1.msra.mxu0 0.0
        %1947 = vmatprep.subr.mxu0 0.0
        %1948 = vmatpush1.msra.mxu0 0.0
        %1949 = vmatprep.mubr.f32.mxu0 0.0
        %1950 = vmatmul.mubr.f32.gmra.mrb[0].mxu0 %v1883
        %v1951 = vpop.f32.mrb[0].mxu0
        %v1952 = vadd.f32 %v1880, %v1951
        %v1953 = vpop.f32.mrb[0].mxu0
        %1954 = vdwg.mxu0
        %v1955 = vld [vmem:[%s993] sm:$0xff]
        %v1956 = vld [vmem:[%s993 + $0x8] sm:$0xff]
        %v1957 = vld [vmem:[%s993 + $0x10] sm:$0xff]
        %v1958 = vld [vmem:[%s993 + $0x18] sm:$0xff]
        %v1959 = vld [vmem:[%s1001] sm:$0x1]
        %v1961 = vlaneseq
        %v1962 = vshrl.u32 %v1961, 7
        %v1963 = vsub.s32 0, %v1962
        %v1964 = vrot.slane %v1959, %v1963
        %1966 = vmatprep.subr.mxu0 0.0
        %1967 = vmatpush1.msra.mxu0 %v1955
        %1968 = vmatprep.subr.mxu0 0.0
        %1969 = vmatpush1.msra.mxu0 %v1956
        %1970 = vmatprep.subr.mxu0 0.0
        %1971 = vmatpush1.msra.mxu0 %v1957
        %1972 = vmatprep.subr.mxu0 0.0
        %1973 = vmatpush1.msra.mxu0 %v1958
        %1974 = vmatprep.subr.mxu0 0.0
        %1975 = vmatpush1.msra.mxu0 0.0
        %1976 = vmatprep.subr.mxu0 0.0
        %1977 = vmatpush1.msra.mxu0 0.0
        %1978 = vmatprep.subr.mxu0 0.0
        %1979 = vmatpush1.msra.mxu0 0.0
        %1980 = vmatprep.subr.mxu0 0.0
        %1981 = vmatpush1.msra.mxu0 0.0
        %1982 = vmatprep.subr.mxu0 0.0
        %1983 = vmatpush1.msra.mxu0 0.0
        %1984 = vmatprep.subr.mxu0 0.0
        %1985 = vmatpush1.msra.mxu0 0.0
        %1986 = vmatprep.subr.mxu0 0.0
        %1987 = vmatpush1.msra.mxu0 0.0
        %1988 = vmatprep.subr.mxu0 0.0
        %1989 = vmatpush1.msra.mxu0 0.0
        %1990 = vmatprep.subr.mxu0 0.0
        %1991 = vmatpush1.msra.mxu0 0.0
        %1992 = vmatprep.subr.mxu0 0.0
        %1993 = vmatpush1.msra.mxu0 0.0
        %1994 = vmatprep.subr.mxu0 0.0
        %1995 = vmatpush1.msra.mxu0 0.0
        %1996 = vmatprep.subr.mxu0 0.0
        %1997 = vmatpush1.msra.mxu0 0.0
        %1998 = vmatprep.subr.mxu0 0.0
        %1999 = vmatpush1.msra.mxu0 0.0
        %2000 = vmatprep.subr.mxu0 0.0
        %2001 = vmatpush1.msra.mxu0 0.0
        %2002 = vmatprep.subr.mxu0 0.0
        %2003 = vmatpush1.msra.mxu0 0.0
        %2004 = vmatprep.subr.mxu0 0.0
        %2005 = vmatpush1.msra.mxu0 0.0
        %2006 = vmatprep.subr.mxu0 0.0
        %2007 = vmatpush1.msra.mxu0 0.0
        %2008 = vmatprep.subr.mxu0 0.0
        %2009 = vmatpush1.msra.mxu0 0.0
        %2010 = vmatprep.subr.mxu0 0.0
        %2011 = vmatpush1.msra.mxu0 0.0
        %2012 = vmatprep.subr.mxu0 0.0
        %2013 = vmatpush1.msra.mxu0 0.0
        %2014 = vmatprep.subr.mxu0 0.0
        %2015 = vmatpush1.msra.mxu0 0.0
        %2016 = vmatprep.subr.mxu0 0.0
        %2017 = vmatpush1.msra.mxu0 0.0
        %2018 = vmatprep.subr.mxu0 0.0
        %2019 = vmatpush1.msra.mxu0 0.0
        %2020 = vmatprep.subr.mxu0 0.0
        %2021 = vmatpush1.msra.mxu0 0.0
        %2022 = vmatprep.subr.mxu0 0.0
        %2023 = vmatpush1.msra.mxu0 0.0
        %2024 = vmatprep.subr.mxu0 0.0
        %2025 = vmatpush1.msra.mxu0 0.0
        %2026 = vmatprep.subr.mxu0 0.0
        %2027 = vmatpush1.msra.mxu0 0.0
        %2028 = vmatprep.subr.mxu0 0.0
        %2029 = vmatpush1.msra.mxu0 0.0
        %2030 = vmatprep.mubr.f32.mxu0 0.0
        %2031 = vmatmul.mubr.f32.gmra.mrb[0].mxu0 %v1883
        %v2032 = vpop.f32.mrb[0].mxu0
        %v2033 = vadd.f32 %v1964, %v2032
        %v2034 = vpop.f32.mrb[0].mxu0
        %2035 = vdwg.mxu0
        %v2036 = vld [vmem:[%s1010] sm:$0xff]
        %v2037 = vld [vmem:[%s1010 + $0x8] sm:$0xff]
        %v2038 = vld [vmem:[%s1010 + $0x10] sm:$0xff]
        %v2039 = vld [vmem:[%s1010 + $0x18] sm:$0xff]
        %v2040 = vld [vmem:[%s1018] sm:$0x1]
        %v2042 = vlaneseq
        %v2043 = vshrl.u32 %v2042, 7
        %v2044 = vsub.s32 0, %v2043
        %v2045 = vrot.slane %v2040, %v2044
        %2047 = vmatprep.subr.mxu0 0.0
        %2048 = vmatpush1.msra.mxu0 %v2036
        %2049 = vmatprep.subr.mxu0 0.0
        %2050 = vmatpush1.msra.mxu0 %v2037
        %2051 = vmatprep.subr.mxu0 0.0
        %2052 = vmatpush1.msra.mxu0 %v2038
        %2053 = vmatprep.subr.mxu0 0.0
        %2054 = vmatpush1.msra.mxu0 %v2039
        %2055 = vmatprep.subr.mxu0 0.0
        %2056 = vmatpush1.msra.mxu0 0.0
        %2057 = vmatprep.subr.mxu0 0.0
        %2058 = vmatpush1.msra.mxu0 0.0
        %2059 = vmatprep.subr.mxu0 0.0
        %2060 = vmatpush1.msra.mxu0 0.0
        %2061 = vmatprep.subr.mxu0 0.0
        %2062 = vmatpush1.msra.mxu0 0.0
        %2063 = vmatprep.subr.mxu0 0.0
        %2064 = vmatpush1.msra.mxu0 0.0
        %2065 = vmatprep.subr.mxu0 0.0
        %2066 = vmatpush1.msra.mxu0 0.0
        %2067 = vmatprep.subr.mxu0 0.0
        %2068 = vmatpush1.msra.mxu0 0.0
        %2069 = vmatprep.subr.mxu0 0.0
        %2070 = vmatpush1.msra.mxu0 0.0
        %2071 = vmatprep.subr.mxu0 0.0
        %2072 = vmatpush1.msra.mxu0 0.0
        %2073 = vmatprep.subr.mxu0 0.0
        %2074 = vmatpush1.msra.mxu0 0.0
        %2075 = vmatprep.subr.mxu0 0.0
        %2076 = vmatpush1.msra.mxu0 0.0
        %2077 = vmatprep.subr.mxu0 0.0
        %2078 = vmatpush1.msra.mxu0 0.0
        %2079 = vmatprep.subr.mxu0 0.0
        %2080 = vmatpush1.msra.mxu0 0.0
        %2081 = vmatprep.subr.mxu0 0.0
        %2082 = vmatpush1.msra.mxu0 0.0
        %2083 = vmatprep.subr.mxu0 0.0
        %2084 = vmatpush1.msra.mxu0 0.0
        %2085 = vmatprep.subr.mxu0 0.0
        %2086 = vmatpush1.msra.mxu0 0.0
        %2087 = vmatprep.subr.mxu0 0.0
        %2088 = vmatpush1.msra.mxu0 0.0
        %2089 = vmatprep.subr.mxu0 0.0
        %2090 = vmatpush1.msra.mxu0 0.0
        %2091 = vmatprep.subr.mxu0 0.0
        %2092 = vmatpush1.msra.mxu0 0.0
        %2093 = vmatprep.subr.mxu0 0.0
        %2094 = vmatpush1.msra.mxu0 0.0
        %2095 = vmatprep.subr.mxu0 0.0
        %2096 = vmatpush1.msra.mxu0 0.0
        %2097 = vmatprep.subr.mxu0 0.0
        %2098 = vmatpush1.msra.mxu0 0.0
        %2099 = vmatprep.subr.mxu0 0.0
        %2100 = vmatpush1.msra.mxu0 0.0
        %2101 = vmatprep.subr.mxu0 0.0
        %2102 = vmatpush1.msra.mxu0 0.0
        %2103 = vmatprep.subr.mxu0 0.0
        %2104 = vmatpush1.msra.mxu0 0.0
        %2105 = vmatprep.subr.mxu0 0.0
        %2106 = vmatpush1.msra.mxu0 0.0
        %2107 = vmatprep.subr.mxu0 0.0
        %2108 = vmatpush1.msra.mxu0 0.0
        %2109 = vmatprep.subr.mxu0 0.0
        %2110 = vmatpush1.msra.mxu0 0.0
        %2111 = vmatprep.mubr.f32.mxu0 0.0
        %2112 = vmatmul.mubr.f32.gmra.mrb[0].mxu0 %v1883
        %v2113 = vpop.f32.mrb[0].mxu0
        %v2114 = vadd.f32 %v2045, %v2113
        %v2115 = vpop.f32.mrb[0].mxu0
        %2116 = vdwg.mxu0
        %vm2117 = vcmask 64512
        %v2119 = vsel %vm2117, %v1952, 0
        %v2122 = vsel %vm2117, %v2033, 0
        %2124 = vmatprep.subr.mxu0 0.0
        %2125 = vmatpush1.xpose.msra.mxu0 %v2122
        %2126 = vmatprep.subr.mxu0 0.0
        %2127 = vmatpush1.xpose.msra.mxu0 0.0
        %2128 = vmatprep.subr.mxu0 0.0
        %2129 = vmatpush1.xpose.msra.mxu0 0.0
        %2130 = vmatprep.subr.mxu0 0.0
        %2131 = vmatpush1.xpose.msra.mxu0 0.0
        %2132 = vmatprep.subr.mxu0 0.0
        %2133 = vmatpush1.xpose.msra.mxu0 0.0
        %2134 = vmatprep.subr.mxu0 0.0
        %2135 = vmatpush1.xpose.msra.mxu0 0.0
        %2136 = vmatprep.subr.mxu0 0.0
        %2137 = vmatpush1.xpose.msra.mxu0 0.0
        %2138 = vmatprep.subr.mxu0 0.0
        %2139 = vmatpush1.xpose.msra.mxu0 0.0
        %2140 = vmatprep.subr.mxu0 0.0
        %2141 = vmatpush1.xpose.msra.mxu0 0.0
        %2142 = vmatprep.subr.mxu0 0.0
        %2143 = vmatpush1.xpose.msra.mxu0 0.0
        %2144 = vmatprep.subr.mxu0 0.0
        %2145 = vmatpush1.xpose.msra.mxu0 0.0
        %2146 = vmatprep.subr.mxu0 0.0
        %2147 = vmatpush1.xpose.msra.mxu0 0.0
        %2148 = vmatprep.subr.mxu0 0.0
        %2149 = vmatpush1.xpose.msra.mxu0 0.0
        %2150 = vmatprep.subr.mxu0 0.0
        %2151 = vmatpush1.xpose.msra.mxu0 0.0
        %2152 = vmatprep.subr.mxu0 0.0
        %2153 = vmatpush1.xpose.msra.mxu0 0.0
        %2154 = vmatprep.subr.mxu0 0.0
        %2155 = vmatpush1.xpose.msra.mxu0 0.0
        %2156 = vmatprep.subr.mxu0 0.0
        %2157 = vmatpush1.xpose.msra.mxu0 0.0
        %2158 = vmatprep.subr.mxu0 0.0
        %2159 = vmatpush1.xpose.msra.mxu0 0.0
        %2160 = vmatprep.subr.mxu0 0.0
        %2161 = vmatpush1.xpose.msra.mxu0 0.0
        %2162 = vmatprep.subr.mxu0 0.0
        %2163 = vmatpush1.xpose.msra.mxu0 0.0
        %2164 = vmatprep.subr.mxu0 0.0
        %2165 = vmatpush1.xpose.msra.mxu0 0.0
        %2166 = vmatprep.subr.mxu0 0.0
        %2167 = vmatpush1.xpose.msra.mxu0 0.0
        %2168 = vmatprep.subr.mxu0 0.0
        %2169 = vmatpush1.xpose.msra.mxu0 0.0
        %2170 = vmatprep.subr.mxu0 0.0
        %2171 = vmatpush1.xpose.msra.mxu0 0.0
        %2172 = vmatprep.subr.mxu0 0.0
        %2173 = vmatpush1.xpose.msra.mxu0 0.0
        %2174 = vmatprep.subr.mxu0 0.0
        %2175 = vmatpush1.xpose.msra.mxu0 0.0
        %2176 = vmatprep.subr.mxu0 0.0
        %2177 = vmatpush1.xpose.msra.mxu0 0.0
        %2178 = vmatprep.subr.mxu0 0.0
        %2179 = vmatpush1.xpose.msra.mxu0 0.0
        %2180 = vmatprep.subr.mxu0 0.0
        %2181 = vmatpush1.xpose.msra.mxu0 0.0
        %2182 = vmatprep.subr.mxu0 0.0
        %2183 = vmatpush1.xpose.msra.mxu0 0.0
        %2184 = vmatprep.subr.mxu0 0.0
        %2185 = vmatpush1.xpose.msra.mxu0 0.0
        %2186 = vmatprep.subr.mxu0 0.0
        %2187 = vmatpush1.xpose.msra.mxu0 0.0
        %2188 = vmatprep.mubr.f32.mxu0 0.0
        %2189 = vmatmul.mubr.f32.gmra.mrb[0].mxu0 %v2119
        %v2190 = vpop.f32.mrb[0].mxu0
        %v2191 = vadd.f32 0.0, %v2190
        %v2192 = vpop.f32.mrb[0].mxu0
        %2193 = vdwg.mxu0
        %v2194 = vmul.f32 %v2191, 0.35355338
        %v2195 = vsel %vm2117, %v2194, -inf
        %2196 = vmax.xlane.f32.xlu0 %v2195
        %v2197 = vpop.xlane.xlu0 %2196
        %v2198 = vsub.f32 %v2194, %v2197
        %v2199 = vmul.f32 %v2198, 1.442695
        %v2200 = vpow.pop %v2199
        %v2201 = vsel %vm2117, %v2200, 0.0
        %2202 = vadd.xlane.f32.xlu0 %v2201
        %v2203 = vpop.xlane.xlu0 %2202
        %v2204 = vrcp.pop %v2203
        %v2205 = vmul.f32 %v2200, %v2204
        %2206 = vst.msk [vmem:[%s1183] sm:$0xff] %vm2117, %v2205
        %v2208 = vsel %vm2117, %v2205, 0
        %2210 = vmatprep.subr.mxu0 0.0
        %2211 = vmatpush1.msra.mxu0 %v2114
        %2212 = vmatprep.subr.mxu0 0.0
        %2213 = vmatpush1.msra.mxu0 0.0
        %2214 = vmatprep.subr.mxu0 0.0
        %2215 = vmatpush1.msra.mxu0 0.0
        %2216 = vmatprep.subr.mxu0 0.0
        %2217 = vmatpush1.msra.mxu0 0.0
        %2218 = vmatprep.subr.mxu0 0.0
        %2219 = vmatpush1.msra.mxu0 0.0
        %2220 = vmatprep.subr.mxu0 0.0
        %2221 = vmatpush1.msra.mxu0 0.0
        %2222 = vmatprep.subr.mxu0 0.0
        %2223 = vmatpush1.msra.mxu0 0.0
        %2224 = vmatprep.subr.mxu0 0.0
        %2225 = vmatpush1.msra.mxu0 0.0
        %2226 = vmatprep.subr.mxu0 0.0
        %2227 = vmatpush1.msra.mxu0 0.0
        %2228 = vmatprep.subr.mxu0 0.0
        %2229 = vmatpush1.msra.mxu0 0.0
        %2230 = vmatprep.subr.mxu0 0.0
        %2231 = vmatpush1.msra.mxu0 0.0
        %2232 = vmatprep.subr.mxu0 0.0
        %2233 = vmatpush1.msra.mxu0 0.0
        %2234 = vmatprep.subr.mxu0 0.0
        %2235 = vmatpush1.msra.mxu0 0.0
        %2236 = vmatprep.subr.mxu0 0.0
        %2237 = vmatpush1.msra.mxu0 0.0
        %2238 = vmatprep.subr.mxu0 0.0
        %2239 = vmatpush1.msra.mxu0 0.0
        %2240 = vmatprep.subr.mxu0 0.0
        %2241 = vmatpush1.msra.mxu0 0.0
        %2242 = vmatprep.subr.mxu0 0.0
        %2243 = vmatpush1.msra.mxu0 0.0
        %2244 = vmatprep.subr.mxu0 0.0
        %2245 = vmatpush1.msra.mxu0 0.0
        %2246 = vmatprep.subr.mxu0 0.0
        %2247 = vmatpush1.msra.mxu0 0.0
        %2248 = vmatprep.subr.mxu0 0.0
        %2249 = vmatpush1.msra.mxu0 0.0
        %2250 = vmatprep.subr.mxu0 0.0
        %2251 = vmatpush1.msra.mxu0 0.0
        %2252 = vmatprep.subr.mxu0 0.0
        %2253 = vmatpush1.msra.mxu0 0.0
        %2254 = vmatprep.subr.mxu0 0.0
        %2255 = vmatpush1.msra.mxu0 0.0
        %2256 = vmatprep.subr.mxu0 0.0
        %2257 = vmatpush1.msra.mxu0 0.0
        %2258 = vmatprep.subr.mxu0 0.0
        %2259 = vmatpush1.msra.mxu0 0.0
        %2260 = vmatprep.subr.mxu0 0.0
        %2261 = vmatpush1.msra.mxu0 0.0
        %2262 = vmatprep.subr.mxu0 0.0
        %2263 = vmatpush1.msra.mxu0 0.0
        %2264 = vmatprep.subr.mxu0 0.0
        %2265 = vmatpush1.msra.mxu0 0.0
        %2266 = vmatprep.subr.mxu0 0.0
        %2267 = vmatpush1.msra.mxu0 0.0
        %2268 = vmatprep.subr.mxu0 0.0
        %2269 = vmatpush1.msra.mxu0 0.0
        %2270 = vmatprep.subr.mxu0 0.0
        %2271 = vmatpush1.msra.mxu0 0.0
        %2272 = vmatprep.subr.mxu0 0.0
        %2273 = vmatpush1.msra.mxu0 0.0
        %2274 = vmatprep.mubr.f32.mxu0 0.0
        %2275 = vmatmul.mubr.f32.gmra.mrb[0].mxu0 %v2208
        %v2276 = vpop.f32.mrb[0].mxu0
        %v2277 = vadd.f32 0.0, %v2276
        %v2278 = vpop.f32.mrb[0].mxu0
        %2279 = vdwg.mxu0
        %v2280 = vld [vmem:[%s1027] sm:$0xff]
        %v2282 = vsel %vm2117, %v2277, 0
        %2284 = vmatprep.subr.mxu0 0.0
        %2285 = vmatpush1.msra.mxu0 %v2280
        %2286 = vmatprep.subr.mxu0 0.0
        %2287 = vmatpush1.msra.mxu0 0.0
        %2288 = vmatprep.subr.mxu0 0.0
        %2289 = vmatpush1.msra.mxu0 0.0
        %2290 = vmatprep.subr.mxu0 0.0
        %2291 = vmatpush1.msra.mxu0 0.0
        %2292 = vmatprep.subr.mxu0 0.0
        %2293 = vmatpush1.msra.mxu0 0.0
        %2294 = vmatprep.subr.mxu0 0.0
        %2295 = vmatpush1.msra.mxu0 0.0
        %2296 = vmatprep.subr.mxu0 0.0
        %2297 = vmatpush1.msra.mxu0 0.0
        %2298 = vmatprep.subr.mxu0 0.0
        %2299 = vmatpush1.msra.mxu0 0.0
        %2300 = vmatprep.subr.mxu0 0.0
        %2301 = vmatpush1.msra.mxu0 0.0
        %2302 = vmatprep.subr.mxu0 0.0
        %2303 = vmatpush1.msra.mxu0 0.0
        %2304 = vmatprep.subr.mxu0 0.0
        %2305 = vmatpush1.msra.mxu0 0.0
        %2306 = vmatprep.subr.mxu0 0.0
        %2307 = vmatpush1.msra.mxu0 0.0
        %2308 = vmatprep.subr.mxu0 0.0
        %2309 = vmatpush1.msra.mxu0 0.0
        %2310 = vmatprep.subr.mxu0 0.0
        %2311 = vmatpush1.msra.mxu0 0.0
        %2312 = vmatprep.subr.mxu0 0.0
        %2313 = vmatpush1.msra.mxu0 0.0
        %2314 = vmatprep.subr.mxu0 0.0
        %2315 = vmatpush1.msra.mxu0 0.0
        %2316 = vmatprep.subr.mxu0 0.0
        %2317 = vmatpush1.msra.mxu0 0.0
        %2318 = vmatprep.subr.mxu0 0.0
        %2319 = vmatpush1.msra.mxu0 0.0
        %2320 = vmatprep.subr.mxu0 0.0
        %2321 = vmatpush1.msra.mxu0 0.0
        %2322 = vmatprep.subr.mxu0 0.0
        %2323 = vmatpush1.msra.mxu0 0.0
        %2324 = vmatprep.subr.mxu0 0.0
        %2325 = vmatpush1.msra.mxu0 0.0
        %2326 = vmatprep.subr.mxu0 0.0
        %2327 = vmatpush1.msra.mxu0 0.0
        %2328 = vmatprep.subr.mxu0 0.0
        %2329 = vmatpush1.msra.mxu0 0.0
        %2330 = vmatprep.subr.mxu0 0.0
        %2331 = vmatpush1.msra.mxu0 0.0
        %2332 = vmatprep.subr.mxu0 0.0
        %2333 = vmatpush1.msra.mxu0 0.0
        %2334 = vmatprep.subr.mxu0 0.0
        %2335 = vmatpush1.msra.mxu0 0.0
        %2336 = vmatprep.subr.mxu0 0.0
        %2337 = vmatpush1.msra.mxu0 0.0
        %2338 = vmatprep.subr.mxu0 0.0
        %2339 = vmatpush1.msra.mxu0 0.0
        %2340 = vmatprep.subr.mxu0 0.0
        %2341 = vmatpush1.msra.mxu0 0.0
        %2342 = vmatprep.subr.mxu0 0.0
        %2343 = vmatpush1.msra.mxu0 0.0
        %2344 = vmatprep.subr.mxu0 0.0
        %2345 = vmatpush1.msra.mxu0 0.0
        %2346 = vmatprep.subr.mxu0 0.0
        %2347 = vmatpush1.msra.mxu0 0.0
        %2348 = vmatprep.mubr.f32.mxu0 0.0
        %2349 = vmatmul.mubr.f32.gmra.mrb[0].mxu0 %v2282
        %v2350 = vpop.f32.mrb[0].mxu0
        %v2351 = vadd.f32 0.0, %v2350
        %v2352 = vpop.f32.mrb[0].mxu0
        %2353 = vdwg.mxu0
        %v2354 = vadd.f32 %v1870, %v2351
        %v2355 = vld [vmem:[%s1197] sm:$0xff]
        %v2356 = vld [vmem:[%s1197 + $0x8] sm:$0xff]
        %v2357 = vld [vmem:[%s1197 + $0x10] sm:$0xff]
        %v2358 = vld [vmem:[%s1197 + $0x18] sm:$0xff]
        %v2359 = vld [vmem:[%s984] sm:$0x1]
        %v2361 = vlaneseq
        %v2362 = vshrl.u32 %v2361, 7
        %v2363 = vsub.s32 0, %v2362
        %v2364 = vrot.slane %v2359, %v2363
        %2369 = vrot.lane.b32.xlu0 %v2355, 120
        %v2370 = vpop.permute.xlu0 %2369
        %2371 = vrot.lane.b32.xlu0 %v2356, 120
        %v2372 = vpop.permute.xlu0 %2371
        %2373 = vrot.lane.b32.xlu0 %v2357, 120
        %v2374 = vpop.permute.xlu0 %2373
        %2375 = vrot.lane.b32.xlu0 %v2358, 120
        %v2376 = vpop.permute.xlu0 %2375
        %2381 = vrot.lane.b32.xlu0 %v2364, 120
        %v2382 = vpop.permute.xlu0 %2381
        %2384 = vmatprep.subr.mxu0 0.0
        %2385 = vmatpush1.msra.mxu0 %v2370
        %2386 = vmatprep.subr.mxu0 0.0
        %2387 = vmatpush1.msra.mxu0 %v2372
        %2388 = vmatprep.subr.mxu0 0.0
        %2389 = vmatpush1.msra.mxu0 %v2374
        %2390 = vmatprep.subr.mxu0 0.0
        %2391 = vmatpush1.msra.mxu0 %v2376
        %2392 = vmatprep.subr.mxu0 0.0
        %2393 = vmatpush1.msra.mxu0 0.0
        %2394 = vmatprep.subr.mxu0 0.0
        %2395 = vmatpush1.msra.mxu0 0.0
        %2396 = vmatprep.subr.mxu0 0.0
        %2397 = vmatpush1.msra.mxu0 0.0
        %2398 = vmatprep.subr.mxu0 0.0
        %2399 = vmatpush1.msra.mxu0 0.0
        %2400 = vmatprep.subr.mxu0 0.0
        %2401 = vmatpush1.msra.mxu0 0.0
        %2402 = vmatprep.subr.mxu0 0.0
        %2403 = vmatpush1.msra.mxu0 0.0
        %2404 = vmatprep.subr.mxu0 0.0
        %2405 = vmatpush1.msra.mxu0 0.0
        %2406 = vmatprep.subr.mxu0 0.0
        %2407 = vmatpush1.msra.mxu0 0.0
        %2408 = vmatprep.subr.mxu0 0.0
        %2409 = vmatpush1.msra.mxu0 0.0
        %2410 = vmatprep.subr.mxu0 0.0
        %2411 = vmatpush1.msra.mxu0 0.0
        %2412 = vmatprep.subr.mxu0 0.0
        %2413 = vmatpush1.msra.mxu0 0.0
        %2414 = vmatprep.subr.mxu0 0.0
        %2415 = vmatpush1.msra.mxu0 0.0
        %2416 = vmatprep.subr.mxu0 0.0
        %2417 = vmatpush1.msra.mxu0 0.0
        %2418 = vmatprep.subr.mxu0 0.0
        %2419 = vmatpush1.msra.mxu0 0.0
        %2420 = vmatprep.subr.mxu0 0.0
        %2421 = vmatpush1.msra.mxu0 0.0
        %2422 = vmatprep.subr.mxu0 0.0
        %2423 = vmatpush1.msra.mxu0 0.0
        %2424 = vmatprep.subr.mxu0 0.0
        %2425 = vmatpush1.msra.mxu0 0.0
        %2426 = vmatprep.subr.mxu0 0.0
        %2427 = vmatpush1.msra.mxu0 0.0
        %2428 = vmatprep.subr.mxu0 0.0
        %2429 = vmatpush1.msra.mxu0 0.0
        %2430 = vmatprep.subr.mxu0 0.0
        %2431 = vmatpush1.msra.mxu0 0.0
        %2432 = vmatprep.subr.mxu0 0.0
        %2433 = vmatpush1.msra.mxu0 0.0
        %2434 = vmatprep.subr.mxu0 0.0
        %2435 = vmatpush1.msra.mxu0 0.0
        %2436 = vmatprep.subr.mxu0 0.0
        %2437 = vmatpush1.msra.mxu0 0.0
        %2438 = vmatprep.subr.mxu0 0.0
        %2439 = vmatpush1.msra.mxu0 0.0
        %2440 = vmatprep.subr.mxu0 0.0
        %2441 = vmatpush1.msra.mxu0 0.0
        %2442 = vmatprep.subr.mxu0 0.0
        %2443 = vmatpush1.msra.mxu0 0.0
        %2444 = vmatprep.subr.mxu0 0.0
        %2445 = vmatpush1.msra.mxu0 0.0
        %2446 = vmatprep.subr.mxu0 0.0
        %2447 = vmatpush1.msra.mxu0 0.0
        %2448 = vmatprep.mubr.f32.mxu0 0.0
        %2449 = vmatmul.mubr.f32.gmra.mrb[0].mxu0 %v1883
        %v2450 = vpop.f32.mrb[0].mxu0
        %v2451 = vadd.f32 %v2382, %v2450
        %v2452 = vpop.f32.mrb[0].mxu0
        %2453 = vdwg.mxu0
        %v2454 = vld [vmem:[%s993] sm:$0xff]
        %v2455 = vld [vmem:[%s993 + $0x8] sm:$0xff]
        %v2456 = vld [vmem:[%s993 + $0x10] sm:$0xff]
        %v2457 = vld [vmem:[%s993 + $0x18] sm:$0xff]
        %v2458 = vld [vmem:[%s1001] sm:$0x1]
        %v2460 = vlaneseq
        %v2461 = vshrl.u32 %v2460, 7
        %v2462 = vsub.s32 0, %v2461
        %v2463 = vrot.slane %v2458, %v2462
        %2468 = vrot.lane.b32.xlu0 %v2454, 120
        %v2469 = vpop.permute.xlu0 %2468
        %2470 = vrot.lane.b32.xlu0 %v2455, 120
        %v2471 = vpop.permute.xlu0 %2470
        %2472 = vrot.lane.b32.xlu0 %v2456, 120
        %v2473 = vpop.permute.xlu0 %2472
        %2474 = vrot.lane.b32.xlu0 %v2457, 120
        %v2475 = vpop.permute.xlu0 %2474
        %2480 = vrot.lane.b32.xlu0 %v2463, 120
        %v2481 = vpop.permute.xlu0 %2480
        %2483 = vmatprep.subr.mxu0 0.0
        %2484 = vmatpush1.msra.mxu0 %v2469
        %2485 = vmatprep.subr.mxu0 0.0
        %2486 = vmatpush1.msra.mxu0 %v2471
        %2487 = vmatprep.subr.mxu0 0.0
        %2488 = vmatpush1.msra.mxu0 %v2473
        %2489 = vmatprep.subr.mxu0 0.0
        %2490 = vmatpush1.msra.mxu0 %v2475
        %2491 = vmatprep.subr.mxu0 0.0
        %2492 = vmatpush1.msra.mxu0 0.0
        %2493 = vmatprep.subr.mxu0 0.0
        %2494 = vmatpush1.msra.mxu0 0.0
        %2495 = vmatprep.subr.mxu0 0.0
        %2496 = vmatpush1.msra.mxu0 0.0
        %2497 = vmatprep.subr.mxu0 0.0
        %2498 = vmatpush1.msra.mxu0 0.0
        %2499 = vmatprep.subr.mxu0 0.0
        %2500 = vmatpush1.msra.mxu0 0.0
        %2501 = vmatprep.subr.mxu0 0.0
        %2502 = vmatpush1.msra.mxu0 0.0
        %2503 = vmatprep.subr.mxu0 0.0
        %2504 = vmatpush1.msra.mxu0 0.0
        %2505 = vmatprep.subr.mxu0 0.0
        %2506 = vmatpush1.msra.mxu0 0.0
        %2507 = vmatprep.subr.mxu0 0.0
        %2508 = vmatpush1.msra.mxu0 0.0
        %2509 = vmatprep.subr.mxu0 0.0
        %2510 = vmatpush1.msra.mxu0 0.0
        %2511 = vmatprep.subr.mxu0 0.0
        %2512 = vmatpush1.msra.mxu0 0.0
        %2513 = vmatprep.subr.mxu0 0.0
        %2514 = vmatpush1.msra.mxu0 0.0
        %2515 = vmatprep.subr.mxu0 0.0
        %2516 = vmatpush1.msra.mxu0 0.0
        %2517 = vmatprep.subr.mxu0 0.0
        %2518 = vmatpush1.msra.mxu0 0.0
        %2519 = vmatprep.subr.mxu0 0.0
        %2520 = vmatpush1.msra.mxu0 0.0
        %2521 = vmatprep.subr.mxu0 0.0
        %2522 = vmatpush1.msra.mxu0 0.0
        %2523 = vmatprep.subr.mxu0 0.0
        %2524 = vmatpush1.msra.mxu0 0.0
        %2525 = vmatprep.subr.mxu0 0.0
        %2526 = vmatpush1.msra.mxu0 0.0
        %2527 = vmatprep.subr.mxu0 0.0
        %2528 = vmatpush1.msra.mxu0 0.0
        %2529 = vmatprep.subr.mxu0 0.0
        %2530 = vmatpush1.msra.mxu0 0.0
        %2531 = vmatprep.subr.mxu0 0.0
        %2532 = vmatpush1.msra.mxu0 0.0
        %2533 = vmatprep.subr.mxu0 0.0
        %2534 = vmatpush1.msra.mxu0 0.0
        %2535 = vmatprep.subr.mxu0 0.0
        %2536 = vmatpush1.msra.mxu0 0.0
        %2537 = vmatprep.subr.mxu0 0.0
        %2538 = vmatpush1.msra.mxu0 0.0
        %2539 = vmatprep.subr.mxu0 0.0
        %2540 = vmatpush1.msra.mxu0 0.0
        %2541 = vmatprep.subr.mxu0 0.0
        %2542 = vmatpush1.msra.mxu0 0.0
        %2543 = vmatprep.subr.mxu0 0.0
        %2544 = vmatpush1.msra.mxu0 0.0
        %2545 = vmatprep.subr.mxu0 0.0
        %2546 = vmatpush1.msra.mxu0 0.0
        %2547 = vmatprep.mubr.f32.mxu0 0.0
        %2548 = vmatmul.mubr.f32.gmra.mrb[0].mxu0 %v1883
        %v2549 = vpop.f32.mrb[0].mxu0
        %v2550 = vadd.f32 %v2481, %v2549
        %v2551 = vpop.f32.mrb[0].mxu0
        %2552 = vdwg.mxu0
        %v2553 = vld [vmem:[%s1010] sm:$0xff]
        %v2554 = vld [vmem:[%s1010 + $0x8] sm:$0xff]
        %v2555 = vld [vmem:[%s1010 + $0x10] sm:$0xff]
        %v2556 = vld [vmem:[%s1010 + $0x18] sm:$0xff]
        %v2557 = vld [vmem:[%s1018] sm:$0x1]
        %v2559 = vlaneseq
        %v2560 = vshrl.u32 %v2559, 7
        %v2561 = vsub.s32 0, %v2560
        %v2562 = vrot.slane %v2557, %v2561
        %2567 = vrot.lane.b32.xlu0 %v2553, 120
        %v2568 = vpop.permute.xlu0 %2567
        %2569 = vrot.lane.b32.xlu0 %v2554, 120
        %v2570 = vpop.permute.xlu0 %2569
        %2571 = vrot.lane.b32.xlu0 %v2555, 120
        %v2572 = vpop.permute.xlu0 %2571
        %2573 = vrot.lane.b32.xlu0 %v2556, 120
        %v2574 = vpop.permute.xlu0 %2573
        %2579 = vrot.lane.b32.xlu0 %v2562, 120
        %v2580 = vpop.permute.xlu0 %2579
        %2582 = vmatprep.subr.mxu0 0.0
        %2583 = vmatpush1.msra.mxu0 %v2568
        %2584 = vmatprep.subr.mxu0 0.0
        %2585 = vmatpush1.msra.mxu0 %v2570
        %2586 = vmatprep.subr.mxu0 0.0
        %2587 = vmatpush1.msra.mxu0 %v2572
        %2588 = vmatprep.subr.mxu0 0.0
        %2589 = vmatpush1.msra.mxu0 %v2574
        %2590 = vmatprep.subr.mxu0 0.0
        %2591 = vmatpush1.msra.mxu0 0.0
        %2592 = vmatprep.subr.mxu0 0.0
        %2593 = vmatpush1.msra.mxu0 0.0
        %2594 = vmatprep.subr.mxu0 0.0
        %2595 = vmatpush1.msra.mxu0 0.0
        %2596 = vmatprep.subr.mxu0 0.0
        %2597 = vmatpush1.msra.mxu0 0.0
        %2598 = vmatprep.subr.mxu0 0.0
        %2599 = vmatpush1.msra.mxu0 0.0
        %2600 = vmatprep.subr.mxu0 0.0
        %2601 = vmatpush1.msra.mxu0 0.0
        %2602 = vmatprep.subr.mxu0 0.0
        %2603 = vmatpush1.msra.mxu0 0.0
        %2604 = vmatprep.subr.mxu0 0.0
        %2605 = vmatpush1.msra.mxu0 0.0
        %2606 = vmatprep.subr.mxu0 0.0
        %2607 = vmatpush1.msra.mxu0 0.0
        %2608 = vmatprep.subr.mxu0 0.0
        %2609 = vmatpush1.msra.mxu0 0.0
        %2610 = vmatprep.subr.mxu0 0.0
        %2611 = vmatpush1.msra.mxu0 0.0
        %2612 = vmatprep.subr.mxu0 0.0
        %2613 = vmatpush1.msra.mxu0 0.0
        %2614 = vmatprep.subr.mxu0 0.0
        %2615 = vmatpush1.msra.mxu0 0.0
        %2616 = vmatprep.subr.mxu0 0.0
        %2617 = vmatpush1.msra.mxu0 0.0
        %2618 = vmatprep.subr.mxu0 0.0
        %2619 = vmatpush1.msra.mxu0 0.0
        %2620 = vmatprep.subr.mxu0 0.0
        %2621 = vmatpush1.msra.mxu0 0.0
        %2622 = vmatprep.subr.mxu0 0.0
        %2623 = vmatpush1.msra.mxu0 0.0
        %2624 = vmatprep.subr.mxu0 0.0
        %2625 = vmatpush1.msra.mxu0 0.0
        %2626 = vmatprep.subr.mxu0 0.0
        %2627 = vmatpush1.msra.mxu0 0.0
        %2628 = vmatprep.subr.mxu0 0.0
        %2629 = vmatpush1.msra.mxu0 0.0
        %2630 = vmatprep.subr.mxu0 0.0
        %2631 = vmatpush1.msra.mxu0 0.0
        %2632 = vmatprep.subr.mxu0 0.0
        %2633 = vmatpush1.msra.mxu0 0.0
        %2634 = vmatprep.subr.mxu0 0.0
        %2635 = vmatpush1.msra.mxu0 0.0
        %2636 = vmatprep.subr.mxu0 0.0
        %2637 = vmatpush1.msra.mxu0 0.0
        %2638 = vmatprep.subr.mxu0 0.0
        %2639 = vmatpush1.msra.mxu0 0.0
        %2640 = vmatprep.subr.mxu0 0.0
        %2641 = vmatpush1.msra.mxu0 0.0
        %2642 = vmatprep.subr.mxu0 0.0
        %2643 = vmatpush1.msra.mxu0 0.0
        %2644 = vmatprep.subr.mxu0 0.0
        %2645 = vmatpush1.msra.mxu0 0.0
        %2646 = vmatprep.mubr.f32.mxu0 0.0
        %2647 = vmatmul.mubr.f32.gmra.mrb[0].mxu0 %v1883
        %v2648 = vpop.f32.mrb[0].mxu0
        %v2649 = vadd.f32 %v2580, %v2648
        %v2650 = vpop.f32.mrb[0].mxu0
        %2651 = vdwg.mxu0
        %v2653 = vsel %vm2117, %v2451, 0
        %v2656 = vsel %vm2117, %v2550, 0
        %2658 = vmatprep.subr.mxu0 0.0
        %2659 = vmatpush1.xpose.msra.mxu0 %v2656
        %2660 = vmatprep.subr.mxu0 0.0
        %2661 = vmatpush1.xpose.msra.mxu0 0.0
        %2662 = vmatprep.subr.mxu0 0.0
        %2663 = vmatpush1.xpose.msra.mxu0 0.0
        %2664 = vmatprep.subr.mxu0 0.0
        %2665 = vmatpush1.xpose.msra.mxu0 0.0
        %2666 = vmatprep.subr.mxu0 0.0
        %2667 = vmatpush1.xpose.msra.mxu0 0.0
        %2668 = vmatprep.subr.mxu0 0.0
        %2669 = vmatpush1.xpose.msra.mxu0 0.0
        %2670 = vmatprep.subr.mxu0 0.0
        %2671 = vmatpush1.xpose.msra.mxu0 0.0
        %2672 = vmatprep.subr.mxu0 0.0
        %2673 = vmatpush1.xpose.msra.mxu0 0.0
        %2674 = vmatprep.subr.mxu0 0.0
        %2675 = vmatpush1.xpose.msra.mxu0 0.0
        %2676 = vmatprep.subr.mxu0 0.0
        %2677 = vmatpush1.xpose.msra.mxu0 0.0
        %2678 = vmatprep.subr.mxu0 0.0
        %2679 = vmatpush1.xpose.msra.mxu0 0.0
        %2680 = vmatprep.subr.mxu0 0.0
        %2681 = vmatpush1.xpose.msra.mxu0 0.0
        %2682 = vmatprep.subr.mxu0 0.0
        %2683 = vmatpush1.xpose.msra.mxu0 0.0
        %2684 = vmatprep.subr.mxu0 0.0
        %2685 = vmatpush1.xpose.msra.mxu0 0.0
        %2686 = vmatprep.subr.mxu0 0.0
        %2687 = vmatpush1.xpose.msra.mxu0 0.0
        %2688 = vmatprep.subr.mxu0 0.0
        %2689 = vmatpush1.xpose.msra.mxu0 0.0
        %2690 = vmatprep.subr.mxu0 0.0
        %2691 = vmatpush1.xpose.msra.mxu0 0.0
        %2692 = vmatprep.subr.mxu0 0.0
        %2693 = vmatpush1.xpose.msra.mxu0 0.0
        %2694 = vmatprep.subr.mxu0 0.0
        %2695 = vmatpush1.xpose.msra.mxu0 0.0
        %2696 = vmatprep.subr.mxu0 0.0
        %2697 = vmatpush1.xpose.msra.mxu0 0.0
        %2698 = vmatprep.subr.mxu0 0.0
        %2699 = vmatpush1.xpose.msra.mxu0 0.0
        %2700 = vmatprep.subr.mxu0 0.0
        %2701 = vmatpush1.xpose.msra.mxu0 0.0
        %2702 = vmatprep.subr.mxu0 0.0
        %2703 = vmatpush1.xpose.msra.mxu0 0.0
        %2704 = vmatprep.subr.mxu0 0.0
        %2705 = vmatpush1.xpose.msra.mxu0 0.0
        %2706 = vmatprep.subr.mxu0 0.0
        %2707 = vmatpush1.xpose.msra.mxu0 0.0
        %2708 = vmatprep.subr.mxu0 0.0
        %2709 = vmatpush1.xpose.msra.mxu0 0.0
        %2710 = vmatprep.subr.mxu0 0.0
        %2711 = vmatpush1.xpose.msra.mxu0 0.0
        %2712 = vmatprep.subr.mxu0 0.0
        %2713 = vmatpush1.xpose.msra.mxu0 0.0
        %2714 = vmatprep.subr.mxu0 0.0
        %2715 = vmatpush1.xpose.msra.mxu0 0.0
        %2716 = vmatprep.subr.mxu0 0.0
        %2717 = vmatpush1.xpose.msra.mxu0 0.0
        %2718 = vmatprep.subr.mxu0 0.0
        %2719 = vmatpush1.xpose.msra.mxu0 0.0
        %2720 = vmatprep.subr.mxu0 0.0
        %2721 = vmatpush1.xpose.msra.mxu0 0.0
        %2722 = vmatprep.mubr.f32.mxu0 0.0
        %2723 = vmatmul.mubr.f32.gmra.mrb[0].mxu0 %v2653
        %v2724 = vpop.f32.mrb[0].mxu0
        %v2725 = vadd.f32 0.0, %v2724
        %v2726 = vpop.f32.mrb[0].mxu0
        %2727 = vdwg.mxu0
        %v2728 = vmul.f32 %v2725, 0.35355338
        %v2729 = vsel %vm2117, %v2728, -inf
        %2730 = vmax.xlane.f32.xlu0 %v2729
        %v2731 = vpop.xlane.xlu0 %2730
        %v2732 = vsub.f32 %v2728, %v2731
        %v2733 = vmul.f32 %v2732, 1.442695
        %v2734 = vpow.pop %v2733
        %v2735 = vsel %vm2117, %v2734, 0.0
        %2736 = vadd.xlane.f32.xlu0 %v2735
        %v2737 = vpop.xlane.xlu0 %2736
        %v2738 = vrcp.pop %v2737
        %v2739 = vmul.f32 %v2734, %v2738
        %s2740 = scalar_lea.vmem %s1183, 8 [#allocation24]
        %2741 = vst.msk [vmem:[%s2740] sm:$0xff] %vm2117, %v2739
        %v2743 = vsel %vm2117, %v2739, 0
        %2745 = vmatprep.subr.mxu0 0.0
        %2746 = vmatpush1.msra.mxu0 %v2649
        %2747 = vmatprep.subr.mxu0 0.0
        %2748 = vmatpush1.msra.mxu0 0.0
        %2749 = vmatprep.subr.mxu0 0.0
        %2750 = vmatpush1.msra.mxu0 0.0
        %2751 = vmatprep.subr.mxu0 0.0
        %2752 = vmatpush1.msra.mxu0 0.0
        %2753 = vmatprep.subr.mxu0 0.0
        %2754 = vmatpush1.msra.mxu0 0.0
        %2755 = vmatprep.subr.mxu0 0.0
        %2756 = vmatpush1.msra.mxu0 0.0
        %2757 = vmatprep.subr.mxu0 0.0
        %2758 = vmatpush1.msra.mxu0 0.0
        %2759 = vmatprep.subr.mxu0 0.0
        %2760 = vmatpush1.msra.mxu0 0.0
        %2761 = vmatprep.subr.mxu0 0.0
        %2762 = vmatpush1.msra.mxu0 0.0
        %2763 = vmatprep.subr.mxu0 0.0
        %2764 = vmatpush1.msra.mxu0 0.0
        %2765 = vmatprep.subr.mxu0 0.0
        %2766 = vmatpush1.msra.mxu0 0.0
        %2767 = vmatprep.subr.mxu0 0.0
        %2768 = vmatpush1.msra.mxu0 0.0
        %2769 = vmatprep.subr.mxu0 0.0
        %2770 = vmatpush1.msra.mxu0 0.0
        %2771 = vmatprep.subr.mxu0 0.0
        %2772 = vmatpush1.msra.mxu0 0.0
        %2773 = vmatprep.subr.mxu0 0.0
        %2774 = vmatpush1.msra.mxu0 0.0
        %2775 = vmatprep.subr.mxu0 0.0
        %2776 = vmatpush1.msra.mxu0 0.0
        %2777 = vmatprep.subr.mxu0 0.0
        %2778 = vmatpush1.msra.mxu0 0.0
        %2779 = vmatprep.subr.mxu0 0.0
        %2780 = vmatpush1.msra.mxu0 0.0
        %2781 = vmatprep.subr.mxu0 0.0
        %2782 = vmatpush1.msra.mxu0 0.0
        %2783 = vmatprep.subr.mxu0 0.0
        %2784 = vmatpush1.msra.mxu0 0.0
        %2785 = vmatprep.subr.mxu0 0.0
        %2786 = vmatpush1.msra.mxu0 0.0
        %2787 = vmatprep.subr.mxu0 0.0
        %2788 = vmatpush1.msra.mxu0 0.0
        %2789 = vmatprep.subr.mxu0 0.0
        %2790 = vmatpush1.msra.mxu0 0.0
        %2791 = vmatprep.subr.mxu0 0.0
        %2792 = vmatpush1.msra.mxu0 0.0
        %2793 = vmatprep.subr.mxu0 0.0
        %2794 = vmatpush1.msra.mxu0 0.0
        %2795 = vmatprep.subr.mxu0 0.0
        %2796 = vmatpush1.msra.mxu0 0.0
        %2797 = vmatprep.subr.mxu0 0.0
        %2798 = vmatpush1.msra.mxu0 0.0
        %2799 = vmatprep.subr.mxu0 0.0
        %2800 = vmatpush1.msra.mxu0 0.0
        %2801 = vmatprep.subr.mxu0 0.0
        %2802 = vmatpush1.msra.mxu0 0.0
        %2803 = vmatprep.subr.mxu0 0.0
        %2804 = vmatpush1.msra.mxu0 0.0
        %2805 = vmatprep.subr.mxu0 0.0
        %2806 = vmatpush1.msra.mxu0 0.0
        %2807 = vmatprep.subr.mxu0 0.0
        %2808 = vmatpush1.msra.mxu0 0.0
        %2809 = vmatprep.mubr.f32.mxu0 0.0
        %2810 = vmatmul.mubr.f32.gmra.mrb[0].mxu0 %v2743
        %v2811 = vpop.f32.mrb[0].mxu0
        %v2812 = vadd.f32 0.0, %v2811
        %v2813 = vpop.f32.mrb[0].mxu0
        %2814 = vdwg.mxu0
        %v2815 = vld [vmem:[%s1027 + $0x8] sm:$0xff]
        %v2817 = vsel %vm2117, %v2812, 0
        %2819 = vmatprep.subr.mxu0 0.0
        %2820 = vmatpush1.msra.mxu0 %v2815
        %2821 = vmatprep.subr.mxu0 0.0
        %2822 = vmatpush1.msra.mxu0 0.0
        %2823 = vmatprep.subr.mxu0 0.0
        %2824 = vmatpush1.msra.mxu0 0.0
        %2825 = vmatprep.subr.mxu0 0.0
        %2826 = vmatpush1.msra.mxu0 0.0
        %2827 = vmatprep.subr.mxu0 0.0
        %2828 = vmatpush1.msra.mxu0 0.0
        %2829 = vmatprep.subr.mxu0 0.0
        %2830 = vmatpush1.msra.mxu0 0.0
        %2831 = vmatprep.subr.mxu0 0.0
        %2832 = vmatpush1.msra.mxu0 0.0
        %2833 = vmatprep.subr.mxu0 0.0
        %2834 = vmatpush1.msra.mxu0 0.0
        %2835 = vmatprep.subr.mxu0 0.0
        %2836 = vmatpush1.msra.mxu0 0.0
        %2837 = vmatprep.subr.mxu0 0.0
        %2838 = vmatpush1.msra.mxu0 0.0
        %2839 = vmatprep.subr.mxu0 0.0
        %2840 = vmatpush1.msra.mxu0 0.0
        %2841 = vmatprep.subr.mxu0 0.0
        %2842 = vmatpush1.msra.mxu0 0.0
        %2843 = vmatprep.subr.mxu0 0.0
        %2844 = vmatpush1.msra.mxu0 0.0
        %2845 = vmatprep.subr.mxu0 0.0
        %2846 = vmatpush1.msra.mxu0 0.0
        %2847 = vmatprep.subr.mxu0 0.0
        %2848 = vmatpush1.msra.mxu0 0.0
        %2849 = vmatprep.subr.mxu0 0.0
        %2850 = vmatpush1.msra.mxu0 0.0
        %2851 = vmatprep.subr.mxu0 0.0
        %2852 = vmatpush1.msra.mxu0 0.0
        %2853 = vmatprep.subr.mxu0 0.0
        %2854 = vmatpush1.msra.mxu0 0.0
        %2855 = vmatprep.subr.mxu0 0.0
        %2856 = vmatpush1.msra.mxu0 0.0
        %2857 = vmatprep.subr.mxu0 0.0
        %2858 = vmatpush1.msra.mxu0 0.0
        %2859 = vmatprep.subr.mxu0 0.0
        %2860 = vmatpush1.msra.mxu0 0.0
        %2861 = vmatprep.subr.mxu0 0.0
        %2862 = vmatpush1.msra.mxu0 0.0
        %2863 = vmatprep.subr.mxu0 0.0
        %2864 = vmatpush1.msra.mxu0 0.0
        %2865 = vmatprep.subr.mxu0 0.0
        %2866 = vmatpush1.msra.mxu0 0.0
        %2867 = vmatprep.subr.mxu0 0.0
        %2868 = vmatpush1.msra.mxu0 0.0
        %2869 = vmatprep.subr.mxu0 0.0
        %2870 = vmatpush1.msra.mxu0 0.0
        %2871 = vmatprep.subr.mxu0 0.0
        %2872 = vmatpush1.msra.mxu0 0.0
        %2873 = vmatprep.subr.mxu0 0.0
        %2874 = vmatpush1.msra.mxu0 0.0
        %2875 = vmatprep.subr.mxu0 0.0
        %2876 = vmatpush1.msra.mxu0 0.0
        %2877 = vmatprep.subr.mxu0 0.0
        %2878 = vmatpush1.msra.mxu0 0.0
        %2879 = vmatprep.subr.mxu0 0.0
        %2880 = vmatpush1.msra.mxu0 0.0
        %2881 = vmatprep.subr.mxu0 0.0
        %2882 = vmatpush1.msra.mxu0 0.0
        %2883 = vmatprep.mubr.f32.mxu0 0.0
        %2884 = vmatmul.mubr.f32.gmra.mrb[0].mxu0 %v2817
        %v2885 = vpop.f32.mrb[0].mxu0
        %v2886 = vadd.f32 0.0, %v2885
        %v2887 = vpop.f32.mrb[0].mxu0
        %2888 = vdwg.mxu0
        %v2889 = vadd.f32 %v2354, %v2886
        %v2890 = vld [vmem:[%s1197] sm:$0xff]
        %v2891 = vld [vmem:[%s1197 + $0x8] sm:$0xff]
        %v2892 = vld [vmem:[%s1197 + $0x10] sm:$0xff]
        %v2893 = vld [vmem:[%s1197 + $0x18] sm:$0xff]
        %v2894 = vld [vmem:[%s984] sm:$0x1]
        %v2896 = vlaneseq
        %v2897 = vshrl.u32 %v2896, 7
        %v2898 = vsub.s32 0, %v2897
        %v2899 = vrot.slane %v2894, %v2898
        %2904 = vrot.lane.b32.xlu0 %v2890, 112
        %v2905 = vpop.permute.xlu0 %2904
        %2906 = vrot.lane.b32.xlu0 %v2891, 112
        %v2907 = vpop.permute.xlu0 %2906
        %2908 = vrot.lane.b32.xlu0 %v2892, 112
        %v2909 = vpop.permute.xlu0 %2908
        %2910 = vrot.lane.b32.xlu0 %v2893, 112
        %v2911 = vpop.permute.xlu0 %2910
        %2916 = vrot.lane.b32.xlu0 %v2899, 112
        %v2917 = vpop.permute.xlu0 %2916
        %2919 = vmatprep.subr.mxu0 0.0
        %2920 = vmatpush1.msra.mxu0 %v2905
        %2921 = vmatprep.subr.mxu0 0.0
        %2922 = vmatpush1.msra.mxu0 %v2907
        %2923 = vmatprep.subr.mxu0 0.0
        %2924 = vmatpush1.msra.mxu0 %v2909
        %2925 = vmatprep.subr.mxu0 0.0
        %2926 = vmatpush1.msra.mxu0 %v2911
        %2927 = vmatprep.subr.mxu0 0.0
        %2928 = vmatpush1.msra.mxu0 0.0
        %2929 = vmatprep.subr.mxu0 0.0
        %2930 = vmatpush1.msra.mxu0 0.0
        %2931 = vmatprep.subr.mxu0 0.0
        %2932 = vmatpush1.msra.mxu0 0.0
        %2933 = vmatprep.subr.mxu0 0.0
        %2934 = vmatpush1.msra.mxu0 0.0
        %2935 = vmatprep.subr.mxu0 0.0
        %2936 = vmatpush1.msra.mxu0 0.0
        %2937 = vmatprep.subr.mxu0 0.0
        %2938 = vmatpush1.msra.mxu0 0.0
        %2939 = vmatprep.subr.mxu0 0.0
        %2940 = vmatpush1.msra.mxu0 0.0
        %2941 = vmatprep.subr.mxu0 0.0
        %2942 = vmatpush1.msra.mxu0 0.0
        %2943 = vmatprep.subr.mxu0 0.0
        %2944 = vmatpush1.msra.mxu0 0.0
        %2945 = vmatprep.subr.mxu0 0.0
        %2946 = vmatpush1.msra.mxu0 0.0
        %2947 = vmatprep.subr.mxu0 0.0
        %2948 = vmatpush1.msra.mxu0 0.0
        %2949 = vmatprep.subr.mxu0 0.0
        %2950 = vmatpush1.msra.mxu0 0.0
        %2951 = vmatprep.subr.mxu0 0.0
        %2952 = vmatpush1.msra.mxu0 0.0
        %2953 = vmatprep.subr.mxu0 0.0
        %2954 = vmatpush1.msra.mxu0 0.0
        %2955 = vmatprep.subr.mxu0 0.0
        %2956 = vmatpush1.msra.mxu0 0.0
        %2957 = vmatprep.subr.mxu0 0.0
        %2958 = vmatpush1.msra.mxu0 0.0
        %2959 = vmatprep.subr.mxu0 0.0
        %2960 = vmatpush1.msra.mxu0 0.0
        %2961 = vmatprep.subr.mxu0 0.0
        %2962 = vmatpush1.msra.mxu0 0.0
        %2963 = vmatprep.subr.mxu0 0.0
        %2964 = vmatpush1.msra.mxu0 0.0
        %2965 = vmatprep.subr.mxu0 0.0
        %2966 = vmatpush1.msra.mxu0 0.0
        %2967 = vmatprep.subr.mxu0 0.0
        %2968 = vmatpush1.msra.mxu0 0.0
        %2969 = vmatprep.subr.mxu0 0.0
        %2970 = vmatpush1.msra.mxu0 0.0
        %2971 = vmatprep.subr.mxu0 0.0
        %2972 = vmatpush1.msra.mxu0 0.0
        %2973 = vmatprep.subr.mxu0 0.0
        %2974 = vmatpush1.msra.mxu0 0.0
        %2975 = vmatprep.subr.mxu0 0.0
        %2976 = vmatpush1.msra.mxu0 0.0
        %2977 = vmatprep.subr.mxu0 0.0
        %2978 = vmatpush1.msra.mxu0 0.0
        %2979 = vmatprep.subr.mxu0 0.0
        %2980 = vmatpush1.msra.mxu0 0.0
        %2981 = vmatprep.subr.mxu0 0.0
        %2982 = vmatpush1.msra.mxu0 0.0
        %2983 = vmatprep.mubr.f32.mxu0 0.0
        %2984 = vmatmul.mubr.f32.gmra.mrb[0].mxu0 %v1883
        %v2985 = vpop.f32.mrb[0].mxu0
        %v2986 = vadd.f32 %v2917, %v2985
        %v2987 = vpop.f32.mrb[0].mxu0
        %2988 = vdwg.mxu0
        %v2989 = vld [vmem:[%s993] sm:$0xff]
        %v2990 = vld [vmem:[%s993 + $0x8] sm:$0xff]
        %v2991 = vld [vmem:[%s993 + $0x10] sm:$0xff]
        %v2992 = vld [vmem:[%s993 + $0x18] sm:$0xff]
        %v2993 = vld [vmem:[%s1001] sm:$0x1]
        %v2995 = vlaneseq
        %v2996 = vshrl.u32 %v2995, 7
        %v2997 = vsub.s32 0, %v2996
        %v2998 = vrot.slane %v2993, %v2997
        %3003 = vrot.lane.b32.xlu0 %v2989, 112
        %v3004 = vpop.permute.xlu0 %3003
        %3005 = vrot.lane.b32.xlu0 %v2990, 112
        %v3006 = vpop.permute.xlu0 %3005
        %3007 = vrot.lane.b32.xlu0 %v2991, 112
        %v3008 = vpop.permute.xlu0 %3007
        %3009 = vrot.lane.b32.xlu0 %v2992, 112
        %v3010 = vpop.permute.xlu0 %3009
        %3015 = vrot.lane.b32.xlu0 %v2998, 112
        %v3016 = vpop.permute.xlu0 %3015
        %3018 = vmatprep.subr.mxu0 0.0
        %3019 = vmatpush1.msra.mxu0 %v3004
        %3020 = vmatprep.subr.mxu0 0.0
        %3021 = vmatpush1.msra.mxu0 %v3006
        %3022 = vmatprep.subr.mxu0 0.0
        %3023 = vmatpush1.msra.mxu0 %v3008
        %3024 = vmatprep.subr.mxu0 0.0
        %3025 = vmatpush1.msra.mxu0 %v3010
        %3026 = vmatprep.subr.mxu0 0.0
        %3027 = vmatpush1.msra.mxu0 0.0
        %3028 = vmatprep.subr.mxu0 0.0
        %3029 = vmatpush1.msra.mxu0 0.0
        %3030 = vmatprep.subr.mxu0 0.0
        %3031 = vmatpush1.msra.mxu0 0.0
        %3032 = vmatprep.subr.mxu0 0.0
        %3033 = vmatpush1.msra.mxu0 0.0
        %3034 = vmatprep.subr.mxu0 0.0
        %3035 = vmatpush1.msra.mxu0 0.0
        %3036 = vmatprep.subr.mxu0 0.0
        %3037 = vmatpush1.msra.mxu0 0.0
        %3038 = vmatprep.subr.mxu0 0.0
        %3039 = vmatpush1.msra.mxu0 0.0
        %3040 = vmatprep.subr.mxu0 0.0
        %3041 = vmatpush1.msra.mxu0 0.0
        %3042 = vmatprep.subr.mxu0 0.0
        %3043 = vmatpush1.msra.mxu0 0.0
        %3044 = vmatprep.subr.mxu0 0.0
        %3045 = vmatpush1.msra.mxu0 0.0
        %3046 = vmatprep.subr.mxu0 0.0
        %3047 = vmatpush1.msra.mxu0 0.0
        %3048 = vmatprep.subr.mxu0 0.0
        %3049 = vmatpush1.msra.mxu0 0.0
        %3050 = vmatprep.subr.mxu0 0.0
        %3051 = vmatpush1.msra.mxu0 0.0
        %3052 = vmatprep.subr.mxu0 0.0
        %3053 = vmatpush1.msra.mxu0 0.0
        %3054 = vmatprep.subr.mxu0 0.0
        %3055 = vmatpush1.msra.mxu0 0.0
        %3056 = vmatprep.subr.mxu0 0.0
        %3057 = vmatpush1.msra.mxu0 0.0
        %3058 = vmatprep.subr.mxu0 0.0
        %3059 = vmatpush1.msra.mxu0 0.0
        %3060 = vmatprep.subr.mxu0 0.0
        %3061 = vmatpush1.msra.mxu0 0.0
        %3062 = vmatprep.subr.mxu0 0.0
        %3063 = vmatpush1.msra.mxu0 0.0
        %3064 = vmatprep.subr.mxu0 0.0
        %3065 = vmatpush1.msra.mxu0 0.0
        %3066 = vmatprep.subr.mxu0 0.0
        %3067 = vmatpush1.msra.mxu0 0.0
        %3068 = vmatprep.subr.mxu0 0.0
        %3069 = vmatpush1.msra.mxu0 0.0
        %3070 = vmatprep.subr.mxu0 0.0
        %3071 = vmatpush1.msra.mxu0 0.0
        %3072 = vmatprep.subr.mxu0 0.0
        %3073 = vmatpush1.msra.mxu0 0.0
        %3074 = vmatprep.subr.mxu0 0.0
        %3075 = vmatpush1.msra.mxu0 0.0
        %3076 = vmatprep.subr.mxu0 0.0
        %3077 = vmatpush1.msra.mxu0 0.0
        %3078 = vmatprep.subr.mxu0 0.0
        %3079 = vmatpush1.msra.mxu0 0.0
        %3080 = vmatprep.subr.mxu0 0.0
        %3081 = vmatpush1.msra.mxu0 0.0
        %3082 = vmatprep.mubr.f32.mxu0 0.0
        %3083 = vmatmul.mubr.f32.gmra.mrb[0].mxu0 %v1883
        %v3084 = vpop.f32.mrb[0].mxu0
        %v3085 = vadd.f32 %v3016, %v3084
        %v3086 = vpop.f32.mrb[0].mxu0
        %3087 = vdwg.mxu0
        %v3088 = vld [vmem:[%s1010] sm:$0xff]
        %v3089 = vld [vmem:[%s1010 + $0x8] sm:$0xff]
        %v3090 = vld [vmem:[%s1010 + $0x10] sm:$0xff]
        %v3091 = vld [vmem:[%s1010 + $0x18] sm:$0xff]
        %v3092 = vld [vmem:[%s1018] sm:$0x1]
        %v3094 = vlaneseq
        %v3095 = vshrl.u32 %v3094, 7
        %v3096 = vsub.s32 0, %v3095
        %v3097 = vrot.slane %v3092, %v3096
        %3102 = vrot.lane.b32.xlu0 %v3088, 112
        %v3103 = vpop.permute.xlu0 %3102
        %3104 = vrot.lane.b32.xlu0 %v3089, 112
        %v3105 = vpop.permute.xlu0 %3104
        %3106 = vrot.lane.b32.xlu0 %v3090, 112
        %v3107 = vpop.permute.xlu0 %3106
        %3108 = vrot.lane.b32.xlu0 %v3091, 112
        %v3109 = vpop.permute.xlu0 %3108
        %3114 = vrot.lane.b32.xlu0 %v3097, 112
        %v3115 = vpop.permute.xlu0 %3114
        %3117 = vmatprep.subr.mxu0 0.0
        %3118 = vmatpush1.msra.mxu0 %v3103
        %3119 = vmatprep.subr.mxu0 0.0
        %3120 = vmatpush1.msra.mxu0 %v3105
        %3121 = vmatprep.subr.mxu0 0.0
        %3122 = vmatpush1.msra.mxu0 %v3107
        %3123 = vmatprep.subr.mxu0 0.0
        %3124 = vmatpush1.msra.mxu0 %v3109
        %3125 = vmatprep.subr.mxu0 0.0
        %3126 = vmatpush1.msra.mxu0 0.0
        %3127 = vmatprep.subr.mxu0 0.0
        %3128 = vmatpush1.msra.mxu0 0.0
        %3129 = vmatprep.subr.mxu0 0.0
        %3130 = vmatpush1.msra.mxu0 0.0
        %3131 = vmatprep.subr.mxu0 0.0
        %3132 = vmatpush1.msra.mxu0 0.0
        %3133 = vmatprep.subr.mxu0 0.0
        %3134 = vmatpush1.msra.mxu0 0.0
        %3135 = vmatprep.subr.mxu0 0.0
        %3136 = vmatpush1.msra.mxu0 0.0
        %3137 = vmatprep.subr.mxu0 0.0
        %3138 = vmatpush1.msra.mxu0 0.0
        %3139 = vmatprep.subr.mxu0 0.0
        %3140 = vmatpush1.msra.mxu0 0.0
        %3141 = vmatprep.subr.mxu0 0.0
        %3142 = vmatpush1.msra.mxu0 0.0
        %3143 = vmatprep.subr.mxu0 0.0
        %3144 = vmatpush1.msra.mxu0 0.0
        %3145 = vmatprep.subr.mxu0 0.0
        %3146 = vmatpush1.msra.mxu0 0.0
        %3147 = vmatprep.subr.mxu0 0.0
        %3148 = vmatpush1.msra.mxu0 0.0
        %3149 = vmatprep.subr.mxu0 0.0
        %3150 = vmatpush1.msra.mxu0 0.0
        %3151 = vmatprep.subr.mxu0 0.0
        %3152 = vmatpush1.msra.mxu0 0.0
        %3153 = vmatprep.subr.mxu0 0.0
        %3154 = vmatpush1.msra.mxu0 0.0
        %3155 = vmatprep.subr.mxu0 0.0
        %3156 = vmatpush1.msra.mxu0 0.0
        %3157 = vmatprep.subr.mxu0 0.0
        %3158 = vmatpush1.msra.mxu0 0.0
        %3159 = vmatprep.subr.mxu0 0.0
        %3160 = vmatpush1.msra.mxu0 0.0
        %3161 = vmatprep.subr.mxu0 0.0
        %3162 = vmatpush1.msra.mxu0 0.0
        %3163 = vmatprep.subr.mxu0 0.0
        %3164 = vmatpush1.msra.mxu0 0.0
        %3165 = vmatprep.subr.mxu0 0.0
        %3166 = vmatpush1.msra.mxu0 0.0
        %3167 = vmatprep.subr.mxu0 0.0
        %3168 = vmatpush1.msra.mxu0 0.0
        %3169 = vmatprep.subr.mxu0 0.0
        %3170 = vmatpush1.msra.mxu0 0.0
        %3171 = vmatprep.subr.mxu0 0.0
        %3172 = vmatpush1.msra.mxu0 0.0
        %3173 = vmatprep.subr.mxu0 0.0
        %3174 = vmatpush1.msra.mxu0 0.0
        %3175 = vmatprep.subr.mxu0 0.0
        %3176 = vmatpush1.msra.mxu0 0.0
        %3177 = vmatprep.subr.mxu0 0.0
        %3178 = vmatpush1.msra.mxu0 0.0
        %3179 = vmatprep.subr.mxu0 0.0
        %3180 = vmatpush1.msra.mxu0 0.0
        %3181 = vmatprep.mubr.f32.mxu0 0.0
        %3182 = vmatmul.mubr.f32.gmra.mrb[0].mxu0 %v1883
        %v3183 = vpop.f32.mrb[0].mxu0
        %v3184 = vadd.f32 %v3115, %v3183
        %v3185 = vpop.f32.mrb[0].mxu0
        %3186 = vdwg.mxu0
        %v3188 = vsel %vm2117, %v2986, 0
        %v3191 = vsel %vm2117, %v3085, 0
        %3193 = vmatprep.subr.mxu0 0.0
        %3194 = vmatpush1.xpose.msra.mxu0 %v3191
        %3195 = vmatprep.subr.mxu0 0.0
        %3196 = vmatpush1.xpose.msra.mxu0 0.0
        %3197 = vmatprep.subr.mxu0 0.0
        %3198 = vmatpush1.xpose.msra.mxu0 0.0
        %3199 = vmatprep.subr.mxu0 0.0
        %3200 = vmatpush1.xpose.msra.mxu0 0.0
        %3201 = vmatprep.subr.mxu0 0.0
        %3202 = vmatpush1.xpose.msra.mxu0 0.0
        %3203 = vmatprep.subr.mxu0 0.0
        %3204 = vmatpush1.xpose.msra.mxu0 0.0
        %3205 = vmatprep.subr.mxu0 0.0
        %3206 = vmatpush1.xpose.msra.mxu0 0.0
        %3207 = vmatprep.subr.mxu0 0.0
        %3208 = vmatpush1.xpose.msra.mxu0 0.0
        %3209 = vmatprep.subr.mxu0 0.0
        %3210 = vmatpush1.xpose.msra.mxu0 0.0
        %3211 = vmatprep.subr.mxu0 0.0
        %3212 = vmatpush1.xpose.msra.mxu0 0.0
        %3213 = vmatprep.subr.mxu0 0.0
        %3214 = vmatpush1.xpose.msra.mxu0 0.0
        %3215 = vmatprep.subr.mxu0 0.0
        %3216 = vmatpush1.xpose.msra.mxu0 0.0
        %3217 = vmatprep.subr.mxu0 0.0
        %3218 = vmatpush1.xpose.msra.mxu0 0.0
        %3219 = vmatprep.subr.mxu0 0.0
        %3220 = vmatpush1.xpose.msra.mxu0 0.0
        %3221 = vmatprep.subr.mxu0 0.0
        %3222 = vmatpush1.xpose.msra.mxu0 0.0
        %3223 = vmatprep.subr.mxu0 0.0
        %3224 = vmatpush1.xpose.msra.mxu0 0.0
        %3225 = vmatprep.subr.mxu0 0.0
        %3226 = vmatpush1.xpose.msra.mxu0 0.0
        %3227 = vmatprep.subr.mxu0 0.0
        %3228 = vmatpush1.xpose.msra.mxu0 0.0
        %3229 = vmatprep.subr.mxu0 0.0
        %3230 = vmatpush1.xpose.msra.mxu0 0.0
        %3231 = vmatprep.subr.mxu0 0.0
        %3232 = vmatpush1.xpose.msra.mxu0 0.0
        %3233 = vmatprep.subr.mxu0 0.0
        %3234 = vmatpush1.xpose.msra.mxu0 0.0
        %3235 = vmatprep.subr.mxu0 0.0
        %3236 = vmatpush1.xpose.msra.mxu0 0.0
        %3237 = vmatprep.subr.mxu0 0.0
        %3238 = vmatpush1.xpose.msra.mxu0 0.0
        %3239 = vmatprep.subr.mxu0 0.0
        %3240 = vmatpush1.xpose.msra.mxu0 0.0
        %3241 = vmatprep.subr.mxu0 0.0
        %3242 = vmatpush1.xpose.msra.mxu0 0.0
        %3243 = vmatprep.subr.mxu0 0.0
        %3244 = vmatpush1.xpose.msra.mxu0 0.0
        %3245 = vmatprep.subr.mxu0 0.0
        %3246 = vmatpush1.xpose.msra.mxu0 0.0
        %3247 = vmatprep.subr.mxu0 0.0
        %3248 = vmatpush1.xpose.msra.mxu0 0.0
        %3249 = vmatprep.subr.mxu0 0.0
        %3250 = vmatpush1.xpose.msra.mxu0 0.0
        %3251 = vmatprep.subr.mxu0 0.0
        %3252 = vmatpush1.xpose.msra.mxu0 0.0
        %3253 = vmatprep.subr.mxu0 0.0
        %3254 = vmatpush1.xpose.msra.mxu0 0.0
        %3255 = vmatprep.subr.mxu0 0.0
        %3256 = vmatpush1.xpose.msra.mxu0 0.0
        %3257 = vmatprep.mubr.f32.mxu0 0.0
        %3258 = vmatmul.mubr.f32.gmra.mrb[0].mxu0 %v3188
        %v3259 = vpop.f32.mrb[0].mxu0
        %v3260 = vadd.f32 0.0, %v3259
        %v3261 = vpop.f32.mrb[0].mxu0
        %3262 = vdwg.mxu0
        %v3263 = vmul.f32 %v3260, 0.35355338
        %v3264 = vsel %vm2117, %v3263, -inf
        %3265 = vmax.xlane.f32.xlu0 %v3264
        %v3266 = vpop.xlane.xlu0 %3265
        %v3267 = vsub.f32 %v3263, %v3266
        %v3268 = vmul.f32 %v3267, 1.442695
        %v3269 = vpow.pop %v3268
        %v3270 = vsel %vm2117, %v3269, 0.0
        %3271 = vadd.xlane.f32.xlu0 %v3270
        %v3272 = vpop.xlane.xlu0 %3271
        %v3273 = vrcp.pop %v3272
        %v3274 = vmul.f32 %v3269, %v3273
        %s3275 = scalar_lea.vmem %s1183, 16 [#allocation24]
        %3276 = vst.msk [vmem:[%s3275] sm:$0xff] %vm2117, %v3274
        %v3278 = vsel %vm2117, %v3274, 0
        %3280 = vmatprep.subr.mxu0 0.0
        %3281 = vmatpush1.msra.mxu0 %v3184
        %3282 = vmatprep.subr.mxu0 0.0
        %3283 = vmatpush1.msra.mxu0 0.0
        %3284 = vmatprep.subr.mxu0 0.0
        %3285 = vmatpush1.msra.mxu0 0.0
        %3286 = vmatprep.subr.mxu0 0.0
        %3287 = vmatpush1.msra.mxu0 0.0
        %3288 = vmatprep.subr.mxu0 0.0
        %3289 = vmatpush1.msra.mxu0 0.0
        %3290 = vmatprep.subr.mxu0 0.0
        %3291 = vmatpush1.msra.mxu0 0.0
        %3292 = vmatprep.subr.mxu0 0.0
        %3293 = vmatpush1.msra.mxu0 0.0
        %3294 = vmatprep.subr.mxu0 0.0
        %3295 = vmatpush1.msra.mxu0 0.0
        %3296 = vmatprep.subr.mxu0 0.0
        %3297 = vmatpush1.msra.mxu0 0.0
        %3298 = vmatprep.subr.mxu0 0.0
        %3299 = vmatpush1.msra.mxu0 0.0
        %3300 = vmatprep.subr.mxu0 0.0
        %3301 = vmatpush1.msra.mxu0 0.0
        %3302 = vmatprep.subr.mxu0 0.0
        %3303 = vmatpush1.msra.mxu0 0.0
        %3304 = vmatprep.subr.mxu0 0.0
        %3305 = vmatpush1.msra.mxu0 0.0
        %3306 = vmatprep.subr.mxu0 0.0
        %3307 = vmatpush1.msra.mxu0 0.0
        %3308 = vmatprep.subr.mxu0 0.0
        %3309 = vmatpush1.msra.mxu0 0.0
        %3310 = vmatprep.subr.mxu0 0.0
        %3311 = vmatpush1.msra.mxu0 0.0
        %3312 = vmatprep.subr.mxu0 0.0
        %3313 = vmatpush1.msra.mxu0 0.0
        %3314 = vmatprep.subr.mxu0 0.0
        %3315 = vmatpush1.msra.mxu0 0.0
        %3316 = vmatprep.subr.mxu0 0.0
        %3317 = vmatpush1.msra.mxu0 0.0
        %3318 = vmatprep.subr.mxu0 0.0
        %3319 = vmatpush1.msra.mxu0 0.0
        %3320 = vmatprep.subr.mxu0 0.0
        %3321 = vmatpush1.msra.mxu0 0.0
        %3322 = vmatprep.subr.mxu0 0.0
        %3323 = vmatpush1.msra.mxu0 0.0
        %3324 = vmatprep.subr.mxu0 0.0
        %3325 = vmatpush1.msra.mxu0 0.0
        %3326 = vmatprep.subr.mxu0 0.0
        %3327 = vmatpush1.msra.mxu0 0.0
        %3328 = vmatprep.subr.mxu0 0.0
        %3329 = vmatpush1.msra.mxu0 0.0
        %3330 = vmatprep.subr.mxu0 0.0
        %3331 = vmatpush1.msra.mxu0 0.0
        %3332 = vmatprep.subr.mxu0 0.0
        %3333 = vmatpush1.msra.mxu0 0.0
        %3334 = vmatprep.subr.mxu0 0.0
        %3335 = vmatpush1.msra.mxu0 0.0
        %3336 = vmatprep.subr.mxu0 0.0
        %3337 = vmatpush1.msra.mxu0 0.0
        %3338 = vmatprep.subr.mxu0 0.0
        %3339 = vmatpush1.msra.mxu0 0.0
        %3340 = vmatprep.subr.mxu0 0.0
        %3341 = vmatpush1.msra.mxu0 0.0
        %3342 = vmatprep.subr.mxu0 0.0
        %3343 = vmatpush1.msra.mxu0 0.0
        %3344 = vmatprep.mubr.f32.mxu0 0.0
        %3345 = vmatmul.mubr.f32.gmra.mrb[0].mxu0 %v3278
        %v3346 = vpop.f32.mrb[0].mxu0
        %v3347 = vadd.f32 0.0, %v3346
        %v3348 = vpop.f32.mrb[0].mxu0
        %3349 = vdwg.mxu0
        %v3350 = vld [vmem:[%s1027 + $0x10] sm:$0xff]
        %v3352 = vsel %vm2117, %v3347, 0
        %3354 = vmatprep.subr.mxu0 0.0
        %3355 = vmatpush1.msra.mxu0 %v3350
        %3356 = vmatprep.subr.mxu0 0.0
        %3357 = vmatpush1.msra.mxu0 0.0
        %3358 = vmatprep.subr.mxu0 0.0
        %3359 = vmatpush1.msra.mxu0 0.0
        %3360 = vmatprep.subr.mxu0 0.0
        %3361 = vmatpush1.msra.mxu0 0.0
        %3362 = vmatprep.subr.mxu0 0.0
        %3363 = vmatpush1.msra.mxu0 0.0
        %3364 = vmatprep.subr.mxu0 0.0
        %3365 = vmatpush1.msra.mxu0 0.0
        %3366 = vmatprep.subr.mxu0 0.0
        %3367 = vmatpush1.msra.mxu0 0.0
        %3368 = vmatprep.subr.mxu0 0.0
        %3369 = vmatpush1.msra.mxu0 0.0
        %3370 = vmatprep.subr.mxu0 0.0
        %3371 = vmatpush1.msra.mxu0 0.0
        %3372 = vmatprep.subr.mxu0 0.0
        %3373 = vmatpush1.msra.mxu0 0.0
        %3374 = vmatprep.subr.mxu0 0.0
        %3375 = vmatpush1.msra.mxu0 0.0
        %3376 = vmatprep.subr.mxu0 0.0
        %3377 = vmatpush1.msra.mxu0 0.0
        %3378 = vmatprep.subr.mxu0 0.0
        %3379 = vmatpush1.msra.mxu0 0.0
        %3380 = vmatprep.subr.mxu0 0.0
        %3381 = vmatpush1.msra.mxu0 0.0
        %3382 = vmatprep.subr.mxu0 0.0
        %3383 = vmatpush1.msra.mxu0 0.0
        %3384 = vmatprep.subr.mxu0 0.0
        %3385 = vmatpush1.msra.mxu0 0.0
        %3386 = vmatprep.subr.mxu0 0.0
        %3387 = vmatpush1.msra.mxu0 0.0
        %3388 = vmatprep.subr.mxu0 0.0
        %3389 = vmatpush1.msra.mxu0 0.0
        %3390 = vmatprep.subr.mxu0 0.0
        %3391 = vmatpush1.msra.mxu0 0.0
        %3392 = vmatprep.subr.mxu0 0.0
        %3393 = vmatpush1.msra.mxu0 0.0
        %3394 = vmatprep.subr.mxu0 0.0
        %3395 = vmatpush1.msra.mxu0 0.0
        %3396 = vmatprep.subr.mxu0 0.0
        %3397 = vmatpush1.msra.mxu0 0.0
        %3398 = vmatprep.subr.mxu0 0.0
        %3399 = vmatpush1.msra.mxu0 0.0
        %3400 = vmatprep.subr.mxu0 0.0
        %3401 = vmatpush1.msra.mxu0 0.0
        %3402 = vmatprep.subr.mxu0 0.0
        %3403 = vmatpush1.msra.mxu0 0.0
        %3404 = vmatprep.subr.mxu0 0.0
        %3405 = vmatpush1.msra.mxu0 0.0
        %3406 = vmatprep.subr.mxu0 0.0
        %3407 = vmatpush1.msra.mxu0 0.0
        %3408 = vmatprep.subr.mxu0 0.0
        %3409 = vmatpush1.msra.mxu0 0.0
        %3410 = vmatprep.subr.mxu0 0.0
        %3411 = vmatpush1.msra.mxu0 0.0
        %3412 = vmatprep.subr.mxu0 0.0
        %3413 = vmatpush1.msra.mxu0 0.0
        %3414 = vmatprep.subr.mxu0 0.0
        %3415 = vmatpush1.msra.mxu0 0.0
        %3416 = vmatprep.subr.mxu0 0.0
        %3417 = vmatpush1.msra.mxu0 0.0
        %3418 = vmatprep.mubr.f32.mxu0 0.0
        %3419 = vmatmul.mubr.f32.gmra.mrb[0].mxu0 %v3352
        %v3420 = vpop.f32.mrb[0].mxu0
        %v3421 = vadd.f32 0.0, %v3420
        %v3422 = vpop.f32.mrb[0].mxu0
        %3423 = vdwg.mxu0
        %v3424 = vadd.f32 %v2889, %v3421
        %v3425 = vld [vmem:[%s1197] sm:$0xff]
        %v3426 = vld [vmem:[%s1197 + $0x8] sm:$0xff]
        %v3427 = vld [vmem:[%s1197 + $0x10] sm:$0xff]
        %v3428 = vld [vmem:[%s1197 + $0x18] sm:$0xff]
        %v3429 = vld [vmem:[%s984] sm:$0x1]
        %v3431 = vlaneseq
        %v3432 = vshrl.u32 %v3431, 7
        %v3433 = vsub.s32 0, %v3432
        %v3434 = vrot.slane %v3429, %v3433
        %3439 = vrot.lane.b32.xlu0 %v3425, 104
        %v3440 = vpop.permute.xlu0 %3439
        %3441 = vrot.lane.b32.xlu0 %v3426, 104
        %v3442 = vpop.permute.xlu0 %3441
        %3443 = vrot.lane.b32.xlu0 %v3427, 104
        %v3444 = vpop.permute.xlu0 %3443
        %3445 = vrot.lane.b32.xlu0 %v3428, 104
        %v3446 = vpop.permute.xlu0 %3445
        %3451 = vrot.lane.b32.xlu0 %v3434, 104
        %v3452 = vpop.permute.xlu0 %3451
        %3454 = vmatprep.subr.mxu0 0.0
        %3455 = vmatpush1.msra.mxu0 %v3440
        %3456 = vmatprep.subr.mxu0 0.0
        %3457 = vmatpush1.msra.mxu0 %v3442
        %3458 = vmatprep.subr.mxu0 0.0
        %3459 = vmatpush1.msra.mxu0 %v3444
        %3460 = vmatprep.subr.mxu0 0.0
        %3461 = vmatpush1.msra.mxu0 %v3446
        %3462 = vmatprep.subr.mxu0 0.0
        %3463 = vmatpush1.msra.mxu0 0.0
        %3464 = vmatprep.subr.mxu0 0.0
        %3465 = vmatpush1.msra.mxu0 0.0
        %3466 = vmatprep.subr.mxu0 0.0
        %3467 = vmatpush1.msra.mxu0 0.0
        %3468 = vmatprep.subr.mxu0 0.0
        %3469 = vmatpush1.msra.mxu0 0.0
        %3470 = vmatprep.subr.mxu0 0.0
        %3471 = vmatpush1.msra.mxu0 0.0
        %3472 = vmatprep.subr.mxu0 0.0
        %3473 = vmatpush1.msra.mxu0 0.0
        %3474 = vmatprep.subr.mxu0 0.0
        %3475 = vmatpush1.msra.mxu0 0.0
        %3476 = vmatprep.subr.mxu0 0.0
        %3477 = vmatpush1.msra.mxu0 0.0
        %3478 = vmatprep.subr.mxu0 0.0
        %3479 = vmatpush1.msra.mxu0 0.0
        %3480 = vmatprep.subr.mxu0 0.0
        %3481 = vmatpush1.msra.mxu0 0.0
        %3482 = vmatprep.subr.mxu0 0.0
        %3483 = vmatpush1.msra.mxu0 0.0
        %3484 = vmatprep.subr.mxu0 0.0
        %3485 = vmatpush1.msra.mxu0 0.0
        %3486 = vmatprep.subr.mxu0 0.0
        %3487 = vmatpush1.msra.mxu0 0.0
        %3488 = vmatprep.subr.mxu0 0.0
        %3489 = vmatpush1.msra.mxu0 0.0
        %3490 = vmatprep.subr.mxu0 0.0
        %3491 = vmatpush1.msra.mxu0 0.0
        %3492 = vmatprep.subr.mxu0 0.0
        %3493 = vmatpush1.msra.mxu0 0.0
        %3494 = vmatprep.subr.mxu0 0.0
        %3495 = vmatpush1.msra.mxu0 0.0
        %3496 = vmatprep.subr.mxu0 0.0
        %3497 = vmatpush1.msra.mxu0 0.0
        %3498 = vmatprep.subr.mxu0 0.0
        %3499 = vmatpush1.msra.mxu0 0.0
        %3500 = vmatprep.subr.mxu0 0.0
        %3501 = vmatpush1.msra.mxu0 0.0
        %3502 = vmatprep.subr.mxu0 0.0
        %3503 = vmatpush1.msra.mxu0 0.0
        %3504 = vmatprep.subr.mxu0 0.0
        %3505 = vmatpush1.msra.mxu0 0.0
        %3506 = vmatprep.subr.mxu0 0.0
        %3507 = vmatpush1.msra.mxu0 0.0
        %3508 = vmatprep.subr.mxu0 0.0
        %3509 = vmatpush1.msra.mxu0 0.0
        %3510 = vmatprep.subr.mxu0 0.0
        %3511 = vmatpush1.msra.mxu0 0.0
        %3512 = vmatprep.subr.mxu0 0.0
        %3513 = vmatpush1.msra.mxu0 0.0
        %3514 = vmatprep.subr.mxu0 0.0
        %3515 = vmatpush1.msra.mxu0 0.0
        %3516 = vmatprep.subr.mxu0 0.0
        %3517 = vmatpush1.msra.mxu0 0.0
        %3518 = vmatprep.mubr.f32.mxu0 0.0
        %3519 = vmatmul.mubr.f32.gmra.mrb[0].mxu0 %v1883
        %v3520 = vpop.f32.mrb[0].mxu0
        %v3521 = vadd.f32 %v3452, %v3520
        %v3522 = vpop.f32.mrb[0].mxu0
        %3523 = vdwg.mxu0
        %v3524 = vld [vmem:[%s993] sm:$0xff]
        %v3525 = vld [vmem:[%s993 + $0x8] sm:$0xff]
        %v3526 = vld [vmem:[%s993 + $0x10] sm:$0xff]
        %v3527 = vld [vmem:[%s993 + $0x18] sm:$0xff]
        %v3528 = vld [vmem:[%s1001] sm:$0x1]
        %v3530 = vlaneseq
        %v3531 = vshrl.u32 %v3530, 7
        %v3532 = vsub.s32 0, %v3531
        %v3533 = vrot.slane %v3528, %v3532
        %3538 = vrot.lane.b32.xlu0 %v3524, 104
        %v3539 = vpop.permute.xlu0 %3538
        %3540 = vrot.lane.b32.xlu0 %v3525, 104
        %v3541 = vpop.permute.xlu0 %3540
        %3542 = vrot.lane.b32.xlu0 %v3526, 104
        %v3543 = vpop.permute.xlu0 %3542
        %3544 = vrot.lane.b32.xlu0 %v3527, 104
        %v3545 = vpop.permute.xlu0 %3544
        %3550 = vrot.lane.b32.xlu0 %v3533, 104
        %v3551 = vpop.permute.xlu0 %3550
        %3553 = vmatprep.subr.mxu0 0.0
        %3554 = vmatpush1.msra.mxu0 %v3539
        %3555 = vmatprep.subr.mxu0 0.0
        %3556 = vmatpush1.msra.mxu0 %v3541
        %3557 = vmatprep.subr.mxu0 0.0
        %3558 = vmatpush1.msra.mxu0 %v3543
        %3559 = vmatprep.subr.mxu0 0.0
        %3560 = vmatpush1.msra.mxu0 %v3545
        %3561 = vmatprep.subr.mxu0 0.0
        %3562 = vmatpush1.msra.mxu0 0.0
        %3563 = vmatprep.subr.mxu0 0.0
        %3564 = vmatpush1.msra.mxu0 0.0
        %3565 = vmatprep.subr.mxu0 0.0
        %3566 = vmatpush1.msra.mxu0 0.0
        %3567 = vmatprep.subr.mxu0 0.0
        %3568 = vmatpush1.msra.mxu0 0.0
        %3569 = vmatprep.subr.mxu0 0.0
        %3570 = vmatpush1.msra.mxu0 0.0
        %3571 = vmatprep.subr.mxu0 0.0
        %3572 = vmatpush1.msra.mxu0 0.0
        %3573 = vmatprep.subr.mxu0 0.0
        %3574 = vmatpush1.msra.mxu0 0.0
        %3575 = vmatprep.subr.mxu0 0.0
        %3576 = vmatpush1.msra.mxu0 0.0
        %3577 = vmatprep.subr.mxu0 0.0
        %3578 = vmatpush1.msra.mxu0 0.0
        %3579 = vmatprep.subr.mxu0 0.0
        %3580 = vmatpush1.msra.mxu0 0.0
        %3581 = vmatprep.subr.mxu0 0.0
        %3582 = vmatpush1.msra.mxu0 0.0
        %3583 = vmatprep.subr.mxu0 0.0
        %3584 = vmatpush1.msra.mxu0 0.0
        %3585 = vmatprep.subr.mxu0 0.0
        %3586 = vmatpush1.msra.mxu0 0.0
        %3587 = vmatprep.subr.mxu0 0.0
        %3588 = vmatpush1.msra.mxu0 0.0
        %3589 = vmatprep.subr.mxu0 0.0
        %3590 = vmatpush1.msra.mxu0 0.0
        %3591 = vmatprep.subr.mxu0 0.0
        %3592 = vmatpush1.msra.mxu0 0.0
        %3593 = vmatprep.subr.mxu0 0.0
        %3594 = vmatpush1.msra.mxu0 0.0
        %3595 = vmatprep.subr.mxu0 0.0
        %3596 = vmatpush1.msra.mxu0 0.0
        %3597 = vmatprep.subr.mxu0 0.0
        %3598 = vmatpush1.msra.mxu0 0.0
        %3599 = vmatprep.subr.mxu0 0.0
        %3600 = vmatpush1.msra.mxu0 0.0
        %3601 = vmatprep.subr.mxu0 0.0
        %3602 = vmatpush1.msra.mxu0 0.0
        %3603 = vmatprep.subr.mxu0 0.0
        %3604 = vmatpush1.msra.mxu0 0.0
        %3605 = vmatprep.subr.mxu0 0.0
        %3606 = vmatpush1.msra.mxu0 0.0
        %3607 = vmatprep.subr.mxu0 0.0
        %3608 = vmatpush1.msra.mxu0 0.0
        %3609 = vmatprep.subr.mxu0 0.0
        %3610 = vmatpush1.msra.mxu0 0.0
        %3611 = vmatprep.subr.mxu0 0.0
        %3612 = vmatpush1.msra.mxu0 0.0
        %3613 = vmatprep.subr.mxu0 0.0
        %3614 = vmatpush1.msra.mxu0 0.0
        %3615 = vmatprep.subr.mxu0 0.0
        %3616 = vmatpush1.msra.mxu0 0.0
        %3617 = vmatprep.mubr.f32.mxu0 0.0
        %3618 = vmatmul.mubr.f32.gmra.mrb[0].mxu0 %v1883
        %v3619 = vpop.f32.mrb[0].mxu0
        %v3620 = vadd.f32 %v3551, %v3619
        %v3621 = vpop.f32.mrb[0].mxu0
        %3622 = vdwg.mxu0
        %v3623 = vld [vmem:[%s1010] sm:$0xff]
        %v3624 = vld [vmem:[%s1010 + $0x8] sm:$0xff]
        %v3625 = vld [vmem:[%s1010 + $0x10] sm:$0xff]
        %v3626 = vld [vmem:[%s1010 + $0x18] sm:$0xff]
        %v3627 = vld [vmem:[%s1018] sm:$0x1]
        %v3629 = vlaneseq
        %v3630 = vshrl.u32 %v3629, 7
        %v3631 = vsub.s32 0, %v3630
        %v3632 = vrot.slane %v3627, %v3631
        %3637 = vrot.lane.b32.xlu0 %v3623, 104
        %v3638 = vpop.permute.xlu0 %3637
        %3639 = vrot.lane.b32.xlu0 %v3624, 104
        %v3640 = vpop.permute.xlu0 %3639
        %3641 = vrot.lane.b32.xlu0 %v3625, 104
        %v3642 = vpop.permute.xlu0 %3641
        %3643 = vrot.lane.b32.xlu0 %v3626, 104
        %v3644 = vpop.permute.xlu0 %3643
        %3649 = vrot.lane.b32.xlu0 %v3632, 104
        %v3650 = vpop.permute.xlu0 %3649
        %3652 = vmatprep.subr.mxu0 0.0
        %3653 = vmatpush1.msra.mxu0 %v3638
        %3654 = vmatprep.subr.mxu0 0.0
        %3655 = vmatpush1.msra.mxu0 %v3640
        %3656 = vmatprep.subr.mxu0 0.0
        %3657 = vmatpush1.msra.mxu0 %v3642
        %3658 = vmatprep.subr.mxu0 0.0
        %3659 = vmatpush1.msra.mxu0 %v3644
        %3660 = vmatprep.subr.mxu0 0.0
        %3661 = vmatpush1.msra.mxu0 0.0
        %3662 = vmatprep.subr.mxu0 0.0
        %3663 = vmatpush1.msra.mxu0 0.0
        %3664 = vmatprep.subr.mxu0 0.0
        %3665 = vmatpush1.msra.mxu0 0.0
        %3666 = vmatprep.subr.mxu0 0.0
        %3667 = vmatpush1.msra.mxu0 0.0
        %3668 = vmatprep.subr.mxu0 0.0
        %3669 = vmatpush1.msra.mxu0 0.0
        %3670 = vmatprep.subr.mxu0 0.0
        %3671 = vmatpush1.msra.mxu0 0.0
        %3672 = vmatprep.subr.mxu0 0.0
        %3673 = vmatpush1.msra.mxu0 0.0
        %3674 = vmatprep.subr.mxu0 0.0
        %3675 = vmatpush1.msra.mxu0 0.0
        %3676 = vmatprep.subr.mxu0 0.0
        %3677 = vmatpush1.msra.mxu0 0.0
        %3678 = vmatprep.subr.mxu0 0.0
        %3679 = vmatpush1.msra.mxu0 0.0
        %3680 = vmatprep.subr.mxu0 0.0
        %3681 = vmatpush1.msra.mxu0 0.0
        %3682 = vmatprep.subr.mxu0 0.0
        %3683 = vmatpush1.msra.mxu0 0.0
        %3684 = vmatprep.subr.mxu0 0.0
        %3685 = vmatpush1.msra.mxu0 0.0
        %3686 = vmatprep.subr.mxu0 0.0
        %3687 = vmatpush1.msra.mxu0 0.0
        %3688 = vmatprep.subr.mxu0 0.0
        %3689 = vmatpush1.msra.mxu0 0.0
        %3690 = vmatprep.subr.mxu0 0.0
        %3691 = vmatpush1.msra.mxu0 0.0
        %3692 = vmatprep.subr.mxu0 0.0
        %3693 = vmatpush1.msra.mxu0 0.0
        %3694 = vmatprep.subr.mxu0 0.0
        %3695 = vmatpush1.msra.mxu0 0.0
        %3696 = vmatprep.subr.mxu0 0.0
        %3697 = vmatpush1.msra.mxu0 0.0
        %3698 = vmatprep.subr.mxu0 0.0
        %3699 = vmatpush1.msra.mxu0 0.0
        %3700 = vmatprep.subr.mxu0 0.0
        %3701 = vmatpush1.msra.mxu0 0.0
        %3702 = vmatprep.subr.mxu0 0.0
        %3703 = vmatpush1.msra.mxu0 0.0
        %3704 = vmatprep.subr.mxu0 0.0
        %3705 = vmatpush1.msra.mxu0 0.0
        %3706 = vmatprep.subr.mxu0 0.0
        %3707 = vmatpush1.msra.mxu0 0.0
        %3708 = vmatprep.subr.mxu0 0.0
        %3709 = vmatpush1.msra.mxu0 0.0
        %3710 = vmatprep.subr.mxu0 0.0
        %3711 = vmatpush1.msra.mxu0 0.0
        %3712 = vmatprep.subr.mxu0 0.0
        %3713 = vmatpush1.msra.mxu0 0.0
        %3714 = vmatprep.subr.mxu0 0.0
        %3715 = vmatpush1.msra.mxu0 0.0
        %3716 = vmatprep.mubr.f32.mxu0 0.0
        %3717 = vmatmul.mubr.f32.gmra.mrb[0].mxu0 %v1883
        %v3718 = vpop.f32.mrb[0].mxu0
        %v3719 = vadd.f32 %v3650, %v3718
        %v3720 = vpop.f32.mrb[0].mxu0
        %3721 = vdwg.mxu0
        %v3723 = vsel %vm2117, %v3521, 0
        %v3726 = vsel %vm2117, %v3620, 0
        %3728 = vmatprep.subr.mxu0 0.0
        %3729 = vmatpush1.xpose.msra.mxu0 %v3726
        %3730 = vmatprep.subr.mxu0 0.0
        %3731 = vmatpush1.xpose.msra.mxu0 0.0
        %3732 = vmatprep.subr.mxu0 0.0
        %3733 = vmatpush1.xpose.msra.mxu0 0.0
        %3734 = vmatprep.subr.mxu0 0.0
        %3735 = vmatpush1.xpose.msra.mxu0 0.0
        %3736 = vmatprep.subr.mxu0 0.0
        %3737 = vmatpush1.xpose.msra.mxu0 0.0
        %3738 = vmatprep.subr.mxu0 0.0
        %3739 = vmatpush1.xpose.msra.mxu0 0.0
        %3740 = vmatprep.subr.mxu0 0.0
        %3741 = vmatpush1.xpose.msra.mxu0 0.0
        %3742 = vmatprep.subr.mxu0 0.0
        %3743 = vmatpush1.xpose.msra.mxu0 0.0
        %3744 = vmatprep.subr.mxu0 0.0
        %3745 = vmatpush1.xpose.msra.mxu0 0.0
        %3746 = vmatprep.subr.mxu0 0.0
        %3747 = vmatpush1.xpose.msra.mxu0 0.0
        %3748 = vmatprep.subr.mxu0 0.0
        %3749 = vmatpush1.xpose.msra.mxu0 0.0
        %3750 = vmatprep.subr.mxu0 0.0
        %3751 = vmatpush1.xpose.msra.mxu0 0.0
        %3752 = vmatprep.subr.mxu0 0.0
        %3753 = vmatpush1.xpose.msra.mxu0 0.0
        %3754 = vmatprep.subr.mxu0 0.0
        %3755 = vmatpush1.xpose.msra.mxu0 0.0
        %3756 = vmatprep.subr.mxu0 0.0
        %3757 = vmatpush1.xpose.msra.mxu0 0.0
        %3758 = vmatprep.subr.mxu0 0.0
        %3759 = vmatpush1.xpose.msra.mxu0 0.0
        %3760 = vmatprep.subr.mxu0 0.0
        %3761 = vmatpush1.xpose.msra.mxu0 0.0
        %3762 = vmatprep.subr.mxu0 0.0
        %3763 = vmatpush1.xpose.msra.mxu0 0.0
        %3764 = vmatprep.subr.mxu0 0.0
        %3765 = vmatpush1.xpose.msra.mxu0 0.0
        %3766 = vmatprep.subr.mxu0 0.0
        %3767 = vmatpush1.xpose.msra.mxu0 0.0
        %3768 = vmatprep.subr.mxu0 0.0
        %3769 = vmatpush1.xpose.msra.mxu0 0.0
        %3770 = vmatprep.subr.mxu0 0.0
        %3771 = vmatpush1.xpose.msra.mxu0 0.0
        %3772 = vmatprep.subr.mxu0 0.0
        %3773 = vmatpush1.xpose.msra.mxu0 0.0
        %3774 = vmatprep.subr.mxu0 0.0
        %3775 = vmatpush1.xpose.msra.mxu0 0.0
        %3776 = vmatprep.subr.mxu0 0.0
        %3777 = vmatpush1.xpose.msra.mxu0 0.0
        %3778 = vmatprep.subr.mxu0 0.0
        %3779 = vmatpush1.xpose.msra.mxu0 0.0
        %3780 = vmatprep.subr.mxu0 0.0
        %3781 = vmatpush1.xpose.msra.mxu0 0.0
        %3782 = vmatprep.subr.mxu0 0.0
        %3783 = vmatpush1.xpose.msra.mxu0 0.0
        %3784 = vmatprep.subr.mxu0 0.0
        %3785 = vmatpush1.xpose.msra.mxu0 0.0
        %3786 = vmatprep.subr.mxu0 0.0
        %3787 = vmatpush1.xpose.msra.mxu0 0.0
        %3788 = vmatprep.subr.mxu0 0.0
        %3789 = vmatpush1.xpose.msra.mxu0 0.0
        %3790 = vmatprep.subr.mxu0 0.0
        %3791 = vmatpush1.xpose.msra.mxu0 0.0
        %3792 = vmatprep.mubr.f32.mxu0 0.0
        %3793 = vmatmul.mubr.f32.gmra.mrb[0].mxu0 %v3723
        %v3794 = vpop.f32.mrb[0].mxu0
        %v3795 = vadd.f32 0.0, %v3794
        %v3796 = vpop.f32.mrb[0].mxu0
        %3797 = vdwg.mxu0
        %v3798 = vmul.f32 %v3795, 0.35355338
        %v3799 = vsel %vm2117, %v3798, -inf
        %3800 = vmax.xlane.f32.xlu0 %v3799
        %v3801 = vpop.xlane.xlu0 %3800
        %v3802 = vsub.f32 %v3798, %v3801
        %v3803 = vmul.f32 %v3802, 1.442695
        %v3804 = vpow.pop %v3803
        %v3805 = vsel %vm2117, %v3804, 0.0
        %3806 = vadd.xlane.f32.xlu0 %v3805
        %v3807 = vpop.xlane.xlu0 %3806
        %v3808 = vrcp.pop %v3807
        %v3809 = vmul.f32 %v3804, %v3808
        %s3810 = scalar_lea.vmem %s1183, 24 [#allocation24]
        %3811 = vst.msk [vmem:[%s3810] sm:$0xff] %vm2117, %v3809
        %v3813 = vsel %vm2117, %v3809, 0
        %3815 = vmatprep.subr.mxu0 0.0
        %3816 = vmatpush1.msra.mxu0 %v3719
        %3817 = vmatprep.subr.mxu0 0.0
        %3818 = vmatpush1.msra.mxu0 0.0
        %3819 = vmatprep.subr.mxu0 0.0
        %3820 = vmatpush1.msra.mxu0 0.0
        %3821 = vmatprep.subr.mxu0 0.0
        %3822 = vmatpush1.msra.mxu0 0.0
        %3823 = vmatprep.subr.mxu0 0.0
        %3824 = vmatpush1.msra.mxu0 0.0
        %3825 = vmatprep.subr.mxu0 0.0
        %3826 = vmatpush1.msra.mxu0 0.0
        %3827 = vmatprep.subr.mxu0 0.0
        %3828 = vmatpush1.msra.mxu0 0.0
        %3829 = vmatprep.subr.mxu0 0.0
        %3830 = vmatpush1.msra.mxu0 0.0
        %3831 = vmatprep.subr.mxu0 0.0
        %3832 = vmatpush1.msra.mxu0 0.0
        %3833 = vmatprep.subr.mxu0 0.0
        %3834 = vmatpush1.msra.mxu0 0.0
        %3835 = vmatprep.subr.mxu0 0.0
        %3836 = vmatpush1.msra.mxu0 0.0
        %3837 = vmatprep.subr.mxu0 0.0
        %3838 = vmatpush1.msra.mxu0 0.0
        %3839 = vmatprep.subr.mxu0 0.0
        %3840 = vmatpush1.msra.mxu0 0.0
        %3841 = vmatprep.subr.mxu0 0.0
        %3842 = vmatpush1.msra.mxu0 0.0
        %3843 = vmatprep.subr.mxu0 0.0
        %3844 = vmatpush1.msra.mxu0 0.0
        %3845 = vmatprep.subr.mxu0 0.0
        %3846 = vmatpush1.msra.mxu0 0.0
        %3847 = vmatprep.subr.mxu0 0.0
        %3848 = vmatpush1.msra.mxu0 0.0
        %3849 = vmatprep.subr.mxu0 0.0
        %3850 = vmatpush1.msra.mxu0 0.0
        %3851 = vmatprep.subr.mxu0 0.0
        %3852 = vmatpush1.msra.mxu0 0.0
        %3853 = vmatprep.subr.mxu0 0.0
        %3854 = vmatpush1.msra.mxu0 0.0
        %3855 = vmatprep.subr.mxu0 0.0
        %3856 = vmatpush1.msra.mxu0 0.0
        %3857 = vmatprep.subr.mxu0 0.0
        %3858 = vmatpush1.msra.mxu0 0.0
        %3859 = vmatprep.subr.mxu0 0.0
        %3860 = vmatpush1.msra.mxu0 0.0
        %3861 = vmatprep.subr.mxu0 0.0
        %3862 = vmatpush1.msra.mxu0 0.0
        %3863 = vmatprep.subr.mxu0 0.0
        %3864 = vmatpush1.msra.mxu0 0.0
        %3865 = vmatprep.subr.mxu0 0.0
        %3866 = vmatpush1.msra.mxu0 0.0
        %3867 = vmatprep.subr.mxu0 0.0
        %3868 = vmatpush1.msra.mxu0 0.0
        %3869 = vmatprep.subr.mxu0 0.0
        %3870 = vmatpush1.msra.mxu0 0.0
        %3871 = vmatprep.subr.mxu0 0.0
        %3872 = vmatpush1.msra.mxu0 0.0
        %3873 = vmatprep.subr.mxu0 0.0
        %3874 = vmatpush1.msra.mxu0 0.0
        %3875 = vmatprep.subr.mxu0 0.0
        %3876 = vmatpush1.msra.mxu0 0.0
        %3877 = vmatprep.subr.mxu0 0.0
        %3878 = vmatpush1.msra.mxu0 0.0
        %3879 = vmatprep.mubr.f32.mxu0 0.0
        %3880 = vmatmul.mubr.f32.gmra.mrb[0].mxu0 %v3813
        %v3881 = vpop.f32.mrb[0].mxu0
        %v3882 = vadd.f32 0.0, %v3881
        %v3883 = vpop.f32.mrb[0].mxu0
        %3884 = vdwg.mxu0
        %v3885 = vld [vmem:[%s1027 + $0x18] sm:$0xff]
        %v3887 = vsel %vm2117, %v3882, 0
        %3889 = vmatprep.subr.mxu0 0.0
        %3890 = vmatpush1.msra.mxu0 %v3885
        %3891 = vmatprep.subr.mxu0 0.0
        %3892 = vmatpush1.msra.mxu0 0.0
        %3893 = vmatprep.subr.mxu0 0.0
        %3894 = vmatpush1.msra.mxu0 0.0
        %3895 = vmatprep.subr.mxu0 0.0
        %3896 = vmatpush1.msra.mxu0 0.0
        %3897 = vmatprep.subr.mxu0 0.0
        %3898 = vmatpush1.msra.mxu0 0.0
        %3899 = vmatprep.subr.mxu0 0.0
        %3900 = vmatpush1.msra.mxu0 0.0
        %3901 = vmatprep.subr.mxu0 0.0
        %3902 = vmatpush1.msra.mxu0 0.0
        %3903 = vmatprep.subr.mxu0 0.0
        %3904 = vmatpush1.msra.mxu0 0.0
        %3905 = vmatprep.subr.mxu0 0.0
        %3906 = vmatpush1.msra.mxu0 0.0
        %3907 = vmatprep.subr.mxu0 0.0
        %3908 = vmatpush1.msra.mxu0 0.0
        %3909 = vmatprep.subr.mxu0 0.0
        %3910 = vmatpush1.msra.mxu0 0.0
        %3911 = vmatprep.subr.mxu0 0.0
        %3912 = vmatpush1.msra.mxu0 0.0
        %3913 = vmatprep.subr.mxu0 0.0
        %3914 = vmatpush1.msra.mxu0 0.0
        %3915 = vmatprep.subr.mxu0 0.0
        %3916 = vmatpush1.msra.mxu0 0.0
        %3917 = vmatprep.subr.mxu0 0.0
        %3918 = vmatpush1.msra.mxu0 0.0
        %3919 = vmatprep.subr.mxu0 0.0
        %3920 = vmatpush1.msra.mxu0 0.0
        %3921 = vmatprep.subr.mxu0 0.0
        %3922 = vmatpush1.msra.mxu0 0.0
        %3923 = vmatprep.subr.mxu0 0.0
        %3924 = vmatpush1.msra.mxu0 0.0
        %3925 = vmatprep.subr.mxu0 0.0
        %3926 = vmatpush1.msra.mxu0 0.0
        %3927 = vmatprep.subr.mxu0 0.0
        %3928 = vmatpush1.msra.mxu0 0.0
        %3929 = vmatprep.subr.mxu0 0.0
        %3930 = vmatpush1.msra.mxu0 0.0
        %3931 = vmatprep.subr.mxu0 0.0
        %3932 = vmatpush1.msra.mxu0 0.0
        %3933 = vmatprep.subr.mxu0 0.0
        %3934 = vmatpush1.msra.mxu0 0.0
        %3935 = vmatprep.subr.mxu0 0.0
        %3936 = vmatpush1.msra.mxu0 0.0
        %3937 = vmatprep.subr.mxu0 0.0
        %3938 = vmatpush1.msra.mxu0 0.0
        %3939 = vmatprep.subr.mxu0 0.0
        %3940 = vmatpush1.msra.mxu0 0.0
        %3941 = vmatprep.subr.mxu0 0.0
        %3942 = vmatpush1.msra.mxu0 0.0
        %3943 = vmatprep.subr.mxu0 0.0
        %3944 = vmatpush1.msra.mxu0 0.0
        %3945 = vmatprep.subr.mxu0 0.0
        %3946 = vmatpush1.msra.mxu0 0.0
        %3947 = vmatprep.subr.mxu0 0.0
        %3948 = vmatpush1.msra.mxu0 0.0
        %3949 = vmatprep.subr.mxu0 0.0
        %3950 = vmatpush1.msra.mxu0 0.0
        %3951 = vmatprep.subr.mxu0 0.0
        %3952 = vmatpush1.msra.mxu0 0.0
        %3953 = vmatprep.mubr.f32.mxu0 0.0
        %3954 = vmatmul.mubr.f32.gmra.mrb[0].mxu0 %v3887
        %v3955 = vpop.f32.mrb[0].mxu0
        %v3956 = vadd.f32 0.0, %v3955
        %v3957 = vpop.f32.mrb[0].mxu0
        %3958 = vdwg.mxu0
        %v3959 = vadd.f32 %v3424, %v3956
        %v3960 = vld [vmem:[%s968] sm:$0x1]
        %v3961 = vld [vmem:[%s976] sm:$0x1]
        %v3962 = vsel %vm1826, %v3959, 0.0
        %3963 = vadd.xlane.f32.xlu0 %v3962
        %v3964 = vpop.xlane.xlu0 %3963
        %v3965 = vmul.f32 %v3964, %v1830
        %v3966 = vsub.f32 %v3959, %v3965
        %v3967 = vmul.f32 %v3966, %v3966
        %v3968 = vsel %vm1826, %v3967, 0.0
        %3969 = vadd.xlane.f32.xlu0 %v3968
        %v3970 = vpop.xlane.xlu0 %3969
        %v3971 = vmul.f32 %v3970, %v1837
        %v3973 = vlaneseq
        %v3974 = vshrl.u32 %v3973, 7
        %v3975 = vsub.s32 0, %v3974
        %v3976 = vrot.slane %v3960, %v3975
        %v3978 = vmul.f32 %v3976, %v3966
        %v3979 = vrsqrt.pop %v3971
        %v3980 = vmul.f32 %v3971, %v3979
        %vm3981 = vcmp.eq.f32.partialorder %v3971, inf
        %v3982 = vsel %vm3981, %v3971, %v3980
        %vm3983 = vcmp.eq.f32.partialorder %v3971, 0.0
        %v3984 = vand.u32 %v3971, 2147483648
        %v3985 = vsel %vm3983, %v3984, %v3982
        %v3986 = vadd.f32 %v3985, 1e-06
        %v3987 = vrcp.pop %v3986
        %v3988 = vmul.f32 %v3978, %v3987
        %v3990 = vlaneseq
        %v3991 = vshrl.u32 %v3990, 7
        %v3992 = vsub.s32 0, %v3991
        %v3993 = vrot.slane %v3961, %v3992
        %v3995 = vadd.f32 %v3988, %v3993
        %v3996 = vld [vmem:[%s1044] sm:$0xff]
        %v3997 = vld [vmem:[%s1044 + $0x8] sm:$0xff]
        %v3998 = vld [vmem:[%s1044 + $0x10] sm:$0xff]
        %v3999 = vld [vmem:[%s1044 + $0x18] sm:$0xff]
        %v4000 = vld [vmem:[%s1052] sm:$0x1]
        %v4002 = vlaneseq
        %v4003 = vshrl.u32 %v4002, 7
        %v4004 = vsub.s32 0, %v4003
        %v4005 = vrot.slane %v4000, %v4004
        %v4008 = vsel %vm1826, %v3995, 0
        %4010 = vmatprep.subr.mxu0 0.0
        %4011 = vmatpush1.msra.mxu0 %v3996
        %4012 = vmatprep.subr.mxu0 0.0
        %4013 = vmatpush1.msra.mxu0 %v3997
        %4014 = vmatprep.subr.mxu0 0.0
        %4015 = vmatpush1.msra.mxu0 %v3998
        %4016 = vmatprep.subr.mxu0 0.0
        %4017 = vmatpush1.msra.mxu0 %v3999
        %4018 = vmatprep.subr.mxu0 0.0
        %4019 = vmatpush1.msra.mxu0 0.0
        %4020 = vmatprep.subr.mxu0 0.0
        %4021 = vmatpush1.msra.mxu0 0.0
        %4022 = vmatprep.subr.mxu0 0.0
        %4023 = vmatpush1.msra.mxu0 0.0
        %4024 = vmatprep.subr.mxu0 0.0
        %4025 = vmatpush1.msra.mxu0 0.0
        %4026 = vmatprep.subr.mxu0 0.0
        %4027 = vmatpush1.msra.mxu0 0.0
        %4028 = vmatprep.subr.mxu0 0.0
        %4029 = vmatpush1.msra.mxu0 0.0
        %4030 = vmatprep.subr.mxu0 0.0
        %4031 = vmatpush1.msra.mxu0 0.0
        %4032 = vmatprep.subr.mxu0 0.0
        %4033 = vmatpush1.msra.mxu0 0.0
        %4034 = vmatprep.subr.mxu0 0.0
        %4035 = vmatpush1.msra.mxu0 0.0
        %4036 = vmatprep.subr.mxu0 0.0
        %4037 = vmatpush1.msra.mxu0 0.0
        %4038 = vmatprep.subr.mxu0 0.0
        %4039 = vmatpush1.msra.mxu0 0.0
        %4040 = vmatprep.subr.mxu0 0.0
        %4041 = vmatpush1.msra.mxu0 0.0
        %4042 = vmatprep.subr.mxu0 0.0
        %4043 = vmatpush1.msra.mxu0 0.0
        %4044 = vmatprep.subr.mxu0 0.0
        %4045 = vmatpush1.msra.mxu0 0.0
        %4046 = vmatprep.subr.mxu0 0.0
        %4047 = vmatpush1.msra.mxu0 0.0
        %4048 = vmatprep.subr.mxu0 0.0
        %4049 = vmatpush1.msra.mxu0 0.0
        %4050 = vmatprep.subr.mxu0 0.0
        %4051 = vmatpush1.msra.mxu0 0.0
        %4052 = vmatprep.subr.mxu0 0.0
        %4053 = vmatpush1.msra.mxu0 0.0
        %4054 = vmatprep.subr.mxu0 0.0
        %4055 = vmatpush1.msra.mxu0 0.0
        %4056 = vmatprep.subr.mxu0 0.0
        %4057 = vmatpush1.msra.mxu0 0.0
        %4058 = vmatprep.subr.mxu0 0.0
        %4059 = vmatpush1.msra.mxu0 0.0
        %4060 = vmatprep.subr.mxu0 0.0
        %4061 = vmatpush1.msra.mxu0 0.0
        %4062 = vmatprep.subr.mxu0 0.0
        %4063 = vmatpush1.msra.mxu0 0.0
        %4064 = vmatprep.subr.mxu0 0.0
        %4065 = vmatpush1.msra.mxu0 0.0
        %4066 = vmatprep.subr.mxu0 0.0
        %4067 = vmatpush1.msra.mxu0 0.0
        %4068 = vmatprep.subr.mxu0 0.0
        %4069 = vmatpush1.msra.mxu0 0.0
        %4070 = vmatprep.subr.mxu0 0.0
        %4071 = vmatpush1.msra.mxu0 0.0
        %4072 = vmatprep.subr.mxu0 0.0
        %4073 = vmatpush1.msra.mxu0 0.0
        %4074 = vmatprep.mubr.f32.mxu0 0.0
        %4075 = vmatmul.mubr.f32.gmra.mrb[0].mxu0 %v4008
        %v4076 = vpop.f32.mrb[0].mxu0
        %v4077 = vadd.f32 %v4005, %v4076
        %v4078 = vpop.f32.mrb[0].mxu0
        %4079 = vdwg.mxu0
        %v4080 = vmax.f32 %v4077, 0.0
        %v4081 = vld [vmem:[%s1202] sm:$0xff]
        %v4082 = vld [vmem:[%s1202 + $0x8] sm:$0xff]
        %v4083 = vld [vmem:[%s1202 + $0x10] sm:$0xff]
        %v4084 = vld [vmem:[%s1202 + $0x18] sm:$0xff]
        %v4085 = vld [vmem:[%s1202 + $0x20] sm:$0xff]
        %v4086 = vld [vmem:[%s1202 + $0x28] sm:$0xff]
        %v4087 = vld [vmem:[%s1202 + $0x30] sm:$0xff]
        %v4088 = vld [vmem:[%s1202 + $0x38] sm:$0xff]
        %v4089 = vld [vmem:[%s1205] sm:$0x1]
        %v4091 = vlaneseq
        %v4092 = vshrl.u32 %v4091, 7
        %v4093 = vsub.s32 0, %v4092
        %v4094 = vrot.slane %v4089, %v4093
        %vm4096 = vcmask 523264
        %v4098 = vsel %vm4096, %v4080, 0
        %4100 = vmatprep.subr.mxu0 0.0
        %4101 = vmatpush1.msra.mxu0 %v4081
        %4102 = vmatprep.subr.mxu0 0.0
        %4103 = vmatpush1.msra.mxu0 %v4082
        %4104 = vmatprep.subr.mxu0 0.0
        %4105 = vmatpush1.msra.mxu0 %v4083
        %4106 = vmatprep.subr.mxu0 0.0
        %4107 = vmatpush1.msra.mxu0 %v4084
        %4108 = vmatprep.subr.mxu0 0.0
        %4109 = vmatpush1.msra.mxu0 %v4085
        %4110 = vmatprep.subr.mxu0 0.0
        %4111 = vmatpush1.msra.mxu0 %v4086
        %4112 = vmatprep.subr.mxu0 0.0
        %4113 = vmatpush1.msra.mxu0 %v4087
        %4114 = vmatprep.subr.mxu0 0.0
        %4115 = vmatpush1.msra.mxu0 %v4088
        %4116 = vmatprep.subr.mxu0 0.0
        %4117 = vmatpush1.msra.mxu0 0.0
        %4118 = vmatprep.subr.mxu0 0.0
        %4119 = vmatpush1.msra.mxu0 0.0
        %4120 = vmatprep.subr.mxu0 0.0
        %4121 = vmatpush1.msra.mxu0 0.0
        %4122 = vmatprep.subr.mxu0 0.0
        %4123 = vmatpush1.msra.mxu0 0.0
        %4124 = vmatprep.subr.mxu0 0.0
        %4125 = vmatpush1.msra.mxu0 0.0
        %4126 = vmatprep.subr.mxu0 0.0
        %4127 = vmatpush1.msra.mxu0 0.0
        %4128 = vmatprep.subr.mxu0 0.0
        %4129 = vmatpush1.msra.mxu0 0.0
        %4130 = vmatprep.subr.mxu0 0.0
        %4131 = vmatpush1.msra.mxu0 0.0
        %4132 = vmatprep.subr.mxu0 0.0
        %4133 = vmatpush1.msra.mxu0 0.0
        %4134 = vmatprep.subr.mxu0 0.0
        %4135 = vmatpush1.msra.mxu0 0.0
        %4136 = vmatprep.subr.mxu0 0.0
        %4137 = vmatpush1.msra.mxu0 0.0
        %4138 = vmatprep.subr.mxu0 0.0
        %4139 = vmatpush1.msra.mxu0 0.0
        %4140 = vmatprep.subr.mxu0 0.0
        %4141 = vmatpush1.msra.mxu0 0.0
        %4142 = vmatprep.subr.mxu0 0.0
        %4143 = vmatpush1.msra.mxu0 0.0
        %4144 = vmatprep.subr.mxu0 0.0
        %4145 = vmatpush1.msra.mxu0 0.0
        %4146 = vmatprep.subr.mxu0 0.0
        %4147 = vmatpush1.msra.mxu0 0.0
        %4148 = vmatprep.subr.mxu0 0.0
        %4149 = vmatpush1.msra.mxu0 0.0
        %4150 = vmatprep.subr.mxu0 0.0
        %4151 = vmatpush1.msra.mxu0 0.0
        %4152 = vmatprep.subr.mxu0 0.0
        %4153 = vmatpush1.msra.mxu0 0.0
        %4154 = vmatprep.subr.mxu0 0.0
        %4155 = vmatpush1.msra.mxu0 0.0
        %4156 = vmatprep.subr.mxu0 0.0
        %4157 = vmatpush1.msra.mxu0 0.0
        %4158 = vmatprep.subr.mxu0 0.0
        %4159 = vmatpush1.msra.mxu0 0.0
        %4160 = vmatprep.subr.mxu0 0.0
        %4161 = vmatpush1.msra.mxu0 0.0
        %4162 = vmatprep.subr.mxu0 0.0
        %4163 = vmatpush1.msra.mxu0 0.0
        %4164 = vmatprep.mubr.f32.mxu0 0.0
        %4165 = vmatmul.mubr.f32.gmra.mrb[0].mxu0 %v4098
        %v4166 = vpop.f32.mrb[0].mxu0
        %v4167 = vadd.f32 %v4094, %v4166
        %v4168 = vpop.f32.mrb[0].mxu0
        %4169 = vdwg.mxu0
        %v4170 = vadd.f32 %v3959, %v4167
        %4171 = vst.msk [vmem:[#allocation2] sm:$0xff] %vm1826, %v4170
        %p4172 = scmp.eq.s32.totalorder %s64, 1
        // Predicated region
        $region161: #{tpu_custom_call.1} parent=107 // pred_check
          %p4173 = pneg %p4172
        $region162: #{tpu_custom_call.1} parent=107 // pred_check_branch
          %4175 = sbr.rel (%p4173) target = $region164
        $region163: #{tpu_custom_call.1} parent=107 // pred_region
          %v4176 = vld [vmem:[%s20] sm:$0x1]
          %v4178 = vlaneseq
          %v4179 = vshrl.u32 %v4178, 7
          %v4180 = vsub.s32 0, %v4179
          %v4181 = vrot.slane %v4176, %v4180
          %v4183 = vmul.f32 %v4170, %v4181
          %v4184 = vsel %vm1826, %v4183, 0.0
          %4185 = vadd.xlane.f32.xlu0 %v4184
          %v4186 = vpop.xlane.xlu0 %4185
          %v4187 = vld [vmem:[#allocation3] sm:$0x1]
          %v4189 = vlaneseq
          %v4190 = vshrl.u32 %v4189, 7
          %v4191 = vsub.s32 0, %v4190
          %v4192 = vrot.slane %v4187, %v4191
          %v4194 = vadd.f32 %v4186, %v4192
          %vm4195 = vcmask 7168
          %4196 = vst.msk [vmem:[%s1209] sm:$0xff] %vm4195, %v4194
        $region164: #{tpu_custom_call.1} parent=107 // pred_fallthru
          _
        %p4197 = scmp.lt.s32.totalorder %s63, 1
        %s4198 = scalar_select %p4197, %s63, 1
        %s4199 = smul.addr %s4198, 8
        %s4200 = scalar_lea.vmem %s22, %s4199
        %s4201 = sand.u32 %s656, 1
        %s4202 = scalar_lea.sflag [#allocation6], %s4201
        %s4203 = sand.u32 %s656, 1
        %s4204 = smul.addr %s4203, 32
        %s4205 = scalar_lea.vmem [#allocation24], %s4204
        // Predicated region
        $region165: #{tpu_custom_call.1} parent=107 // pred_check
          %p4206 = pneg %p636
        $region166: #{tpu_custom_call.1} parent=107 // pred_check_branch
          %4208 = sbr.rel (%p4206) target = $region168
        $region167: #{tpu_custom_call.1} parent=107 // pred_region
          _
        $region168: #{tpu_custom_call.1} parent=107 // pred_fallthru
          _
        // Predicated region
        $region169: #{tpu_custom_call.1} parent=107 // pred_check
          %p4209 = pneg %p666
        $region170: #{tpu_custom_call.1} parent=107 // pred_check_branch
          %4211 = sbr.rel (%p4209) target = $region172
        $region171: #{tpu_custom_call.1} parent=107 // pred_region
          %s4212 = smul.u32 %s64, 2
          %s4213 = sadd.s32 %s4212, %s63
          %s4215 = ssub.s32 512, 512
          %4216 = vsyncadd %s4202, %s4215
          %s4217 = smul.addr %s4213, 4
          %s4218 = smul.addr %s4217, 128
          %s4219 = scalar_lea.hbm %s23, %s4218
          %s4220 = sshll.u32 %s4205, 4
          %s4221 = int_to_ptr.vmem [resolvable:$true] %s4220
          %4226 = dma.vmem_to_hbm [thread:$0]  %s4221, 512, %s4219, %s4202, 128, 128, 8
        $region172: #{tpu_custom_call.1} parent=107 // pred_fallthru
          _
      $region108: #{tpu_custom_call.1} parent=5 // pred_fallthru
        _
      %p4227 = scmp.le.s32.totalorder 2, %s54
      // Predicated region
      $region173: #{tpu_custom_call.1} parent=5 // pred_check
        %p4228 = pneg %p4227
      $region174: #{tpu_custom_call.1} parent=5 // pred_check_branch
        %4230 = sbr.rel (%p4228) target = $region176
      $region175: #{tpu_custom_call.1} parent=5 // pred_region
        %s4231 = ssub.s32 %s54, 2
        // Predicated region
        $region177: #{tpu_custom_call.1} parent=175 // pred_check
          %p4232 = pneg %p642
        $region178: #{tpu_custom_call.1} parent=175 // pred_check_branch
          %4234 = sbr.rel (%p4232) target = $region180
        $region179: #{tpu_custom_call.1} parent=175 // pred_region
          %p4235 = scmp.lt.s32.totalorder %s65, 1
          %s4236 = scalar_select %p4235, %s65, 1
          %s4237 = smul.addr %s4236, 8
          %s4238 = scalar_lea.vmem %s22, %s4237
        $region180: #{tpu_custom_call.1} parent=175 // pred_fallthru
          _
        // Predicated region
        $region181: #{tpu_custom_call.1} parent=175 // pred_check
          %p4239 = pneg %p672
        $region182: #{tpu_custom_call.1} parent=175 // pred_check_branch
          %4241 = sbr.rel (%p4239) target = $region184
        $region183: #{tpu_custom_call.1} parent=175 // pred_region
          %s4242 = sand.u32 %s657, 1
          %s4243 = scalar_lea.sflag [#allocation6], %s4242
          %s4244 = sand.u32 %s657, 1
          %s4245 = smul.addr %s4244, 32
          %s4246 = scalar_lea.vmem [#allocation24], %s4245
          %4247 = dma.done %s4243, 512
        $region184: #{tpu_custom_call.1} parent=175 // pred_fallthru
          _
      $region176: #{tpu_custom_call.1} parent=5 // pred_fallthru
        _
    $region6: #{tpu_custom_call.1} parent=1 // loop_footer
      %s58 = sadd.s32 1, %s54
    $region7: #{tpu_custom_call.1} parent=1 // loop_footer_branch
      %53 = sbr.rel target = $region3
    $region8: #{tpu_custom_call.1} parent=1 // loop_exit
      _
    %4248 = vsyncpa [#allocation5], 1
    %s4249 = scalar_lea.sflag [#allocation5], 1
    %4250 = vsyncpa %s4249, 1
    %4251 = vsyncpa [#allocation8], 1
    %s4252 = scalar_lea.sflag [#allocation8], 1
    %4253 = vsyncpa %s4252, 1
    %4254 = vsyncpa [#allocation11], 1
    %s4255 = scalar_lea.sflag [#allocation11], 1
    %4256 = vsyncpa %s4255, 1
    %4257 = vsyncpa [#allocation14], 1
    %s4258 = scalar_lea.sflag [#allocation14], 1
    %4259 = vsyncpa %s4258, 1
    %4260 = vsyncpa [#allocation17], 1
    %s4261 = scalar_lea.sflag [#allocation17], 1
    %4262 = vsyncpa %s4261, 1
    %4263 = vsyncpa [#allocation20], 1
    %s4264 = scalar_lea.sflag [#allocation20], 1
    %4265 = vsyncpa %s4264, 1
    %4266 = vsyncpa [#allocation23], 1
    %s4267 = scalar_lea.sflag [#allocation23], 1
    %4268 = vsyncpa %s4267, 1
    %4269 = vsyncpa [#allocation6], 1
    %s4270 = scalar_lea.sflag [#allocation6], 1
    %4271 = vsyncpa %s4270, 1

</llo_original>
